<compile_context>
chip_gen: v7x
topology: tpu7x:2x2x1
jax: 0.10.0
libtpu: 0.0.40
codegen_flags: <defaults>
</compile_context>

<pallas_src>
import functools

import jax
import jax.numpy as jnp
from jax.experimental import pallas as pl
from jax.experimental.pallas import tpu as pltpu

NUM_LAYERS = 5
NEG = -1e30          # additive mask value for "node not in this graph"
MIB = 1 << 20


# --------------------------------------------------------------------------- #
# Kernel
# --------------------------------------------------------------------------- #
def gcn_kernel(a_ref, x_ref, w1_ref, wnext_ref, bstack_ref, mask_ref,
               wl1_ref, bl1_ref, wl2_ref, bl2_ref, wl3_ref, bl3_ref,
               out_ref,
               xw0_ref, xw1_ref, pooled_ref,
               *, tm, a_full):
    l = pl.program_id(0)                   # GCN layer index (sequential)
    i = pl.program_id(1)                   # node-row tile index (sequential)
    n_layers = pl.num_programs(0)
    n_tiles = pl.num_programs(1)
    last_layer = l == n_layers - 1
    row0 = pl.multiple_of(i * tm, tm)
    b_pad = pooled_ref.shape[0]

    # ---- layer-0 feature transform: conv1 has in_features == 1, so
    #      X @ W1 is an outer product x * w1 (written once, before any agg) ---
    @pl.when(jnp.logical_and(l == 0, i == 0))
    def _():
        xw0_ref[...] = (x_ref[...] * w1_ref[...].astype(jnp.float32)
                        ).astype(jnp.bfloat16)

    # ---- running-max init for global_max_pool --------------------------------
    @pl.when(jnp.logical_and(last_layer, i == 0))
    def _():
        pooled_ref[...] = jnp.full_like(pooled_ref, jnp.finfo(jnp.float32).min)

    def layer_tile(xw_cur_ref, xw_nxt_ref):
        # Row slab of A_hat for this tile (sliced in-kernel if fully resident).
        if a_full:
            a_slab = a_ref[pl.ds(row0, tm), :]
        else:
            a_slab = a_ref[...]

        # Aggregation: A_hat[tile] @ (X W_l), f32 accumulation on the MXU.
        agg = jnp.dot(a_slab, xw_cur_ref[...],
                      preferred_element_type=jnp.float32)       # (tm, 128) f32
        h_new = jnp.maximum(agg + bstack_ref[0], 0.0)           # bias + ReLU

        # Distribute the next layer's feature transform across row tiles
        # (removes the serial X@W lump at every layer boundary).
        @pl.when(jnp.logical_not(last_layer))
        def _():
            xw_nxt_ref[pl.ds(row0, tm), :] = jnp.dot(
                h_new.astype(jnp.bfloat16), wnext_ref[0],
                preferred_element_type=jnp.float32).astype(jnp.bfloat16)

        # Global max pool on the last layer, folded into the tile loop and
        # chunked over graphs (groups of 8) to bound the broadcast temp.
        @pl.when(last_layer)
        def _():
            def pool_group(g, carry):
                g0 = pl.multiple_of(g * 8, 8)
                m = mask_ref[pl.ds(g0, 8), :]                    # (8, tm) 0/-1e30
                cand = jnp.max(h_new[None, :, :] + m[:, :, None], axis=1)
                pooled_ref[pl.ds(g0, 8), :] = jnp.maximum(
                    pooled_ref[pl.ds(g0, 8), :], cand)
                return carry
            jax.lax.fori_loop(0, b_pad // 8, pool_group, 0, unroll=True)

    # Ping-pong the XW buffers by layer parity (avoids dynamic ref-slot index).
    @pl.when(jax.lax.rem(l, 2) == 0)
    def _():
        layer_tile(xw0_ref, xw1_ref)

    @pl.when(jax.lax.rem(l, 2) == 1)
    def _():
        layer_tile(xw1_ref, xw0_ref)

    # ---- MLP head (lane-padded to 128) at the very last grid step ------------
    @pl.when(jnp.logical_and(last_layer, i == n_tiles - 1))
    def _():
        z = pooled_ref[...].astype(jnp.bfloat16)
        z = jnp.dot(z, wl1_ref[...],
                    preferred_element_type=jnp.float32) + bl1_ref[...]
        z = jnp.maximum(z, 0.0).astype(jnp.bfloat16)
        z = jnp.dot(z, wl2_ref[...],
                    preferred_element_type=jnp.float32) + bl2_ref[...]
        z = jnp.maximum(z, 0.0).astype(jnp.bfloat16)
        out_ref[...] = (jnp.dot(z, wl3_ref[...],
                                preferred_element_type=jnp.float32)
                        + bl3_ref[...])


# --------------------------------------------------------------------------- #
# Glue (plain JAX): adjacency / mask construction, padding, tiling decisions.
# --------------------------------------------------------------------------- #
def _round_up(v, m):
    return ((v + m - 1) // m) * m


def _vmem_capacity_bytes() -> int:
    """Per-TensorCore VMEM by generation (conservative fallback: 64 MiB)."""
    try:
        kind = jax.devices()[0].device_kind.lower()
    except Exception:
        kind = ""
    if "v7" in kind:
        return 64 * MIB                      # v7x: 64 MiB per TensorCore
    if "v5" in kind or "v6" in kind or "trillium" in kind:
        return 128 * MIB                     # v5e / v6e
    return 64 * MIB


def gcn_norm_dense(edge_index, edge_weight, padded_nodes):
    """Dense D^{-1/2}(A + I)D^{-1/2} (PyG gcn_norm with self-loops).

    Padded nodes only carry a self-loop so they never influence real nodes.
    """
    src, dst = edge_index[0], edge_index[1]
    a = jnp.zeros((padded_nodes, padded_nodes), jnp.float32)
    a = a.at[dst, src].add(edge_weight.astype(jnp.float32))
    a = a + jnp.eye(padded_nodes, dtype=jnp.float32)
    deg = a.sum(axis=1)
    dinv = jnp.where(deg > 0, jax.lax.rsqrt(deg), 0.0)
    return dinv[:, None] * a * dinv[None, :]


@functools.partial(jax.jit, static_argnames=("num_graphs",))
def gcn_forward(x, edge_index, edge_weight, batch, params, num_graphs):
    n = x.shape[0]
    n_pad = max(128, _round_up(n, 128))
    b_pad = max(8, _round_up(num_graphs, 8))

    # ---- per-generation VMEM budgeting & tile selection ----------------------
    cap = _vmem_capacity_bytes()
    vmem_limit = int(cap * 0.85)
    budget = int(cap * 0.70)

    fixed = (2 * n_pad * 128 * 2            # xw ping-pong scratch (bf16)
             + b_pad * 128 * 4              # pooled scratch (f32)
             + 2 * n_pad * 4                # x block (double-buffered)
             + 2 * MIB)                     # weights/biases/out/mask headroom

    # Full-VMEM residency of A_hat (fetched from HBM once for all 5 layers)?
    # Conservatively budget 2x for Pallas' per-input double buffering.
    a_full = fixed + 2 * n_pad * n_pad * 2 + 2 * b_pad * 512 * 4 <= budget

    tm = 128
    for cand in (512, 256, 128):            # cap 512: pooling temp stays bounded
        if n_pad % cand != 0:
            continue
        if a_full:
            tm = cand
            break
        stream = 2 * cand * n_pad * 2 + 2 * b_pad * cand * 4
        if fixed + stream <= budget:
            tm = cand
            break
    n_tiles = n_pad // tm

    # ---- operands -------------------------------------------------------------
    a_hat = gcn_norm_dense(edge_index, edge_weight, n_pad).astype(jnp.bfloat16)

    x_pad = jnp.zeros((n_pad, 1), jnp.float32).at[:n, :].set(
        x.astype(jnp.float32))
    batch_pad = jnp.full((n_pad,), -1, jnp.int32).at[:n].set(
        batch.astype(jnp.int32))

    # Additive pooling mask: 0 for member nodes, -1e30 otherwise. Dummy graph
    # rows are zeroed (kept bounded) and sliced off in the wrapper.
    gids = jnp.arange(b_pad, dtype=jnp.int32)
    addmask = jnp.where(batch_pad[None, :] == gids[:, None],
                        0.0, NEG).astype(jnp.float32)
    addmask = addmask.at[num_graphs:].set(0.0)

    # Stacked "next layer" GCN weights: at layer l we pre-transform H_{l+1} by
    # W_{l+2}; the last slot is a never-used dummy.
    wstack_next = jnp.stack([params["w2"], params["w3"], params["w4"],
                             params["w5"],
                             jnp.zeros((128, 128), jnp.float32)]
                            ).astype(jnp.bfloat16)                 # (5,128,128)
    bstack = jnp.stack([params["b1"], params["b2"], params["b3"],
                        params["b4"], params["b5"]]).astype(jnp.float32)
    w1 = params["w1"].astype(jnp.bfloat16)                         # (1, 128)

    # MLP head, lane-padded to 128-wide matmuls / lane-dense stores.
    wl1 = jnp.zeros((128, 128), jnp.float32).at[:, :64].set(
        params["wl1"]).astype(jnp.bfloat16)
    bl1 = jnp.zeros((1, 128), jnp.float32).at[:, :64].set(params["bl1"])
    wl2 = jnp.zeros((128, 128), jnp.float32).at[:64, :16].set(
        params["wl2"]).astype(jnp.bfloat16)
    bl2 = jnp.zeros((1, 128), jnp.float32).at[:, :16].set(params["bl2"])
    wl3 = jnp.zeros((128, 128), jnp.float32).at[:16, :2].set(
        params["wl3"]).astype(jnp.bfloat16)
    bl3 = jnp.zeros((1, 128), jnp.float32).at[:, :2].set(params["bl3"])

    # ---- specs ----------------------------------------------------------------
    const2 = lambda shape: pl.BlockSpec(shape, lambda l, i: (0, 0))

    if a_full:
        a_spec = pl.BlockSpec((n_pad, n_pad), lambda l, i: (0, 0))
    else:
        a_spec = pl.BlockSpec((tm, n_pad), lambda l, i: (i, 0))

    # Mask only streams new tiles on the last layer; earlier layers revisit
    # block (0, 0) so the DMA is skipped.
    mask_spec = pl.BlockSpec(
        (b_pad, tm), lambda l, i: (0, jnp.where(l == NUM_LAYERS - 1, i, 0)))

    grid_spec = pltpu.PrefetchScalarGridSpec(
        num_scalar_prefetch=0,
        grid=(NUM_LAYERS, n_tiles),
        in_specs=[
            a_spec,                                               # A_hat
            const2((n_pad, 1)),                                   # x
            const2((1, 128)),                                     # w1
            pl.BlockSpec((1, 128, 128), lambda l, i: (l, 0, 0)),  # W_{l+1} stack
            pl.BlockSpec((1, 1, 128), lambda l, i: (l, 0, 0)),    # b_l stack
            mask_spec,                                            # pooling mask
            const2((128, 128)), const2((1, 128)),                 # lin1
            const2((128, 128)), const2((1, 128)),                 # lin2
            const2((128, 128)), const2((1, 128)),                 # lin3
        ],
        out_specs=pl.BlockSpec((b_pad, 128), lambda l, i: (0, 0)),
        scratch_shapes=[
            pltpu.VMEM((n_pad, 128), jnp.bfloat16),   # XW ping (even layers)
            pltpu.VMEM((n_pad, 128), jnp.bfloat16),   # XW pong (odd layers)
            pltpu.VMEM((b_pad, 128), jnp.float32),    # running per-graph max
        ],
    )

    kernel = functools.partial(gcn_kernel, tm=tm, a_full=a_full)

    out_full = pl.pallas_call(
        kernel,
        out_shape=jax.ShapeDtypeStruct((b_pad, 128), jnp.float32),
        grid_spec=grid_spec,
        # Both axes carry VMEM-scratch state (layer chain, ping-pong XW,
        # running pool), so they must stay sequential on one TensorCore.
        compiler_params=pltpu.CompilerParams(
            dimension_semantics=("arbitrary", "arbitrary"),
            vmem_limit_bytes=vmem_limit),
    )(a_hat, x_pad, w1, wstack_next, bstack, addmask,
      wl1, bl1, wl2, bl2, wl3, bl3)

    return out_full[:num_graphs, :2]


# --------------------------------------------------------------------------- #
# Pure-JAX reference (f32) for a loose correctness check.
# --------------------------------------------------------------------------- #
def gcn_reference(x, edge_index, edge_weight, batch, params, num_graphs):
    n = x.shape[0]
    a = gcn_norm_dense(edge_index, edge_weight, n)
    h = x.astype(jnp.float32)
    for wk, bk in (("w1", "b1"), ("w2", "b2"), ("w3", "b3"),
                   ("w4", "b4"), ("w5", "b5")):
        h = jax.nn.relu(a @ (h @ params[wk]) + params[bk])
    pooled = jax.ops.segment_max(h, batch, num_segments=num_graphs)
    z = jax.nn.relu(pooled @ params["wl1"] + params["bl1"])
    z = jax.nn.relu(z @ params["wl2"] + params["bl2"])
    return z @ params["wl3"] + params["bl3"]


# --------------------------------------------------------------------------- #
# Params
# --------------------------------------------------------------------------- #
def _glorot(key, shape):
    fan_in, fan_out = shape
    lim = (6.0 / (fan_in + fan_out)) ** 0.5
    return jax.random.uniform(key, shape, jnp.float32, -lim, lim)


def init_params(key):
    ks = jax.random.split(key, 16)
    p = {}
    p["w1"] = _glorot(ks[0], (1, 128));   p["b1"] = jnp.zeros((1, 128), jnp.float32)
    p["w2"] = _glorot(ks[1], (128, 128)); p["b2"] = jnp.zeros((1, 128), jnp.float32)
    p["w3"] = _glorot(ks[2], (128, 128)); p["b3"] = jnp.zeros((1, 128), jnp.float32)
    p["w4"] = _glorot(ks[3], (128, 128)); p["b4"] = jnp.zeros((1, 128), jnp.float32)
    p["w5"] = _glorot(ks[4], (128, 128)); p["b5"] = jnp.zeros((1, 128), jnp.float32)
    p["wl1"] = _glorot(ks[5], (128, 64))
    p["bl1"] = _glorot(ks[6], (1, 64)) * 0.1
    p["wl2"] = _glorot(ks[7], (64, 16))
    p["bl2"] = _glorot(ks[8], (1, 16)) * 0.1
    p["wl3"] = _glorot(ks[9], (16, 2))
    p["bl3"] = _glorot(ks[10], (1, 2)) * 0.1
    return p


if __name__ == "__main__":
    key = jax.random.PRNGKey(0)
    k_param, k_x, k_w = jax.random.split(key, 3)

    num_nodes = 32          # two graphs of 16 nodes each (padded to 128 inside)
    num_graphs = 2
    nodes_per_graph = num_nodes // num_graphs

    # node features: one scalar feature per node (GCNConv(1, 128))
    x = jax.random.normal(k_x, (num_nodes, 1), jnp.float32)

    # batch assignment: [0]*16 + [1]*16
    batch = jnp.repeat(jnp.arange(num_graphs, dtype=jnp.int32), nodes_per_graph)

    # symmetric ring edges within each graph
    src_list, dst_list = [], []
    for g in range(num_graphs):
        off = g * nodes_per_graph
        for i in range(nodes_per_graph):
            a_node = off + i
            b_node = off + (i + 1) % nodes_per_graph
            src_list += [a_node, b_node]
            dst_list += [b_node, a_node]
    edge_index = jnp.array([src_list, dst_list], dtype=jnp.int32)     # (2, 64)
    edge_weight = 0.5 + jax.random.uniform(k_w, (edge_index.shape[1],),
                                           jnp.float32)

    params = init_params(k_param)

    out = gcn_forward(x, edge_index, edge_weight, batch, params, num_graphs)
    out = jax.block_until_ready(out)
    assert out.shape == (num_graphs, 2) and out.dtype == jnp.float32
    assert bool(jnp.all(jnp.isfinite(out)))

    # Loose check vs. an f32 reference (kernel uses bf16 MXU operands).
    ref = gcn_reference(x, edge_index, edge_weight, batch, params, num_graphs)
    err = float(jnp.max(jnp.abs(out - ref)))
    scale = float(jnp.max(jnp.abs(ref))) + 1.0
    assert err <= 0.1 * scale, f"kernel/reference mismatch: {err} (scale {scale})"

    print("KERNEL_OK")
</pallas_src>

<mosaic_0001>
module attributes {stable_mosaic.version = 11 : i64} {
  func.func private @main(%arg0: i32) attributes {dimension_semantics = [#tpu.dimension_semantics<core_parallel>], iteration_bounds = array<i64: 2>, tpu.core_type = #tpu.core_type<sc_scalar_subcore>, window_params = []} {
    return
  }
}

module attributes {stable_mosaic.version = 11 : i64} {
  func.func private @main(%arg0: i32) attributes {dimension_semantics = [#tpu.dimension_semantics<core_parallel>], iteration_bounds = array<i64: 2>, tpu.core_type = #tpu.core_type<sc_scalar_subcore>, window_params = []} {
    return
  }
}

module attributes {stable_mosaic.version = 11 : i64} {
  func.func @gcn_kernel(%arg0: i32, %arg1: i32, %arg2: memref<128x128xbf16, #tpu.memory_space<vmem>>, %arg3: memref<128x1xf32, #tpu.memory_space<vmem>>, %arg4: memref<1x128xbf16, #tpu.memory_space<vmem>>, %arg5: memref<1x128x128xbf16, #tpu.memory_space<vmem>>, %arg6: memref<1x1x128xf32, #tpu.memory_space<vmem>>, %arg7: memref<8x128xf32, #tpu.memory_space<vmem>>, %arg8: memref<128x128xbf16, #tpu.memory_space<vmem>>, %arg9: memref<1x128xf32, #tpu.memory_space<vmem>>, %arg10: memref<128x128xbf16, #tpu.memory_space<vmem>>, %arg11: memref<1x128xf32, #tpu.memory_space<vmem>>, %arg12: memref<128x128xbf16, #tpu.memory_space<vmem>>, %arg13: memref<1x128xf32, #tpu.memory_space<vmem>>, %arg14: memref<8x128xf32, #tpu.memory_space<vmem>>, %arg15: memref<128x128xbf16, #tpu.memory_space<vmem>>, %arg16: memref<128x128xbf16, #tpu.memory_space<vmem>>, %arg17: memref<8x128xf32, #tpu.memory_space<vmem>>) attributes {dimension_semantics = [#tpu.dimension_semantics<arbitrary>, #tpu.dimension_semantics<arbitrary>], iteration_bounds = array<i64: 5, 1>, scalar_prefetch = 0 : i64, scratch_operands = 3 : i64, tpu.core_type = #tpu.core_type<tc>, window_params = [{pipeline_mode = #tpu.pipeline_mode<synchronous>, transform_indices = @transform_0, window_bounds = array<i64: 128, 128>}, {pipeline_mode = #tpu.pipeline_mode<synchronous>, transform_indices = @transform_1, window_bounds = array<i64: 128, 1>}, {pipeline_mode = #tpu.pipeline_mode<synchronous>, transform_indices = @transform_2, window_bounds = array<i64: 1, 128>}, {transform_indices = @transform_3, window_bounds = array<i64: 1, 128, 128>}, {transform_indices = @transform_4, window_bounds = array<i64: 1, 1, 128>}, {transform_indices = @transform_5, window_bounds = array<i64: 8, 128>}, {pipeline_mode = #tpu.pipeline_mode<synchronous>, transform_indices = @transform_6, window_bounds = array<i64: 128, 128>}, {pipeline_mode = #tpu.pipeline_mode<synchronous>, transform_indices = @transform_7, window_bounds = array<i64: 1, 128>}, {pipeline_mode = #tpu.pipeline_mode<synchronous>, transform_indices = @transform_8, window_bounds = array<i64: 128, 128>}, {pipeline_mode = #tpu.pipeline_mode<synchronous>, transform_indices = @transform_9, window_bounds = array<i64: 1, 128>}, {pipeline_mode = #tpu.pipeline_mode<synchronous>, transform_indices = @transform_10, window_bounds = array<i64: 128, 128>}, {pipeline_mode = #tpu.pipeline_mode<synchronous>, transform_indices = @transform_11, window_bounds = array<i64: 1, 128>}, {pipeline_mode = #tpu.pipeline_mode<synchronous>, transform_indices = @transform_12, window_bounds = array<i64: 8, 128>}]} {
    %c4_i32 = arith.constant 4 : i32
    %0 = arith.cmpi eq, %arg0, %c4_i32 : i32
    %c128_i32 = arith.constant 128 : i32
    %1 = arith.muli %arg1, %c128_i32 : i32
    %2 = tpu.assume_multiple %1, 128 : i32
    %c0_i32 = arith.constant 0 : i32
    %3 = arith.cmpi eq, %arg0, %c0_i32 : i32
    %c0_i32_0 = arith.constant 0 : i32
    %4 = arith.cmpi eq, %arg1, %c0_i32_0 : i32
    %5 = arith.andi %3, %4 : i1
    %6 = arith.extui %5 : i1 to i32
    %c0_i32_1 = arith.constant 0 : i32
    %7 = arith.cmpi ne, %6, %c0_i32_1 : i32
    scf.if %7 {
      %c0 = arith.constant 0 : index
      %c0_10 = arith.constant 0 : index
      %24 = vector.load %arg3[%c0, %c0_10] : memref<128x1xf32, #tpu.memory_space<vmem>>, vector<128x1xf32>
      %c0_11 = arith.constant 0 : index
      %c0_12 = arith.constant 0 : index
      %25 = vector.load %arg4[%c0_11, %c0_12] : memref<1x128xbf16, #tpu.memory_space<vmem>>, vector<1x128xbf16>
      %26 = arith.extf %25 : vector<1x128xbf16> to vector<1x128xf32>
      %27 = vector.broadcast %24 : vector<128x1xf32> to vector<128x128xf32>
      %28 = vector.broadcast %26 : vector<1x128xf32> to vector<128x128xf32>
      %29 = arith.mulf %27, %28 : vector<128x128xf32>
      %30 = arith.truncf %29 : vector<128x128xf32> to vector<128x128xbf16>
      %c0_13 = arith.constant 0 : index
      %c0_14 = arith.constant 0 : index
      %31 = vector.load %arg15[%c0_13, %c0_14] : memref<128x128xbf16, #tpu.memory_space<vmem>>, vector<128x128xbf16>
      tpu.vector_store %arg15[%c0_13, %c0_14], %30 {strides = array<i32>} : memref<128x128xbf16, #tpu.memory_space<vmem>>, vector<128x128xbf16>,
    } else {
    }
    %c0_i32_2 = arith.constant 0 : i32
    %8 = arith.cmpi eq, %arg1, %c0_i32_2 : i32
    %9 = arith.andi %0, %8 : i1
    %10 = arith.extui %9 : i1 to i32
    %c0_i32_3 = arith.constant 0 : i32
    %11 = arith.cmpi ne, %10, %c0_i32_3 : i32
    scf.if %11 {
      %cst = arith.constant -3.40282347E+38 : f32
      %24 = vector.broadcast %cst : f32 to vector<8x128xf32>
      %c0 = arith.constant 0 : index
      %c0_10 = arith.constant 0 : index
      %25 = vector.load %arg17[%c0, %c0_10] : memref<8x128xf32, #tpu.memory_space<vmem>>, vector<8x128xf32>
      tpu.vector_store %arg17[%c0, %c0_10], %24 {strides = array<i32>} : memref<8x128xf32, #tpu.memory_space<vmem>>, vector<8x128xf32>,
    } else {
    }
    %c2_i32 = arith.constant 2 : i32
    %12 = arith.remsi %arg0, %c2_i32 : i32
    %c0_i32_4 = arith.constant 0 : i32
    %13 = arith.cmpi eq, %12, %c0_i32_4 : i32
    %14 = arith.extui %13 : i1 to i32
    %c0_i32_5 = arith.constant 0 : i32
    %15 = arith.cmpi ne, %14, %c0_i32_5 : i32
    scf.if %15 {
      %24 = arith.index_cast %2 : i32 to index
      %c0 = arith.constant 0 : index
      %25 = vector.load %arg2[%24, %c0] : memref<128x128xbf16, #tpu.memory_space<vmem>>, vector<128x128xbf16>
      %c0_10 = arith.constant 0 : index
      %c0_11 = arith.constant 0 : index
      %26 = vector.load %arg15[%c0_10, %c0_11] : memref<128x128xbf16, #tpu.memory_space<vmem>>, vector<128x128xbf16>
      %cst = arith.constant dense<0.000000e+00> : vector<128x128xf32>
      %27 = tpu.matmul %25, %26, %cst {dimension_numbers = #tpu.dot_dimension_numbers<[1], [0], [0], [1], [0, 0, 1, 1], [], []>} : vector<128x128xbf16>, vector<128x128xbf16>, vector<128x128xf32> -> vector<128x128xf32>
      %c0_12 = arith.constant 0 : index
      %c0_13 = arith.constant 0 : index
      %c0_14 = arith.constant 0 : index
      %28 = vector.load %arg6[%c0_12, %c0_13, %c0_14] : memref<1x1x128xf32, #tpu.memory_space<vmem>>, vector<1x1x128xf32>
      %29 = vector.shape_cast %28 : vector<1x1x128xf32> to vector<1x128xf32>
      %30 = vector.broadcast %29 : vector<1x128xf32> to vector<128x128xf32>
      %31 = arith.addf %27, %30 : vector<128x128xf32>
      %cst_15 = arith.constant 0.000000e+00 : f32
      %32 = vector.broadcast %cst_15 : f32 to vector<128x128xf32>
      %33 = arith.maximumf %31, %32 : vector<128x128xf32>
      %true = arith.constant true
      %34 = arith.xori %0, %true : i1
      %35 = arith.extui %34 : i1 to i32
      %c0_i32_16 = arith.constant 0 : i32
      %36 = arith.cmpi ne, %35, %c0_i32_16 : i32
      scf.if %36 {
        %39 = arith.truncf %33 : vector<128x128xf32> to vector<128x128xbf16>
        %c0_18 = arith.constant 0 : index
        %c0_19 = arith.constant 0 : index
        %c0_20 = arith.constant 0 : index
        %40 = vector.load %arg5[%c0_18, %c0_19, %c0_20] : memref<1x128x128xbf16, #tpu.memory_space<vmem>>, vector<1x128x128xbf16>
        %41 = vector.shape_cast %40 : vector<1x128x128xbf16> to vector<128x128xbf16>
        %cst_21 = arith.constant dense<0.000000e+00> : vector<128x128xf32>
        %42 = tpu.matmul %39, %41, %cst_21 {dimension_numbers = #tpu.dot_dimension_numbers<[1], [0], [0], [1], [0, 0, 1, 1], [], []>} : vector<128x128xbf16>, vector<128x128xbf16>, vector<128x128xf32> -> vector<128x128xf32>
        %43 = arith.truncf %42 : vector<128x128xf32> to vector<128x128xbf16>
        %44 = arith.index_cast %2 : i32 to index
        %c0_22 = arith.constant 0 : index
        %45 = vector.load %arg16[%44, %c0_22] : memref<128x128xbf16, #tpu.memory_space<vmem>>, vector<128x128xbf16>
        tpu.vector_store %arg16[%44, %c0_22], %43 {strides = array<i32>} : memref<128x128xbf16, #tpu.memory_space<vmem>>, vector<128x128xbf16>,
      } else {
      }
      %37 = arith.extui %0 : i1 to i32
      %c0_i32_17 = arith.constant 0 : i32
      %38 = arith.cmpi ne, %37, %c0_i32_17 : i32
      scf.if %38 {
        %c0_i32_18 = arith.constant 0 : i32
        %c8_i32 = arith.constant 8 : i32
        %39 = arith.muli %c0_i32_18, %c8_i32 : i32
        %40 = tpu.assume_multiple %39, 8 : i32
        %41 = arith.index_cast %40 : i32 to index
        %c0_19 = arith.constant 0 : index
        %42 = vector.load %arg7[%41, %c0_19] : memref<8x128xf32, #tpu.memory_space<vmem>>, vector<8x128xf32>
        %43 = vector.shape_cast %33 : vector<128x128xf32> to vector<1x128x128xf32>
        %44 = vector.shape_cast %42 : vector<8x128xf32> to vector<8x128x1xf32>
        %45 = vector.broadcast %43 : vector<1x128x128xf32> to vector<8x128x128xf32>
        %46 = vector.broadcast %44 : vector<8x128x1xf32> to vector<8x128x128xf32>
        %47 = arith.addf %45, %46 : vector<8x128x128xf32>
        %cst_20 = arith.constant dense<0xFF800000> : vector<8x128xf32>
        %48 = vector.multi_reduction <maximumf>, %47, %cst_20 [1] : vector<8x128x128xf32> to vector<8x128xf32>
        %49 = arith.index_cast %40 : i32 to index
        %c0_21 = arith.constant 0 : index
        %50 = vector.load %arg17[%49, %c0_21] : memref<8x128xf32, #tpu.memory_space<vmem>>, vector<8x128xf32>
        %51 = arith.maximumf %50, %48 : vector<8x128xf32>
        %52 = arith.index_cast %40 : i32 to index
        %c0_22 = arith.constant 0 : index
        %53 = vector.load %arg17[%52, %c0_22] : memref<8x128xf32, #tpu.memory_space<vmem>>, vector<8x128xf32>
        tpu.vector_store %arg17[%52, %c0_22], %51 {strides = array<i32>} : memref<8x128xf32, #tpu.memory_space<vmem>>, vector<8x128xf32>,
        %c1_i32_23 = arith.constant 1 : i32
      } else {
      }
    } else {
    }
    %c2_i32_6 = arith.constant 2 : i32
    %16 = arith.remsi %arg0, %c2_i32_6 : i32
    %c1_i32 = arith.constant 1 : i32
    %17 = arith.cmpi eq, %16, %c1_i32 : i32
    %18 = arith.extui %17 : i1 to i32
    %c0_i32_7 = arith.constant 0 : i32
    %19 = arith.cmpi ne, %18, %c0_i32_7 : i32
    scf.if %19 {
      %24 = arith.index_cast %2 : i32 to index
      %c0 = arith.constant 0 : index
      %25 = vector.load %arg2[%24, %c0] : memref<128x128xbf16, #tpu.memory_space<vmem>>, vector<128x128xbf16>
      %c0_10 = arith.constant 0 : index
      %c0_11 = arith.constant 0 : index
      %26 = vector.load %arg16[%c0_10, %c0_11] : memref<128x128xbf16, #tpu.memory_space<vmem>>, vector<128x128xbf16>
      %cst = arith.constant dense<0.000000e+00> : vector<128x128xf32>
      %27 = tpu.matmul %25, %26, %cst {dimension_numbers = #tpu.dot_dimension_numbers<[1], [0], [0], [1], [0, 0, 1, 1], [], []>} : vector<128x128xbf16>, vector<128x128xbf16>, vector<128x128xf32> -> vector<128x128xf32>
      %c0_12 = arith.constant 0 : index
      %c0_13 = arith.constant 0 : index
      %c0_14 = arith.constant 0 : index
      %28 = vector.load %arg6[%c0_12, %c0_13, %c0_14] : memref<1x1x128xf32, #tpu.memory_space<vmem>>, vector<1x1x128xf32>
      %29 = vector.shape_cast %28 : vector<1x1x128xf32> to vector<1x128xf32>
      %30 = vector.broadcast %29 : vector<1x128xf32> to vector<128x128xf32>
      %31 = arith.addf %27, %30 : vector<128x128xf32>
      %cst_15 = arith.constant 0.000000e+00 : f32
      %32 = vector.broadcast %cst_15 : f32 to vector<128x128xf32>
      %33 = arith.maximumf %31, %32 : vector<128x128xf32>
      %true = arith.constant true
      %34 = arith.xori %0, %true : i1
      %35 = arith.extui %34 : i1 to i32
      %c0_i32_16 = arith.constant 0 : i32
      %36 = arith.cmpi ne, %35, %c0_i32_16 : i32
      scf.if %36 {
        %39 = arith.truncf %33 : vector<128x128xf32> to vector<128x128xbf16>
        %c0_18 = arith.constant 0 : index
        %c0_19 = arith.constant 0 : index
        %c0_20 = arith.constant 0 : index
        %40 = vector.load %arg5[%c0_18, %c0_19, %c0_20] : memref<1x128x128xbf16, #tpu.memory_space<vmem>>, vector<1x128x128xbf16>
        %41 = vector.shape_cast %40 : vector<1x128x128xbf16> to vector<128x128xbf16>
        %cst_21 = arith.constant dense<0.000000e+00> : vector<128x128xf32>
        %42 = tpu.matmul %39, %41, %cst_21 {dimension_numbers = #tpu.dot_dimension_numbers<[1], [0], [0], [1], [0, 0, 1, 1], [], []>} : vector<128x128xbf16>, vector<128x128xbf16>, vector<128x128xf32> -> vector<128x128xf32>
        %43 = arith.truncf %42 : vector<128x128xf32> to vector<128x128xbf16>
        %44 = arith.index_cast %2 : i32 to index
        %c0_22 = arith.constant 0 : index
        %45 = vector.load %arg15[%44, %c0_22] : memref<128x128xbf16, #tpu.memory_space<vmem>>, vector<128x128xbf16>
        tpu.vector_store %arg15[%44, %c0_22], %43 {strides = array<i32>} : memref<128x128xbf16, #tpu.memory_space<vmem>>, vector<128x128xbf16>,
      } else {
      }
      %37 = arith.extui %0 : i1 to i32
      %c0_i32_17 = arith.constant 0 : i32
      %38 = arith.cmpi ne, %37, %c0_i32_17 : i32
      scf.if %38 {
        %c0_i32_18 = arith.constant 0 : i32
        %c8_i32 = arith.constant 8 : i32
        %39 = arith.muli %c0_i32_18, %c8_i32 : i32
        %40 = tpu.assume_multiple %39, 8 : i32
        %41 = arith.index_cast %40 : i32 to index
        %c0_19 = arith.constant 0 : index
        %42 = vector.load %arg7[%41, %c0_19] : memref<8x128xf32, #tpu.memory_space<vmem>>, vector<8x128xf32>
        %43 = vector.shape_cast %33 : vector<128x128xf32> to vector<1x128x128xf32>
        %44 = vector.shape_cast %42 : vector<8x128xf32> to vector<8x128x1xf32>
        %45 = vector.broadcast %43 : vector<1x128x128xf32> to vector<8x128x128xf32>
        %46 = vector.broadcast %44 : vector<8x128x1xf32> to vector<8x128x128xf32>
        %47 = arith.addf %45, %46 : vector<8x128x128xf32>
        %cst_20 = arith.constant dense<0xFF800000> : vector<8x128xf32>
        %48 = vector.multi_reduction <maximumf>, %47, %cst_20 [1] : vector<8x128x128xf32> to vector<8x128xf32>
        %49 = arith.index_cast %40 : i32 to index
        %c0_21 = arith.constant 0 : index
        %50 = vector.load %arg17[%49, %c0_21] : memref<8x128xf32, #tpu.memory_space<vmem>>, vector<8x128xf32>
        %51 = arith.maximumf %50, %48 : vector<8x128xf32>
        %52 = arith.index_cast %40 : i32 to index
        %c0_22 = arith.constant 0 : index
        %53 = vector.load %arg17[%52, %c0_22] : memref<8x128xf32, #tpu.memory_space<vmem>>, vector<8x128xf32>
        tpu.vector_store %arg17[%52, %c0_22], %51 {strides = array<i32>} : memref<8x128xf32, #tpu.memory_space<vmem>>, vector<8x128xf32>,
        %c1_i32_23 = arith.constant 1 : i32
      } else {
      }
    } else {
    }
    %c0_i32_8 = arith.constant 0 : i32
    %20 = arith.cmpi eq, %arg1, %c0_i32_8 : i32
    %21 = arith.andi %0, %20 : i1
    %22 = arith.extui %21 : i1 to i32
    %c0_i32_9 = arith.constant 0 : i32
    %23 = arith.cmpi ne, %22, %c0_i32_9 : i32
    scf.if %23 {
      %c0 = arith.constant 0 : index
      %c0_10 = arith.constant 0 : index
      %24 = vector.load %arg17[%c0, %c0_10] : memref<8x128xf32, #tpu.memory_space<vmem>>, vector<8x128xf32>
      %25 = arith.truncf %24 : vector<8x128xf32> to vector<8x128xbf16>
      %c0_11 = arith.constant 0 : index
      %c0_12 = arith.constant 0 : index
      %26 = vector.load %arg8[%c0_11, %c0_12] : memref<128x128xbf16, #tpu.memory_space<vmem>>, vector<128x128xbf16>
      %cst = arith.constant dense<0.000000e+00> : vector<8x128xf32>
      %27 = tpu.matmul %25, %26, %cst {dimension_numbers = #tpu.dot_dimension_numbers<[1], [0], [0], [1], [0, 0, 1, 1], [], []>} : vector<8x128xbf16>, vector<128x128xbf16>, vector<8x128xf32> -> vector<8x128xf32>
      %c0_13 = arith.constant 0 : index
      %c0_14 = arith.constant 0 : index
      %28 = vector.load %arg9[%c0_13, %c0_14] : memref<1x128xf32, #tpu.memory_space<vmem>>, vector<1x128xf32>
      %29 = vector.broadcast %28 : vector<1x128xf32> to vector<8x128xf32>
      %30 = arith.addf %27, %29 : vector<8x128xf32>
      %cst_15 = arith.constant 0.000000e+00 : f32
      %31 = vector.broadcast %cst_15 : f32 to vector<8x128xf32>
      %32 = arith.maximumf %30, %31 : vector<8x128xf32>
      %33 = arith.truncf %32 : vector<8x128xf32> to vector<8x128xbf16>
      %c0_16 = arith.constant 0 : index
      %c0_17 = arith.constant 0 : index
      %34 = vector.load %arg10[%c0_16, %c0_17] : memref<128x128xbf16, #tpu.memory_space<vmem>>, vector<128x128xbf16>
      %cst_18 = arith.constant dense<0.000000e+00> : vector<8x128xf32>
      %35 = tpu.matmul %33, %34, %cst_18 {dimension_numbers = #tpu.dot_dimension_numbers<[1], [0], [0], [1], [0, 0, 1, 1], [], []>} : vector<8x128xbf16>, vector<128x128xbf16>, vector<8x128xf32> -> vector<8x128xf32>
      %c0_19 = arith.constant 0 : index
      %c0_20 = arith.constant 0 : index
      %36 = vector.load %arg11[%c0_19, %c0_20] : memref<1x128xf32, #tpu.memory_space<vmem>>, vector<1x128xf32>
      %37 = vector.broadcast %36 : vector<1x128xf32> to vector<8x128xf32>
      %38 = arith.addf %35, %37 : vector<8x128xf32>
      %cst_21 = arith.constant 0.000000e+00 : f32
      %39 = vector.broadcast %cst_21 : f32 to vector<8x128xf32>
      %40 = arith.maximumf %38, %39 : vector<8x128xf32>
      %41 = arith.truncf %40 : vector<8x128xf32> to vector<8x128xbf16>
      %c0_22 = arith.constant 0 : index
      %c0_23 = arith.constant 0 : index
      %42 = vector.load %arg12[%c0_22, %c0_23] : memref<128x128xbf16, #tpu.memory_space<vmem>>, vector<128x128xbf16>
      %cst_24 = arith.constant dense<0.000000e+00> : vector<8x128xf32>
      %43 = tpu.matmul %41, %42, %cst_24 {dimension_numbers = #tpu.dot_dimension_numbers<[1], [0], [0], [1], [0, 0, 1, 1], [], []>} : vector<8x128xbf16>, vector<128x128xbf16>, vector<8x128xf32> -> vector<8x128xf32>
      %c0_25 = arith.constant 0 : index
      %c0_26 = arith.constant 0 : index
      %44 = vector.load %arg13[%c0_25, %c0_26] : memref<1x128xf32, #tpu.memory_space<vmem>>, vector<1x128xf32>
      %45 = vector.broadcast %44 : vector<1x128xf32> to vector<8x128xf32>
      %46 = arith.addf %43, %45 : vector<8x128xf32>
      %c0_27 = arith.constant 0 : index
      %c0_28 = arith.constant 0 : index
      %47 = vector.load %arg14[%c0_27, %c0_28] : memref<8x128xf32, #tpu.memory_space<vmem>>, vector<8x128xf32>
      tpu.vector_store %arg14[%c0_27, %c0_28], %46 {strides = array<i32>} : memref<8x128xf32, #tpu.memory_space<vmem>>, vector<8x128xf32>,
    } else {
    }
    return
  }
  func.func @transform_0(%arg0: i32, %arg1: i32) -> (i32, i32) {
    %c0_i32 = arith.constant 0 : i32
    %c0_i32_0 = arith.constant 0 : i32
    %c0_i32_1 = arith.constant 0 : i32
    return %c0_i32, %c0_i32_0 : i32, i32
  }
  func.func @transform_1(%arg0: i32, %arg1: i32) -> (i32, i32) {
    %c0_i32 = arith.constant 0 : i32
    %c0_i32_0 = arith.constant 0 : i32
    %c0_i32_1 = arith.constant 0 : i32
    return %c0_i32, %c0_i32_0 : i32, i32
  }
  func.func @transform_2(%arg0: i32, %arg1: i32) -> (i32, i32) {
    %c0_i32 = arith.constant 0 : i32
    %c0_i32_0 = arith.constant 0 : i32
    %c0_i32_1 = arith.constant 0 : i32
    return %c0_i32, %c0_i32_0 : i32, i32
  }
  func.func @transform_3(%arg0: i32, %arg1: i32) -> (i32, i32, i32) {
    %c0_i32 = arith.constant 0 : i32
    %c0_i32_0 = arith.constant 0 : i32
    %c0_i32_1 = arith.constant 0 : i32
    return %arg0, %c0_i32, %c0_i32_0 : i32, i32, i32
  }
  func.func @transform_4(%arg0: i32, %arg1: i32) -> (i32, i32, i32) {
    %c0_i32 = arith.constant 0 : i32
    %c0_i32_0 = arith.constant 0 : i32
    %c0_i32_1 = arith.constant 0 : i32
    return %arg0, %c0_i32, %c0_i32_0 : i32, i32, i32
  }
  func.func @transform_5(%arg0: i32, %arg1: i32) -> (i32, i32) {
    %c4_i32 = arith.constant 4 : i32
    %0 = arith.cmpi eq, %arg0, %c4_i32 : i32
    %c0_i32 = arith.constant 0 : i32
    %1 = arith.select %0, %arg1, %c0_i32 : i32
    %c0_i32_0 = arith.constant 0 : i32
    %c0_i32_1 = arith.constant 0 : i32
    return %c0_i32_0, %1 : i32, i32
  }
  func.func @transform_6(%arg0: i32, %arg1: i32) -> (i32, i32) {
    %c0_i32 = arith.constant 0 : i32
    %c0_i32_0 = arith.constant 0 : i32
    %c0_i32_1 = arith.constant 0 : i32
    return %c0_i32, %c0_i32_0 : i32, i32
  }
  func.func @transform_7(%arg0: i32, %arg1: i32) -> (i32, i32) {
    %c0_i32 = arith.constant 0 : i32
    %c0_i32_0 = arith.constant 0 : i32
    %c0_i32_1 = arith.constant 0 : i32
    return %c0_i32, %c0_i32_0 : i32, i32
  }
  func.func @transform_8(%arg0: i32, %arg1: i32) -> (i32, i32) {
    %c0_i32 = arith.constant 0 : i32
    %c0_i32_0 = arith.constant 0 : i32
    %c0_i32_1 = arith.constant 0 : i32
    return %c0_i32, %c0_i32_0 : i32, i32
  }
  func.func @transform_9(%arg0: i32, %arg1: i32) -> (i32, i32) {
    %c0_i32 = arith.constant 0 : i32
    %c0_i32_0 = arith.constant 0 : i32
    %c0_i32_1 = arith.constant 0 : i32
    return %c0_i32, %c0_i32_0 : i32, i32
  }
  func.func @transform_10(%arg0: i32, %arg1: i32) -> (i32, i32) {
    %c0_i32 = arith.constant 0 : i32
    %c0_i32_0 = arith.constant 0 : i32
    %c0_i32_1 = arith.constant 0 : i32
    return %c0_i32, %c0_i32_0 : i32, i32
  }
  func.func @transform_11(%arg0: i32, %arg1: i32) -> (i32, i32) {
    %c0_i32 = arith.constant 0 : i32
    %c0_i32_0 = arith.constant 0 : i32
    %c0_i32_1 = arith.constant 0 : i32
    return %c0_i32, %c0_i32_0 : i32, i32
  }
  func.func @transform_12(%arg0: i32, %arg1: i32) -> (i32, i32) {
    %c0_i32 = arith.constant 0 : i32
    %c0_i32_0 = arith.constant 0 : i32
    %c0_i32_1 = arith.constant 0 : i32
    return %c0_i32, %c0_i32_0 : i32, i32
  }
}

</mosaic_0001>

<llo_original>
// kernel: gcn_forward.1
$region0: #{gcn_forward.1}
  #allocation0 [shape = 'u32[]', space=smem, size = 0x4, offset = 0x4, fixed_abs, tag = 'smem constant byte address 0x4 - core index']
  #allocation1 [shape = 'u32[144,128]{1,0:T(1,128)}', space=vmem, size = 0x12000, scoped, tag = 'internal scratch']
  #allocation2 [shape = 'bf16[128,128]{1,0:T(16,128)(2,1)}', space=vmem, size = 0x8000, scoped, tag = 'scratch operand']
  #allocation3 [shape = 'bf16[128,128]{1,0:T(16,128)(2,1)}', space=vmem, size = 0x8000, scoped, tag = 'scratch operand']
  #allocation4 [shape = 'f32[8,128]{1,0:T(8,128)}', space=vmem, size = 0x1000, scoped, tag = 'scratch operand']
  %s0 = inlined_call_operand.vmem [shape: bf16[128,128], index: 0, kind: input, shape index: {}]
  %s1 = inlined_call_operand.vmem [shape: f32[128,1], index: 1, kind: input, shape index: {}]
  %s2 = inlined_call_operand.vmem [shape: bf16[1,128], index: 2, kind: input, shape index: {}]
  %s3 = inlined_call_operand.vmem [shape: bf16[5,128,128], index: 3, kind: input, shape index: {}]
  %s4 = inlined_call_operand.vmem [shape: f32[5,1,128], index: 4, kind: input, shape index: {}]
  %s5 = inlined_call_operand.vmem [shape: f32[8,128], index: 5, kind: input, shape index: {}]
  %s6 = inlined_call_operand.vmem [shape: bf16[128,128], index: 6, kind: input, shape index: {}]
  %s7 = inlined_call_operand.vmem [shape: f32[1,128], index: 7, kind: input, shape index: {}]
  %s8 = inlined_call_operand.vmem [shape: bf16[128,128], index: 8, kind: input, shape index: {}]
  %s9 = inlined_call_operand.vmem [shape: f32[1,128], index: 9, kind: input, shape index: {}]
  %s10 = inlined_call_operand.vmem [shape: bf16[128,128], index: 10, kind: input, shape index: {}]
  %s11 = inlined_call_operand.vmem [shape: f32[1,128], index: 11, kind: input, shape index: {}]
  %s12 = inlined_call_operand.vmem [shape: f32[8,128], index: 12, kind: output, shape index: {}]
  %s13 = sld [smem:[#allocation0]]
  $region117: #{gcn_forward.1} parent=0
    _
  %s15 = ssub.s32 1, %s13
  %s16 = scalar_select 0, %s15, %s13
  loop: start=0, step=1, limit=7
  $region2: #{gcn_forward.1} parent=0 // loop_pre_header
    _
  $region3: #{gcn_forward.1} parent=0 // loop_header
    %s18 = sphi 0, %s22
    %p19 = scmp.ge.s32.totalorder %s18, 7
    %s25 = sphi 0, %s37
    %s26 = sphi 0, %s33
    %s27 = sphi 0, %s25
    %s28 = sphi 0, %s26
    %s29 = sphi 0, %s27
    %s30 = sphi 0, %s28
    %s38 = sphi 0, %s38
    %s40 = sphi 0, %s38
    %s41 = sphi 0, %s40
    %s55 = sphi 0, %s41
    %s59 = sphi 0, %s59
    %s61 = sphi 0, %s59
    %s62 = sphi 0, %s61
    %s76 = sphi 0, %s62
    %s80 = sphi 0, %s80
    %s82 = sphi 0, %s80
    %s83 = sphi 0, %s82
    %s97 = sphi 0, %s83
    %s103 = sphi 0, %s105
    %s106 = sphi 0, %s103
    %s107 = sphi 0, %s106
    %s123 = sphi 0, %s107
    %s129 = sphi 0, %s131
    %s132 = sphi 0, %s129
    %s133 = sphi 0, %s132
    %s149 = sphi 0, %s133
    %s159 = sphi 0, %s161
    %s162 = sphi 0, %s159
    %s163 = sphi 0, %s162
    %s179 = sphi 0, %s163
    %s183 = sphi 0, %s183
    %s185 = sphi 0, %s183
    %s186 = sphi 0, %s185
    %s200 = sphi 0, %s186
    %s204 = sphi 0, %s204
    %s206 = sphi 0, %s204
    %s207 = sphi 0, %s206
    %s221 = sphi 0, %s207
    %s225 = sphi 0, %s225
    %s227 = sphi 0, %s225
    %s228 = sphi 0, %s227
    %s242 = sphi 0, %s228
    %s246 = sphi 0, %s246
    %s248 = sphi 0, %s246
    %s249 = sphi 0, %s248
    %s263 = sphi 0, %s249
    %s267 = sphi 0, %s267
    %s269 = sphi 0, %s267
    %s270 = sphi 0, %s269
    %s284 = sphi 0, %s270
    %s288 = sphi 0, %s288
    %s290 = sphi 0, %s288
    %s291 = sphi 0, %s290
    %s305 = sphi 0, %s291
    %s309 = sphi 0, %s309
    %s311 = sphi 0, %s309
    %s312 = sphi 0, %s311
    %s326 = sphi 0, %s312
  $region4: #{gcn_forward.1} parent=0 // loop_header_branch
    %21 = sbr.rel (%p19) target = $region8
  $region5: #{gcn_forward.1} parent=0 // loop_body
    %s23 = ssub.s32 %s18, 1
    %s24 = ssub.s32 %s18, 2
    %s31 = sadd.s32 1, %s26
    %p32 = scmp.ge.s32.totalorder %s31, 1
    %s33 = scalar_select %p32, 0, %s31
    %s34 = sadd.s32 1, %s25
    %s35 = scalar_select %p32, %s34, %s25
    %p36 = scmp.ge.s32.totalorder %s35, 5
    %s37 = scalar_select %p36, 0, %s35
    %s39 = sadd.s32 %s38, 1
    %p42 = scmp.eq.s32.totalorder %s18, 4
    %p43 = scmp.ne.s32.totalorder %s38, %s40
    %p44 = scmp.eq.s32.totalorder %s18, 0
    %p45 = por %p43, %p44
    %p46 = scmp.ne.s32.totalorder %s38, %s40
    %p47 = scmp.eq.s32.totalorder %s23, 4
    %p48 = por %p46, %p47
    %p49 = scmp.ne.s32.totalorder %s40, %s41
    %p50 = scmp.eq.s32.totalorder %s23, 0
    %p51 = por %p49, %p50
    %p52 = scmp.ne.s32.totalorder %s40, %s41
    %p53 = scmp.eq.s32.totalorder %s24, 4
    %p54 = por %p52, %p53
    %p56 = scmp.ne.s32.totalorder %s41, %s55
    %p57 = scmp.eq.s32.totalorder %s24, 0
    %p58 = por %p56, %p57
    %s60 = sadd.s32 %s59, 1
    %p63 = scmp.eq.s32.totalorder %s18, 4
    %p64 = scmp.ne.s32.totalorder %s59, %s61
    %p65 = scmp.eq.s32.totalorder %s18, 0
    %p66 = por %p64, %p65
    %p67 = scmp.ne.s32.totalorder %s59, %s61
    %p68 = scmp.eq.s32.totalorder %s23, 4
    %p69 = por %p67, %p68
    %p70 = scmp.ne.s32.totalorder %s61, %s62
    %p71 = scmp.eq.s32.totalorder %s23, 0
    %p72 = por %p70, %p71
    %p73 = scmp.ne.s32.totalorder %s61, %s62
    %p74 = scmp.eq.s32.totalorder %s24, 4
    %p75 = por %p73, %p74
    %p77 = scmp.ne.s32.totalorder %s62, %s76
    %p78 = scmp.eq.s32.totalorder %s24, 0
    %p79 = por %p77, %p78
    %s81 = sadd.s32 %s80, 1
    %p84 = scmp.eq.s32.totalorder %s18, 4
    %p85 = scmp.ne.s32.totalorder %s80, %s82
    %p86 = scmp.eq.s32.totalorder %s18, 0
    %p87 = por %p85, %p86
    %p88 = scmp.ne.s32.totalorder %s80, %s82
    %p89 = scmp.eq.s32.totalorder %s23, 4
    %p90 = por %p88, %p89
    %p91 = scmp.ne.s32.totalorder %s82, %s83
    %p92 = scmp.eq.s32.totalorder %s23, 0
    %p93 = por %p91, %p92
    %p94 = scmp.ne.s32.totalorder %s82, %s83
    %p95 = scmp.eq.s32.totalorder %s24, 4
    %p96 = por %p94, %p95
    %p98 = scmp.ne.s32.totalorder %s83, %s97
    %p99 = scmp.eq.s32.totalorder %s24, 0
    %p100 = por %p98, %p99
    %s101 = ssub.s32 %s25, %s37
    %p102 = scmp.eq.s32.totalorder %s101, 0
    %s104 = sadd.s32 %s103, 1
    %s105 = scalar_select %p102, %s103, %s104
    %p108 = pneg %p102
    %p109 = scmp.eq.s32.totalorder %s18, 4
    %p110 = por %p108, %p109
    %p111 = scmp.ne.s32.totalorder %s103, %s106
    %p112 = scmp.eq.s32.totalorder %s18, 0
    %p113 = por %p111, %p112
    %p114 = scmp.ne.s32.totalorder %s103, %s106
    %p115 = scmp.eq.s32.totalorder %s23, 4
    %p116 = por %p114, %p115
    %p117 = scmp.ne.s32.totalorder %s106, %s107
    %p118 = scmp.eq.s32.totalorder %s23, 0
    %p119 = por %p117, %p118
    %p120 = scmp.ne.s32.totalorder %s106, %s107
    %p121 = scmp.eq.s32.totalorder %s24, 4
    %p122 = por %p120, %p121
    %p124 = scmp.ne.s32.totalorder %s107, %s123
    %p125 = scmp.eq.s32.totalorder %s24, 0
    %p126 = por %p124, %p125
    %s127 = ssub.s32 %s25, %s37
    %p128 = scmp.eq.s32.totalorder %s127, 0
    %s130 = sadd.s32 %s129, 1
    %s131 = scalar_select %p128, %s129, %s130
    %p134 = pneg %p128
    %p135 = scmp.eq.s32.totalorder %s18, 4
    %p136 = por %p134, %p135
    %p137 = scmp.ne.s32.totalorder %s129, %s132
    %p138 = scmp.eq.s32.totalorder %s18, 0
    %p139 = por %p137, %p138
    %p140 = scmp.ne.s32.totalorder %s129, %s132
    %p141 = scmp.eq.s32.totalorder %s23, 4
    %p142 = por %p140, %p141
    %p143 = scmp.ne.s32.totalorder %s132, %s133
    %p144 = scmp.eq.s32.totalorder %s23, 0
    %p145 = por %p143, %p144
    %p146 = scmp.ne.s32.totalorder %s132, %s133
    %p147 = scmp.eq.s32.totalorder %s24, 4
    %p148 = por %p146, %p147
    %p150 = scmp.ne.s32.totalorder %s133, %s149
    %p151 = scmp.eq.s32.totalorder %s24, 0
    %p152 = por %p150, %p151
    %p153 = scmp.eq.s32.totalorder %s25, 4
    %s154 = scalar_select %p153, %s26, 0
    %p155 = scmp.eq.s32.totalorder %s37, 4
    %s156 = scalar_select %p155, %s33, 0
    %s157 = ssub.s32 %s154, %s156
    %p158 = scmp.eq.s32.totalorder %s157, 0
    %s160 = sadd.s32 %s159, 1
    %s161 = scalar_select %p158, %s159, %s160
    %p164 = pneg %p158
    %p165 = scmp.eq.s32.totalorder %s18, 4
    %p166 = por %p164, %p165
    %p167 = scmp.ne.s32.totalorder %s159, %s162
    %p168 = scmp.eq.s32.totalorder %s18, 0
    %p169 = por %p167, %p168
    %p170 = scmp.ne.s32.totalorder %s159, %s162
    %p171 = scmp.eq.s32.totalorder %s23, 4
    %p172 = por %p170, %p171
    %p173 = scmp.ne.s32.totalorder %s162, %s163
    %p174 = scmp.eq.s32.totalorder %s23, 0
    %p175 = por %p173, %p174
    %p176 = scmp.ne.s32.totalorder %s162, %s163
    %p177 = scmp.eq.s32.totalorder %s24, 4
    %p178 = por %p176, %p177
    %p180 = scmp.ne.s32.totalorder %s163, %s179
    %p181 = scmp.eq.s32.totalorder %s24, 0
    %p182 = por %p180, %p181
    %s184 = sadd.s32 %s183, 1
    %p187 = scmp.eq.s32.totalorder %s18, 4
    %p188 = scmp.ne.s32.totalorder %s183, %s185
    %p189 = scmp.eq.s32.totalorder %s18, 0
    %p190 = por %p188, %p189
    %p191 = scmp.ne.s32.totalorder %s183, %s185
    %p192 = scmp.eq.s32.totalorder %s23, 4
    %p193 = por %p191, %p192
    %p194 = scmp.ne.s32.totalorder %s185, %s186
    %p195 = scmp.eq.s32.totalorder %s23, 0
    %p196 = por %p194, %p195
    %p197 = scmp.ne.s32.totalorder %s185, %s186
    %p198 = scmp.eq.s32.totalorder %s24, 4
    %p199 = por %p197, %p198
    %p201 = scmp.ne.s32.totalorder %s186, %s200
    %p202 = scmp.eq.s32.totalorder %s24, 0
    %p203 = por %p201, %p202
    %s205 = sadd.s32 %s204, 1
    %p208 = scmp.eq.s32.totalorder %s18, 4
    %p209 = scmp.ne.s32.totalorder %s204, %s206
    %p210 = scmp.eq.s32.totalorder %s18, 0
    %p211 = por %p209, %p210
    %p212 = scmp.ne.s32.totalorder %s204, %s206
    %p213 = scmp.eq.s32.totalorder %s23, 4
    %p214 = por %p212, %p213
    %p215 = scmp.ne.s32.totalorder %s206, %s207
    %p216 = scmp.eq.s32.totalorder %s23, 0
    %p217 = por %p215, %p216
    %p218 = scmp.ne.s32.totalorder %s206, %s207
    %p219 = scmp.eq.s32.totalorder %s24, 4
    %p220 = por %p218, %p219
    %p222 = scmp.ne.s32.totalorder %s207, %s221
    %p223 = scmp.eq.s32.totalorder %s24, 0
    %p224 = por %p222, %p223
    %s226 = sadd.s32 %s225, 1
    %p229 = scmp.eq.s32.totalorder %s18, 4
    %p230 = scmp.ne.s32.totalorder %s225, %s227
    %p231 = scmp.eq.s32.totalorder %s18, 0
    %p232 = por %p230, %p231
    %p233 = scmp.ne.s32.totalorder %s225, %s227
    %p234 = scmp.eq.s32.totalorder %s23, 4
    %p235 = por %p233, %p234
    %p236 = scmp.ne.s32.totalorder %s227, %s228
    %p237 = scmp.eq.s32.totalorder %s23, 0
    %p238 = por %p236, %p237
    %p239 = scmp.ne.s32.totalorder %s227, %s228
    %p240 = scmp.eq.s32.totalorder %s24, 4
    %p241 = por %p239, %p240
    %p243 = scmp.ne.s32.totalorder %s228, %s242
    %p244 = scmp.eq.s32.totalorder %s24, 0
    %p245 = por %p243, %p244
    %s247 = sadd.s32 %s246, 1
    %p250 = scmp.eq.s32.totalorder %s18, 4
    %p251 = scmp.ne.s32.totalorder %s246, %s248
    %p252 = scmp.eq.s32.totalorder %s18, 0
    %p253 = por %p251, %p252
    %p254 = scmp.ne.s32.totalorder %s246, %s248
    %p255 = scmp.eq.s32.totalorder %s23, 4
    %p256 = por %p254, %p255
    %p257 = scmp.ne.s32.totalorder %s248, %s249
    %p258 = scmp.eq.s32.totalorder %s23, 0
    %p259 = por %p257, %p258
    %p260 = scmp.ne.s32.totalorder %s248, %s249
    %p261 = scmp.eq.s32.totalorder %s24, 4
    %p262 = por %p260, %p261
    %p264 = scmp.ne.s32.totalorder %s249, %s263
    %p265 = scmp.eq.s32.totalorder %s24, 0
    %p266 = por %p264, %p265
    %s268 = sadd.s32 %s267, 1
    %p271 = scmp.eq.s32.totalorder %s18, 4
    %p272 = scmp.ne.s32.totalorder %s267, %s269
    %p273 = scmp.eq.s32.totalorder %s18, 0
    %p274 = por %p272, %p273
    %p275 = scmp.ne.s32.totalorder %s267, %s269
    %p276 = scmp.eq.s32.totalorder %s23, 4
    %p277 = por %p275, %p276
    %p278 = scmp.ne.s32.totalorder %s269, %s270
    %p279 = scmp.eq.s32.totalorder %s23, 0
    %p280 = por %p278, %p279
    %p281 = scmp.ne.s32.totalorder %s269, %s270
    %p282 = scmp.eq.s32.totalorder %s24, 4
    %p283 = por %p281, %p282
    %p285 = scmp.ne.s32.totalorder %s270, %s284
    %p286 = scmp.eq.s32.totalorder %s24, 0
    %p287 = por %p285, %p286
    %s289 = sadd.s32 %s288, 1
    %p292 = scmp.eq.s32.totalorder %s18, 4
    %p293 = scmp.ne.s32.totalorder %s288, %s290
    %p294 = scmp.eq.s32.totalorder %s18, 0
    %p295 = por %p293, %p294
    %p296 = scmp.ne.s32.totalorder %s288, %s290
    %p297 = scmp.eq.s32.totalorder %s23, 4
    %p298 = por %p296, %p297
    %p299 = scmp.ne.s32.totalorder %s290, %s291
    %p300 = scmp.eq.s32.totalorder %s23, 0
    %p301 = por %p299, %p300
    %p302 = scmp.ne.s32.totalorder %s290, %s291
    %p303 = scmp.eq.s32.totalorder %s24, 4
    %p304 = por %p302, %p303
    %p306 = scmp.ne.s32.totalorder %s291, %s305
    %p307 = scmp.eq.s32.totalorder %s24, 0
    %p308 = por %p306, %p307
    %s310 = sadd.s32 %s309, 1
    %p313 = scmp.eq.s32.totalorder %s18, 4
    %p314 = scmp.ne.s32.totalorder %s309, %s311
    %p315 = scmp.eq.s32.totalorder %s18, 0
    %p316 = por %p314, %p315
    %p317 = scmp.ne.s32.totalorder %s309, %s311
    %p318 = scmp.eq.s32.totalorder %s23, 4
    %p319 = por %p317, %p318
    %p320 = scmp.ne.s32.totalorder %s311, %s312
    %p321 = scmp.eq.s32.totalorder %s23, 0
    %p322 = por %p320, %p321
    %p323 = scmp.ne.s32.totalorder %s311, %s312
    %p324 = scmp.eq.s32.totalorder %s24, 4
    %p325 = por %p323, %p324
    %p327 = scmp.ne.s32.totalorder %s312, %s326
    %p328 = scmp.eq.s32.totalorder %s24, 0
    %p329 = por %p327, %p328
    %p330 = scmp.le.s32.totalorder 1, %s18
    %p331 = scmp.lt.s32.totalorder %s18, 6
    %p332 = pnand %p330, %p331
    %p333 = pneg %p332
    // Predicated region
    $region9: #{gcn_forward.1} parent=5 // pred_check
      _
    $region10: #{gcn_forward.1} parent=5 // pred_check_branch
      %335 = sbr.rel (%p332) target = $region12
    $region11: #{gcn_forward.1} parent=5 // pred_region
      %s336 = ssub.s32 %s18, 1
      // Predicated region
      $region13: #{gcn_forward.1} parent=11 // pred_check
        %p337 = pneg %p51
      $region14: #{gcn_forward.1} parent=11 // pred_check_branch
        %339 = sbr.rel (%p337) target = $region16
      $region15: #{gcn_forward.1} parent=11 // pred_region
        _
      $region16: #{gcn_forward.1} parent=11 // pred_fallthru
        _
      // Predicated region
      $region17: #{gcn_forward.1} parent=11 // pred_check
        %p340 = pneg %p72
      $region18: #{gcn_forward.1} parent=11 // pred_check_branch
        %342 = sbr.rel (%p340) target = $region20
      $region19: #{gcn_forward.1} parent=11 // pred_region
        _
      $region20: #{gcn_forward.1} parent=11 // pred_fallthru
        _
      // Predicated region
      $region21: #{gcn_forward.1} parent=11 // pred_check
        %p343 = pneg %p93
      $region22: #{gcn_forward.1} parent=11 // pred_check_branch
        %345 = sbr.rel (%p343) target = $region24
      $region23: #{gcn_forward.1} parent=11 // pred_region
        _
      $region24: #{gcn_forward.1} parent=11 // pred_fallthru
        _
      // Predicated region
      $region25: #{gcn_forward.1} parent=11 // pred_check
        %p346 = pneg %p196
      $region26: #{gcn_forward.1} parent=11 // pred_check_branch
        %348 = sbr.rel (%p346) target = $region28
      $region27: #{gcn_forward.1} parent=11 // pred_region
        _
      $region28: #{gcn_forward.1} parent=11 // pred_fallthru
        _
      // Predicated region
      $region29: #{gcn_forward.1} parent=11 // pred_check
        %p349 = pneg %p217
      $region30: #{gcn_forward.1} parent=11 // pred_check_branch
        %351 = sbr.rel (%p349) target = $region32
      $region31: #{gcn_forward.1} parent=11 // pred_region
        _
      $region32: #{gcn_forward.1} parent=11 // pred_fallthru
        _
      // Predicated region
      $region33: #{gcn_forward.1} parent=11 // pred_check
        %p352 = pneg %p238
      $region34: #{gcn_forward.1} parent=11 // pred_check_branch
        %354 = sbr.rel (%p352) target = $region36
      $region35: #{gcn_forward.1} parent=11 // pred_region
        _
      $region36: #{gcn_forward.1} parent=11 // pred_fallthru
        _
      // Predicated region
      $region37: #{gcn_forward.1} parent=11 // pred_check
        %p355 = pneg %p259
      $region38: #{gcn_forward.1} parent=11 // pred_check_branch
        %357 = sbr.rel (%p355) target = $region40
      $region39: #{gcn_forward.1} parent=11 // pred_region
        _
      $region40: #{gcn_forward.1} parent=11 // pred_fallthru
        _
      // Predicated region
      $region41: #{gcn_forward.1} parent=11 // pred_check
        %p358 = pneg %p280
      $region42: #{gcn_forward.1} parent=11 // pred_check_branch
        %360 = sbr.rel (%p358) target = $region44
      $region43: #{gcn_forward.1} parent=11 // pred_region
        _
      $region44: #{gcn_forward.1} parent=11 // pred_fallthru
        _
      // Predicated region
      $region45: #{gcn_forward.1} parent=11 // pred_check
        %p361 = pneg %p301
      $region46: #{gcn_forward.1} parent=11 // pred_check_branch
        %363 = sbr.rel (%p361) target = $region48
      $region47: #{gcn_forward.1} parent=11 // pred_region
        _
      $region48: #{gcn_forward.1} parent=11 // pred_fallthru
        _
    $region12: #{gcn_forward.1} parent=5 // pred_fallthru
      _
    %p364 = scmp.lt.s32.totalorder %s18, 5
    // Predicated region
    $region49: #{gcn_forward.1} parent=5 // pred_check
      %p365 = pneg %p364
    $region50: #{gcn_forward.1} parent=5 // pred_check_branch
      %367 = sbr.rel (%p365) target = $region52
    $region51: #{gcn_forward.1} parent=5 // pred_region
      // Predicated region
      $region53: #{gcn_forward.1} parent=51 // pred_check
        %p368 = pneg %p113
      $region54: #{gcn_forward.1} parent=51 // pred_check_branch
        %370 = sbr.rel (%p368) target = $region56
      $region55: #{gcn_forward.1} parent=51 // pred_region
        %p371 = scmp.lt.s32.totalorder %s25, 4
        %s372 = scalar_select %p371, %s25, 4
        %s373 = smul.addr %s372, 16
        %s374 = smul.addr %s373, 4
        %s375 = scalar_lea.vmem %s3, %s374
      $region56: #{gcn_forward.1} parent=51 // pred_fallthru
        _
      // Predicated region
      $region57: #{gcn_forward.1} parent=51 // pred_check
        %p376 = pneg %p139
      $region58: #{gcn_forward.1} parent=51 // pred_check_branch
        %378 = sbr.rel (%p376) target = $region60
      $region59: #{gcn_forward.1} parent=51 // pred_region
        %p379 = scmp.lt.s32.totalorder %s25, 4
        %s380 = scalar_select %p379, %s25, 4
        %s381 = scalar_lea.vmem %s4, %s380
      $region60: #{gcn_forward.1} parent=51 // pred_fallthru
        _
      // Predicated region
      $region61: #{gcn_forward.1} parent=51 // pred_check
        %p382 = pneg %p169
      $region62: #{gcn_forward.1} parent=51 // pred_check_branch
        %384 = sbr.rel (%p382) target = $region64
      $region63: #{gcn_forward.1} parent=51 // pred_region
        %p385 = scmp.eq.s32.totalorder %s25, 4
        %s386 = scalar_select %p385, %s26, 0
        %p387 = scmp.lt.s32.totalorder %s386, 0
        %s388 = scalar_select %p387, %s386, 0
        %s389 = smul.addr %s388, 8
        %s390 = scalar_lea.vmem %s5, %s389
        %p391 = scmp.eq.s32.totalorder %s25, 4
        %s392 = scalar_select %p391, %s26, 0
      $region64: #{gcn_forward.1} parent=51 // pred_fallthru
        _
    $region52: #{gcn_forward.1} parent=5 // pred_fallthru
      _
    %p393 = scmp.le.s32.totalorder 1, %s18
    %p394 = scmp.lt.s32.totalorder %s18, 6
    %p395 = pnand %p393, %p394
    %p396 = pneg %p395
    // Predicated region
    $region65: #{gcn_forward.1} parent=5 // pred_check
      _
    $region66: #{gcn_forward.1} parent=5 // pred_check_branch
      %398 = sbr.rel (%p395) target = $region68
    $region67: #{gcn_forward.1} parent=5 // pred_region
      %s399 = ssub.s32 %s18, 1
      %p400 = pneg %p51
      %p401 = pneg %p48
      %p402 = pneg %p72
      %p403 = pneg %p69
      %p404 = pneg %p93
      %p405 = pneg %p90
      %p406 = scmp.lt.s32.totalorder %s27, 4
      %s407 = scalar_select %p406, %s27, 4
      %s408 = smul.addr %s407, 16
      %s409 = smul.addr %s408, 4
      %s410 = scalar_lea.vmem %s3, %s409
      %p411 = pneg %p119
      %p412 = pneg %p116
      %p413 = scmp.lt.s32.totalorder %s27, 4
      %s414 = scalar_select %p413, %s27, 4
      %s415 = scalar_lea.vmem %s4, %s414
      %p416 = pneg %p145
      %p417 = pneg %p142
      %p418 = scmp.eq.s32.totalorder %s27, 4
      %s419 = scalar_select %p418, %s28, 0
      %p420 = scmp.lt.s32.totalorder %s419, 0
      %s421 = scalar_select %p420, %s419, 0
      %s422 = smul.addr %s421, 8
      %s423 = scalar_lea.vmem %s5, %s422
      %p424 = pneg %p175
      %p425 = pneg %p172
      %p426 = pneg %p196
      %p427 = pneg %p193
      %p428 = pneg %p217
      %p429 = pneg %p214
      %p430 = pneg %p238
      %p431 = pneg %p235
      %p432 = pneg %p259
      %p433 = pneg %p256
      %p434 = pneg %p280
      %p435 = pneg %p277
      %p436 = pneg %p301
      %p437 = pneg %p298
      %p438 = pneg %p322
      %p439 = pneg %p319
      %p440 = scmp.lt.s32.totalorder %s27, 4
      %s441 = scalar_select %p440, %s27, 4
      %s442 = smul.addr %s441, 16
      %s443 = smul.addr %s442, 4
      %s444 = scalar_lea.vmem %s3, %s443
      %p445 = scmp.lt.s32.totalorder %s27, 4
      %s446 = scalar_select %p445, %s27, 4
      %s447 = scalar_lea.vmem %s4, %s446
      %p448 = scmp.eq.s32.totalorder %s27, 4
      %s449 = scalar_select %p448, %s28, 0
      %p450 = scmp.lt.s32.totalorder %s449, 0
      %s451 = scalar_select %p450, %s449, 0
      %s452 = smul.addr %s451, 8
      %s453 = scalar_lea.vmem %s5, %s452
      %p454 = scmp.eq.s32.totalorder %s27, 4
      %s455 = scalar_select %p454, %s28, 0
      %p457 = scmp.eq.s32.totalorder %s27, 4
      %s458 = smul.u32 %s28, 128
      %p459 = scmp.eq.s32.totalorder %s27, 0
      %p460 = scmp.eq.s32.totalorder %s28, 0
      %p461 = pnand %p459, %p460
      %p462 = pneg %p461
      // Predicated region
      $region69: #{gcn_forward.1} parent=67 // pred_check
        _
      $region70: #{gcn_forward.1} parent=67 // pred_check_branch
        %464 = sbr.rel (%p461) target = $region72
      $region71: #{gcn_forward.1} parent=67 // pred_region
        %v465 = vld [vmem:[%s1] sm:$0xff]
        %v466 = vld [vmem:[%s1 + $0x8] sm:$0xff]
        %v467 = vld [vmem:[%s1 + $0x10] sm:$0xff]
        %v468 = vld [vmem:[%s1 + $0x18] sm:$0xff]
        %v469 = vld [vmem:[%s1 + $0x20] sm:$0xff]
        %v470 = vld [vmem:[%s1 + $0x28] sm:$0xff]
        %v471 = vld [vmem:[%s1 + $0x30] sm:$0xff]
        %v472 = vld [vmem:[%s1 + $0x38] sm:$0xff]
        %v473 = vld [vmem:[%s1 + $0x40] sm:$0xff]
        %v474 = vld [vmem:[%s1 + $0x48] sm:$0xff]
        %v475 = vld [vmem:[%s1 + $0x50] sm:$0xff]
        %v476 = vld [vmem:[%s1 + $0x58] sm:$0xff]
        %v477 = vld [vmem:[%s1 + $0x60] sm:$0xff]
        %v478 = vld [vmem:[%s1 + $0x68] sm:$0xff]
        %v479 = vld [vmem:[%s1 + $0x70] sm:$0xff]
        %v480 = vld [vmem:[%s1 + $0x78] sm:$0xff]
        %v481 = vld [vmem:[%s2] sm:$0x1]
        %v482 = vunpack.c.l.bf16 %v481
        %484 = vset.pattern.permute.xlu0 0
        %485 = vperm.xlu0 %484, %v465
        %v486 = vpop.permute.xlu0 %485
        %489 = vset.pattern.permute.xlu0 0
        %490 = vperm.xlu0 %489, %v466
        %v491 = vpop.permute.xlu0 %490
        %494 = vset.pattern.permute.xlu0 0
        %495 = vperm.xlu0 %494, %v467
        %v496 = vpop.permute.xlu0 %495
        %499 = vset.pattern.permute.xlu0 0
        %500 = vperm.xlu0 %499, %v468
        %v501 = vpop.permute.xlu0 %500
        %504 = vset.pattern.permute.xlu0 0
        %505 = vperm.xlu0 %504, %v469
        %v506 = vpop.permute.xlu0 %505
        %509 = vset.pattern.permute.xlu0 0
        %510 = vperm.xlu0 %509, %v470
        %v511 = vpop.permute.xlu0 %510
        %514 = vset.pattern.permute.xlu0 0
        %515 = vperm.xlu0 %514, %v471
        %v516 = vpop.permute.xlu0 %515
        %519 = vset.pattern.permute.xlu0 0
        %520 = vperm.xlu0 %519, %v472
        %v521 = vpop.permute.xlu0 %520
        %524 = vset.pattern.permute.xlu0 0
        %525 = vperm.xlu0 %524, %v473
        %v526 = vpop.permute.xlu0 %525
        %529 = vset.pattern.permute.xlu0 0
        %530 = vperm.xlu0 %529, %v474
        %v531 = vpop.permute.xlu0 %530
        %534 = vset.pattern.permute.xlu0 0
        %535 = vperm.xlu0 %534, %v475
        %v536 = vpop.permute.xlu0 %535
        %539 = vset.pattern.permute.xlu0 0
        %540 = vperm.xlu0 %539, %v476
        %v541 = vpop.permute.xlu0 %540
        %544 = vset.pattern.permute.xlu0 0
        %545 = vperm.xlu0 %544, %v477
        %v546 = vpop.permute.xlu0 %545
        %549 = vset.pattern.permute.xlu0 0
        %550 = vperm.xlu0 %549, %v478
        %v551 = vpop.permute.xlu0 %550
        %554 = vset.pattern.permute.xlu0 0
        %555 = vperm.xlu0 %554, %v479
        %v556 = vpop.permute.xlu0 %555
        %559 = vset.pattern.permute.xlu0 0
        %560 = vperm.xlu0 %559, %v480
        %v561 = vpop.permute.xlu0 %560
        %v563 = vlaneseq
        %v564 = vshrl.u32 %v563, 7
        %v565 = vsub.s32 0, %v564
        %v566 = vrot.slane %v482, %v565
        %v567 = vmul.f32 %v486, %v566
        %v568 = vmul.f32 %v491, %v566
        %v569 = vmul.f32 %v496, %v566
        %v570 = vmul.f32 %v501, %v566
        %v571 = vmul.f32 %v506, %v566
        %v572 = vmul.f32 %v511, %v566
        %v573 = vmul.f32 %v516, %v566
        %v574 = vmul.f32 %v521, %v566
        %v575 = vmul.f32 %v526, %v566
        %v576 = vmul.f32 %v531, %v566
        %v577 = vmul.f32 %v536, %v566
        %v578 = vmul.f32 %v541, %v566
        %v579 = vmul.f32 %v546, %v566
        %v580 = vmul.f32 %v551, %v566
        %v581 = vmul.f32 %v556, %v566
        %v582 = vmul.f32 %v561, %v566
        %v583 = vpack.c.bf16 %v568, %v567
        %v584 = vpack.c.bf16 %v570, %v569
        %v585 = vpack.c.bf16 %v572, %v571
        %v586 = vpack.c.bf16 %v574, %v573
        %v587 = vpack.c.bf16 %v576, %v575
        %v588 = vpack.c.bf16 %v578, %v577
        %v589 = vpack.c.bf16 %v580, %v579
        %v590 = vpack.c.bf16 %v582, %v581
        %591 = vst [vmem:[#allocation2] sm:$0xff] %v583
        %592 = vst [vmem:[#allocation2 + $0x8] sm:$0xff] %v584
        %593 = vst [vmem:[#allocation2 + $0x10] sm:$0xff] %v585
        %594 = vst [vmem:[#allocation2 + $0x18] sm:$0xff] %v586
        %595 = vst [vmem:[#allocation2 + $0x20] sm:$0xff] %v587
        %596 = vst [vmem:[#allocation2 + $0x28] sm:$0xff] %v588
        %597 = vst [vmem:[#allocation2 + $0x30] sm:$0xff] %v589
        %598 = vst [vmem:[#allocation2 + $0x38] sm:$0xff] %v590
      $region72: #{gcn_forward.1} parent=67 // pred_fallthru
        _
      %p599 = pnand %p457, %p460
      %p600 = pneg %p599
      // Predicated region
      $region73: #{gcn_forward.1} parent=67 // pred_check
        _
      $region74: #{gcn_forward.1} parent=67 // pred_check_branch
        %602 = sbr.rel (%p599) target = $region76
      $region75: #{gcn_forward.1} parent=67 // pred_region
        %603 = vst [vmem:[#allocation4] sm:$0xff] -3.4028235e+38
      $region76: #{gcn_forward.1} parent=67 // pred_fallthru
        _
      %p604 = scmp.lt.s32.totalorder %s27, 0
      %s605 = ssub.s32 0, %s27
      %s606 = scalar_select %p604, %s605, %s27
      %s607 = sand.u32 %s606, 1
      %s608 = ssub.s32 0, %s607
      %s609 = scalar_select %p604, %s608, %s607
      %p610 = scmp.eq.s32.totalorder %s609, 0
      // Predicated region
      $region77: #{gcn_forward.1} parent=67 // pred_check
        %p611 = pneg %p610
      $region78: #{gcn_forward.1} parent=67 // pred_check_branch
        %613 = sbr.rel (%p611) target = $region80
      $region79: #{gcn_forward.1} parent=67 // pred_region
        %s614 = sshra.s32 %s458, 3
        %s615 = sand.u32 %s458, 7
        %s616 = smul.addr %s614, 4
        %s617 = scalar_lea.vmem %s0, %s616
        %v618 = vld [vmem:[%s617] sm:$0xf]
        %v619 = vld [vmem:[%s617 + $0x4] sm:$0xf]
        %v620 = vld [vmem:[%s617 + $0x8] sm:$0xf]
        %v621 = vld [vmem:[%s617 + $0xc] sm:$0xf]
        %v622 = vld [vmem:[%s617 + $0x10] sm:$0xf]
        %v623 = vld [vmem:[%s617 + $0x14] sm:$0xf]
        %v624 = vld [vmem:[%s617 + $0x18] sm:$0xf]
        %v625 = vld [vmem:[%s617 + $0x1c] sm:$0xf]
        %v626 = vld [vmem:[%s617 + $0x20] sm:$0xf]
        %v627 = vld [vmem:[%s617 + $0x24] sm:$0xf]
        %v628 = vld [vmem:[%s617 + $0x28] sm:$0xf]
        %v629 = vld [vmem:[%s617 + $0x2c] sm:$0xf]
        %v630 = vld [vmem:[%s617 + $0x30] sm:$0xf]
        %v631 = vld [vmem:[%s617 + $0x34] sm:$0xf]
        %v632 = vld [vmem:[%s617 + $0x38] sm:$0xf]
        %v633 = vld [vmem:[%s617 + $0x3c] sm:$0xf]
        %v634 = vld [vmem:[#allocation2] sm:$0xff]
        %v635 = vld [vmem:[#allocation2 + $0x8] sm:$0xff]
        %v636 = vld [vmem:[#allocation2 + $0x10] sm:$0xff]
        %v637 = vld [vmem:[#allocation2 + $0x18] sm:$0xff]
        %v638 = vld [vmem:[#allocation2 + $0x20] sm:$0xff]
        %v639 = vld [vmem:[#allocation2 + $0x28] sm:$0xff]
        %v640 = vld [vmem:[#allocation2 + $0x30] sm:$0xff]
        %v641 = vld [vmem:[#allocation2 + $0x38] sm:$0xff]
        %v642 = vld [vmem:[%s447] sm:$0x1]
        %v644 = vlaneseq
        %v645 = vshrl.u32 %v644, 7
        %v646 = vsub.s32 0, %v645
        %v647 = vrot.slane %v642, %v646
        %v665 = vunpack.c.l.b16 %v618
        %v666 = vunpack.c.l.b16 %v619
        %v667 = vunpack.c.l.b16 %v620
        %v668 = vunpack.c.l.b16 %v621
        %v669 = vunpack.c.l.b16 %v622
        %v670 = vunpack.c.l.b16 %v623
        %v671 = vunpack.c.l.b16 %v624
        %v672 = vunpack.c.l.b16 %v625
        %v673 = vunpack.c.l.b16 %v626
        %v674 = vunpack.c.l.b16 %v627
        %v675 = vunpack.c.l.b16 %v628
        %v676 = vunpack.c.l.b16 %v629
        %v677 = vunpack.c.l.b16 %v630
        %v678 = vunpack.c.l.b16 %v631
        %v679 = vunpack.c.l.b16 %v632
        %v680 = vunpack.c.l.b16 %v633
        %v681 = vpack.c.b16 %v666, %v665
        %v682 = vpack.c.b16 %v668, %v667
        %v683 = vpack.c.b16 %v670, %v669
        %v684 = vpack.c.b16 %v672, %v671
        %v685 = vpack.c.b16 %v674, %v673
        %v686 = vpack.c.b16 %v676, %v675
        %v687 = vpack.c.b16 %v678, %v677
        %v688 = vpack.c.b16 %v680, %v679
        %697 = vmatprep.subr.bf16.mxu0 0
        %698 = vmatpush1.bf16.msra.mxu0 %v634
        %699 = vmatprep.subr.bf16.mxu0 0
        %700 = vmatpush1.bf16.msra.mxu0 %v635
        %701 = vmatprep.subr.bf16.mxu0 0
        %702 = vmatpush1.bf16.msra.mxu0 %v636
        %703 = vmatprep.subr.bf16.mxu0 0
        %704 = vmatpush1.bf16.msra.mxu0 %v637
        %705 = vmatprep.subr.bf16.mxu0 0
        %706 = vmatpush1.bf16.msra.mxu0 %v638
        %707 = vmatprep.subr.bf16.mxu0 0
        %708 = vmatpush1.bf16.msra.mxu0 %v639
        %709 = vmatprep.subr.bf16.mxu0 0
        %710 = vmatpush1.bf16.msra.mxu0 %v640
        %711 = vmatprep.subr.bf16.mxu0 0
        %712 = vmatpush1.bf16.msra.mxu0 %v641
        %713 = vmatprep.subr.bf16.mxu0 0
        %714 = vmatpush1.bf16.msra.mxu0 0
        %715 = vmatprep.subr.bf16.mxu0 0
        %716 = vmatpush1.bf16.msra.mxu0 0
        %717 = vmatprep.subr.bf16.mxu0 0
        %718 = vmatpush1.bf16.msra.mxu0 0
        %719 = vmatprep.subr.bf16.mxu0 0
        %720 = vmatpush1.bf16.msra.mxu0 0
        %721 = vmatprep.subr.bf16.mxu0 0
        %722 = vmatpush1.bf16.msra.mxu0 0
        %723 = vmatprep.subr.bf16.mxu0 0
        %724 = vmatpush1.bf16.msra.mxu0 0
        %725 = vmatprep.subr.bf16.mxu0 0
        %726 = vmatpush1.bf16.msra.mxu0 0
        %727 = vmatprep.subr.bf16.mxu0 0
        %728 = vmatpush1.bf16.msra.mxu0 0
        %729 = vmatprep.mubr.bf16.mxu0 0
        %730 = vmatmul.mubr.bf16.gmra.mrb[0].mxu0 %v681
        %v731 = vpop.f32.mrb[0].mxu0
        %v732 = vadd.f32 %v647, %v731
        %v733 = vpop.f32.mrb[0].mxu0
        %v734 = vpop.f32.mrb[0].mxu0
        %v735 = vadd.f32 %v647, %v734
        %v736 = vpop.f32.mrb[0].mxu0
        %737 = vmatprep.mubr.bf16.mxu0 0
        %738 = vmatmul.mubr.bf16.gmra.mrb[0].mxu0 %v682
        %v739 = vpop.f32.mrb[0].mxu0
        %v740 = vadd.f32 %v647, %v739
        %v741 = vpop.f32.mrb[0].mxu0
        %v742 = vpop.f32.mrb[0].mxu0
        %v743 = vadd.f32 %v647, %v742
        %v744 = vpop.f32.mrb[0].mxu0
        %745 = vmatprep.mubr.bf16.mxu0 0
        %746 = vmatmul.mubr.bf16.gmra.mrb[0].mxu0 %v683
        %v747 = vpop.f32.mrb[0].mxu0
        %v748 = vadd.f32 %v647, %v747
        %v749 = vpop.f32.mrb[0].mxu0
        %v750 = vpop.f32.mrb[0].mxu0
        %v751 = vadd.f32 %v647, %v750
        %v752 = vpop.f32.mrb[0].mxu0
        %753 = vmatprep.mubr.bf16.mxu0 0
        %754 = vmatmul.mubr.bf16.gmra.mrb[0].mxu0 %v684
        %v755 = vpop.f32.mrb[0].mxu0
        %v756 = vadd.f32 %v647, %v755
        %v757 = vpop.f32.mrb[0].mxu0
        %v758 = vpop.f32.mrb[0].mxu0
        %v759 = vadd.f32 %v647, %v758
        %v760 = vpop.f32.mrb[0].mxu0
        %761 = vmatprep.mubr.bf16.mxu0 0
        %762 = vmatmul.mubr.bf16.gmra.mrb[0].mxu0 %v685
        %v763 = vpop.f32.mrb[0].mxu0
        %v764 = vadd.f32 %v647, %v763
        %v765 = vpop.f32.mrb[0].mxu0
        %v766 = vpop.f32.mrb[0].mxu0
        %v767 = vadd.f32 %v647, %v766
        %v768 = vpop.f32.mrb[0].mxu0
        %769 = vmatprep.mubr.bf16.mxu0 0
        %770 = vmatmul.mubr.bf16.gmra.mrb[0].mxu0 %v686
        %v771 = vpop.f32.mrb[0].mxu0
        %v772 = vadd.f32 %v647, %v771
        %v773 = vpop.f32.mrb[0].mxu0
        %v774 = vpop.f32.mrb[0].mxu0
        %v775 = vadd.f32 %v647, %v774
        %v776 = vpop.f32.mrb[0].mxu0
        %777 = vmatprep.mubr.bf16.mxu0 0
        %778 = vmatmul.mubr.bf16.gmra.mrb[0].mxu0 %v687
        %v779 = vpop.f32.mrb[0].mxu0
        %v780 = vadd.f32 %v647, %v779
        %v781 = vpop.f32.mrb[0].mxu0
        %v782 = vpop.f32.mrb[0].mxu0
        %v783 = vadd.f32 %v647, %v782
        %v784 = vpop.f32.mrb[0].mxu0
        %785 = vmatprep.mubr.bf16.mxu0 0
        %786 = vmatmul.mubr.bf16.gmra.mrb[0].mxu0 %v688
        %v787 = vpop.f32.mrb[0].mxu0
        %v788 = vadd.f32 %v647, %v787
        %v789 = vpop.f32.mrb[0].mxu0
        %v790 = vpop.f32.mrb[0].mxu0
        %v791 = vadd.f32 %v647, %v790
        %v792 = vpop.f32.mrb[0].mxu0
        %793 = vdwg.mxu0
        %v794 = vmax.f32 %v732, 0.0
        %v795 = vmax.f32 %v735, 0.0
        %v796 = vmax.f32 %v740, 0.0
        %v797 = vmax.f32 %v743, 0.0
        %v798 = vmax.f32 %v748, 0.0
        %v799 = vmax.f32 %v751, 0.0
        %v800 = vmax.f32 %v756, 0.0
        %v801 = vmax.f32 %v759, 0.0
        %v802 = vmax.f32 %v764, 0.0
        %v803 = vmax.f32 %v767, 0.0
        %v804 = vmax.f32 %v772, 0.0
        %v805 = vmax.f32 %v775, 0.0
        %v806 = vmax.f32 %v780, 0.0
        %v807 = vmax.f32 %v783, 0.0
        %v808 = vmax.f32 %v788, 0.0
        %v809 = vmax.f32 %v791, 0.0
        %p810 = scmp.ne.s32.totalorder %s27, 4
        // Predicated region
        $region81: #{gcn_forward.1} parent=79 // pred_check
          %p811 = pneg %p810
        $region82: #{gcn_forward.1} parent=79 // pred_check_branch
          %813 = sbr.rel (%p811) target = $region84
        $region83: #{gcn_forward.1} parent=79 // pred_region
          %v814 = vpack.c.bf16 %v795, %v794
          %v815 = vpack.c.bf16 %v797, %v796
          %v816 = vpack.c.bf16 %v799, %v798
          %v817 = vpack.c.bf16 %v801, %v800
          %v818 = vpack.c.bf16 %v803, %v802
          %v819 = vpack.c.bf16 %v805, %v804
          %v820 = vpack.c.bf16 %v807, %v806
          %v821 = vpack.c.bf16 %v809, %v808
          %v822 = vld [vmem:[%s444] sm:$0xf]
          %v823 = vld [vmem:[%s444 + $0x4] sm:$0xf]
          %v824 = vld [vmem:[%s444 + $0x8] sm:$0xf]
          %v825 = vld [vmem:[%s444 + $0xc] sm:$0xf]
          %v826 = vld [vmem:[%s444 + $0x10] sm:$0xf]
          %v827 = vld [vmem:[%s444 + $0x14] sm:$0xf]
          %v828 = vld [vmem:[%s444 + $0x18] sm:$0xf]
          %v829 = vld [vmem:[%s444 + $0x1c] sm:$0xf]
          %v830 = vld [vmem:[%s444 + $0x20] sm:$0xf]
          %v831 = vld [vmem:[%s444 + $0x24] sm:$0xf]
          %v832 = vld [vmem:[%s444 + $0x28] sm:$0xf]
          %v833 = vld [vmem:[%s444 + $0x2c] sm:$0xf]
          %v834 = vld [vmem:[%s444 + $0x30] sm:$0xf]
          %v835 = vld [vmem:[%s444 + $0x34] sm:$0xf]
          %v836 = vld [vmem:[%s444 + $0x38] sm:$0xf]
          %v837 = vld [vmem:[%s444 + $0x3c] sm:$0xf]
          %v854 = vunpack.c.l.b16 %v822
          %v855 = vunpack.c.l.b16 %v823
          %v856 = vunpack.c.l.b16 %v824
          %v857 = vunpack.c.l.b16 %v825
          %v858 = vunpack.c.l.b16 %v826
          %v859 = vunpack.c.l.b16 %v827
          %v860 = vunpack.c.l.b16 %v828
          %v861 = vunpack.c.l.b16 %v829
          %v862 = vunpack.c.l.b16 %v830
          %v863 = vunpack.c.l.b16 %v831
          %v864 = vunpack.c.l.b16 %v832
          %v865 = vunpack.c.l.b16 %v833
          %v866 = vunpack.c.l.b16 %v834
          %v867 = vunpack.c.l.b16 %v835
          %v868 = vunpack.c.l.b16 %v836
          %v869 = vunpack.c.l.b16 %v837
          %v870 = vpack.c.b16 %v855, %v854
          %v871 = vpack.c.b16 %v857, %v856
          %v872 = vpack.c.b16 %v859, %v858
          %v873 = vpack.c.b16 %v861, %v860
          %v874 = vpack.c.b16 %v863, %v862
          %v875 = vpack.c.b16 %v865, %v864
          %v876 = vpack.c.b16 %v867, %v866
          %v877 = vpack.c.b16 %v869, %v868
          %886 = vmatprep.subr.bf16.mxu0 0
          %887 = vmatpush1.bf16.msra.mxu0 %v870
          %888 = vmatprep.subr.bf16.mxu0 0
          %889 = vmatpush1.bf16.msra.mxu0 %v871
          %890 = vmatprep.subr.bf16.mxu0 0
          %891 = vmatpush1.bf16.msra.mxu0 %v872
          %892 = vmatprep.subr.bf16.mxu0 0
          %893 = vmatpush1.bf16.msra.mxu0 %v873
          %894 = vmatprep.subr.bf16.mxu0 0
          %895 = vmatpush1.bf16.msra.mxu0 %v874
          %896 = vmatprep.subr.bf16.mxu0 0
          %897 = vmatpush1.bf16.msra.mxu0 %v875
          %898 = vmatprep.subr.bf16.mxu0 0
          %899 = vmatpush1.bf16.msra.mxu0 %v876
          %900 = vmatprep.subr.bf16.mxu0 0
          %901 = vmatpush1.bf16.msra.mxu0 %v877
          %902 = vmatprep.subr.bf16.mxu0 0
          %903 = vmatpush1.bf16.msra.mxu0 0
          %904 = vmatprep.subr.bf16.mxu0 0
          %905 = vmatpush1.bf16.msra.mxu0 0
          %906 = vmatprep.subr.bf16.mxu0 0
          %907 = vmatpush1.bf16.msra.mxu0 0
          %908 = vmatprep.subr.bf16.mxu0 0
          %909 = vmatpush1.bf16.msra.mxu0 0
          %910 = vmatprep.subr.bf16.mxu0 0
          %911 = vmatpush1.bf16.msra.mxu0 0
          %912 = vmatprep.subr.bf16.mxu0 0
          %913 = vmatpush1.bf16.msra.mxu0 0
          %914 = vmatprep.subr.bf16.mxu0 0
          %915 = vmatpush1.bf16.msra.mxu0 0
          %916 = vmatprep.subr.bf16.mxu0 0
          %917 = vmatpush1.bf16.msra.mxu0 0
          %918 = vmatprep.mubr.bf16.mxu0 0
          %919 = vmatmul.mubr.bf16.gmra.mrb[0].mxu0 %v814
          %v920 = vpop.f32.mrb[0].mxu0
          %v921 = vadd.f32 0.0, %v920
          %v922 = vpop.f32.mrb[0].mxu0
          %v923 = vpop.f32.mrb[0].mxu0
          %v924 = vadd.f32 0.0, %v923
          %v925 = vpop.f32.mrb[0].mxu0
          %926 = vmatprep.mubr.bf16.mxu0 0
          %927 = vmatmul.mubr.bf16.gmra.mrb[0].mxu0 %v815
          %v928 = vpop.f32.mrb[0].mxu0
          %v929 = vadd.f32 0.0, %v928
          %v930 = vpop.f32.mrb[0].mxu0
          %v931 = vpop.f32.mrb[0].mxu0
          %v932 = vadd.f32 0.0, %v931
          %v933 = vpop.f32.mrb[0].mxu0
          %934 = vmatprep.mubr.bf16.mxu0 0
          %935 = vmatmul.mubr.bf16.gmra.mrb[0].mxu0 %v816
          %v936 = vpop.f32.mrb[0].mxu0
          %v937 = vadd.f32 0.0, %v936
          %v938 = vpop.f32.mrb[0].mxu0
          %v939 = vpop.f32.mrb[0].mxu0
          %v940 = vadd.f32 0.0, %v939
          %v941 = vpop.f32.mrb[0].mxu0
          %942 = vmatprep.mubr.bf16.mxu0 0
          %943 = vmatmul.mubr.bf16.gmra.mrb[0].mxu0 %v817
          %v944 = vpop.f32.mrb[0].mxu0
          %v945 = vadd.f32 0.0, %v944
          %v946 = vpop.f32.mrb[0].mxu0
          %v947 = vpop.f32.mrb[0].mxu0
          %v948 = vadd.f32 0.0, %v947
          %v949 = vpop.f32.mrb[0].mxu0
          %950 = vmatprep.mubr.bf16.mxu0 0
          %951 = vmatmul.mubr.bf16.gmra.mrb[0].mxu0 %v818
          %v952 = vpop.f32.mrb[0].mxu0
          %v953 = vadd.f32 0.0, %v952
          %v954 = vpop.f32.mrb[0].mxu0
          %v955 = vpop.f32.mrb[0].mxu0
          %v956 = vadd.f32 0.0, %v955
          %v957 = vpop.f32.mrb[0].mxu0
          %958 = vmatprep.mubr.bf16.mxu0 0
          %959 = vmatmul.mubr.bf16.gmra.mrb[0].mxu0 %v819
          %v960 = vpop.f32.mrb[0].mxu0
          %v961 = vadd.f32 0.0, %v960
          %v962 = vpop.f32.mrb[0].mxu0
          %v963 = vpop.f32.mrb[0].mxu0
          %v964 = vadd.f32 0.0, %v963
          %v965 = vpop.f32.mrb[0].mxu0
          %966 = vmatprep.mubr.bf16.mxu0 0
          %967 = vmatmul.mubr.bf16.gmra.mrb[0].mxu0 %v820
          %v968 = vpop.f32.mrb[0].mxu0
          %v969 = vadd.f32 0.0, %v968
          %v970 = vpop.f32.mrb[0].mxu0
          %v971 = vpop.f32.mrb[0].mxu0
          %v972 = vadd.f32 0.0, %v971
          %v973 = vpop.f32.mrb[0].mxu0
          %974 = vmatprep.mubr.bf16.mxu0 0
          %975 = vmatmul.mubr.bf16.gmra.mrb[0].mxu0 %v821
          %v976 = vpop.f32.mrb[0].mxu0
          %v977 = vadd.f32 0.0, %v976
          %v978 = vpop.f32.mrb[0].mxu0
          %v979 = vpop.f32.mrb[0].mxu0
          %v980 = vadd.f32 0.0, %v979
          %v981 = vpop.f32.mrb[0].mxu0
          %982 = vdwg.mxu0
          %v983 = vpack.c.bf16 %v924, %v921
          %v984 = vpack.c.bf16 %v932, %v929
          %v985 = vpack.c.bf16 %v940, %v937
          %v986 = vpack.c.bf16 %v948, %v945
          %v987 = vpack.c.bf16 %v956, %v953
          %v988 = vpack.c.bf16 %v964, %v961
          %v989 = vpack.c.bf16 %v972, %v969
          %v990 = vpack.c.bf16 %v980, %v977
          %s991 = sshra.s32 %s458, 4
          %s992 = sand.u32 %s458, 15
          %s993 = smul.addr %s991, 8
          %s994 = scalar_lea.vmem [#allocation3], %s993
          %995 = vst [vmem:[%s994] sm:$0xff] %v983
          %996 = vst [vmem:[%s994 + $0x8] sm:$0xff] %v984
          %997 = vst [vmem:[%s994 + $0x10] sm:$0xff] %v985
          %998 = vst [vmem:[%s994 + $0x18] sm:$0xff] %v986
          %999 = vst [vmem:[%s994 + $0x20] sm:$0xff] %v987
          %1000 = vst [vmem:[%s994 + $0x28] sm:$0xff] %v988
          %1001 = vst [vmem:[%s994 + $0x30] sm:$0xff] %v989
          %1002 = vst [vmem:[%s994 + $0x38] sm:$0xff] %v990
        $region84: #{gcn_forward.1} parent=79 // pred_fallthru
          _
        // Predicated region
        $region85: #{gcn_forward.1} parent=79 // pred_check
          %p1003 = pneg %p457
        $region86: #{gcn_forward.1} parent=79 // pred_check_branch
          %1005 = sbr.rel (%p1003) target = $region88
        $region87: #{gcn_forward.1} parent=79 // pred_region
          %v1006 = vld [vmem:[%s453] sm:$0xff]
          %v1007 = vlaneseq
          %v1008 = vshrl.u32 %v1007, 7
          %v1009 = vsub.s32 0, %v1008
          %v1010 = vrot.slane %v1006, %v1009
          %1012 = vbcast.lane.b32.xlu0 %v1010, 256
          %v1013 = vpop.permute.xlu0 %1012
          %s1015 = sor.u32 256, 8
          %1016 = vbcast.lane.b32.xlu0 %v1010, %s1015
          %v1017 = vpop.permute.xlu0 %1016
          %s1019 = sor.u32 256, 16
          %1020 = vbcast.lane.b32.xlu0 %v1010, %s1019
          %v1021 = vpop.permute.xlu0 %1020
          %s1023 = sor.u32 256, 24
          %1024 = vbcast.lane.b32.xlu0 %v1010, %s1023
          %v1025 = vpop.permute.xlu0 %1024
          %s1027 = sor.u32 256, 32
          %1028 = vbcast.lane.b32.xlu0 %v1010, %s1027
          %v1029 = vpop.permute.xlu0 %1028
          %s1031 = sor.u32 256, 40
          %1032 = vbcast.lane.b32.xlu0 %v1010, %s1031
          %v1033 = vpop.permute.xlu0 %1032
          %s1035 = sor.u32 256, 48
          %1036 = vbcast.lane.b32.xlu0 %v1010, %s1035
          %v1037 = vpop.permute.xlu0 %1036
          %s1039 = sor.u32 256, 56
          %1040 = vbcast.lane.b32.xlu0 %v1010, %s1039
          %v1041 = vpop.permute.xlu0 %1040
          %s1043 = sor.u32 256, 64
          %1044 = vbcast.lane.b32.xlu0 %v1010, %s1043
          %v1045 = vpop.permute.xlu0 %1044
          %s1047 = sor.u32 256, 72
          %1048 = vbcast.lane.b32.xlu0 %v1010, %s1047
          %v1049 = vpop.permute.xlu0 %1048
          %s1051 = sor.u32 256, 80
          %1052 = vbcast.lane.b32.xlu0 %v1010, %s1051
          %v1053 = vpop.permute.xlu0 %1052
          %s1055 = sor.u32 256, 88
          %1056 = vbcast.lane.b32.xlu0 %v1010, %s1055
          %v1057 = vpop.permute.xlu0 %1056
          %s1059 = sor.u32 256, 96
          %1060 = vbcast.lane.b32.xlu0 %v1010, %s1059
          %v1061 = vpop.permute.xlu0 %1060
          %s1063 = sor.u32 256, 104
          %1064 = vbcast.lane.b32.xlu0 %v1010, %s1063
          %v1065 = vpop.permute.xlu0 %1064
          %s1067 = sor.u32 256, 112
          %1068 = vbcast.lane.b32.xlu0 %v1010, %s1067
          %v1069 = vpop.permute.xlu0 %1068
          %s1071 = sor.u32 256, 120
          %1072 = vbcast.lane.b32.xlu0 %v1010, %s1071
          %v1073 = vpop.permute.xlu0 %1072
          %v1074 = vlaneseq
          %v1075 = vshrl.u32 %v1074, 7
          %v1076 = vsub.s32 1, %v1075
          %v1077 = vrot.slane %v1006, %v1076
          %1079 = vbcast.lane.b32.xlu0 %v1077, 256
          %v1080 = vpop.permute.xlu0 %1079
          %s1082 = sor.u32 256, 8
          %1083 = vbcast.lane.b32.xlu0 %v1077, %s1082
          %v1084 = vpop.permute.xlu0 %1083
          %s1086 = sor.u32 256, 16
          %1087 = vbcast.lane.b32.xlu0 %v1077, %s1086
          %v1088 = vpop.permute.xlu0 %1087
          %s1090 = sor.u32 256, 24
          %1091 = vbcast.lane.b32.xlu0 %v1077, %s1090
          %v1092 = vpop.permute.xlu0 %1091
          %s1094 = sor.u32 256, 32
          %1095 = vbcast.lane.b32.xlu0 %v1077, %s1094
          %v1096 = vpop.permute.xlu0 %1095
          %s1098 = sor.u32 256, 40
          %1099 = vbcast.lane.b32.xlu0 %v1077, %s1098
          %v1100 = vpop.permute.xlu0 %1099
          %s1102 = sor.u32 256, 48
          %1103 = vbcast.lane.b32.xlu0 %v1077, %s1102
          %v1104 = vpop.permute.xlu0 %1103
          %s1106 = sor.u32 256, 56
          %1107 = vbcast.lane.b32.xlu0 %v1077, %s1106
          %v1108 = vpop.permute.xlu0 %1107
          %s1110 = sor.u32 256, 64
          %1111 = vbcast.lane.b32.xlu0 %v1077, %s1110
          %v1112 = vpop.permute.xlu0 %1111
          %s1114 = sor.u32 256, 72
          %1115 = vbcast.lane.b32.xlu0 %v1077, %s1114
          %v1116 = vpop.permute.xlu0 %1115
          %s1118 = sor.u32 256, 80
          %1119 = vbcast.lane.b32.xlu0 %v1077, %s1118
          %v1120 = vpop.permute.xlu0 %1119
          %s1122 = sor.u32 256, 88
          %1123 = vbcast.lane.b32.xlu0 %v1077, %s1122
          %v1124 = vpop.permute.xlu0 %1123
          %s1126 = sor.u32 256, 96
          %1127 = vbcast.lane.b32.xlu0 %v1077, %s1126
          %v1128 = vpop.permute.xlu0 %1127
          %s1130 = sor.u32 256, 104
          %1131 = vbcast.lane.b32.xlu0 %v1077, %s1130
          %v1132 = vpop.permute.xlu0 %1131
          %s1134 = sor.u32 256, 112
          %1135 = vbcast.lane.b32.xlu0 %v1077, %s1134
          %v1136 = vpop.permute.xlu0 %1135
          %s1138 = sor.u32 256, 120
          %1139 = vbcast.lane.b32.xlu0 %v1077, %s1138
          %v1140 = vpop.permute.xlu0 %1139
          %v1141 = vlaneseq
          %v1142 = vshrl.u32 %v1141, 7
          %v1143 = vsub.s32 2, %v1142
          %v1144 = vrot.slane %v1006, %v1143
          %1146 = vbcast.lane.b32.xlu0 %v1144, 256
          %v1147 = vpop.permute.xlu0 %1146
          %s1149 = sor.u32 256, 8
          %1150 = vbcast.lane.b32.xlu0 %v1144, %s1149
          %v1151 = vpop.permute.xlu0 %1150
          %s1153 = sor.u32 256, 16
          %1154 = vbcast.lane.b32.xlu0 %v1144, %s1153
          %v1155 = vpop.permute.xlu0 %1154
          %s1157 = sor.u32 256, 24
          %1158 = vbcast.lane.b32.xlu0 %v1144, %s1157
          %v1159 = vpop.permute.xlu0 %1158
          %s1161 = sor.u32 256, 32
          %1162 = vbcast.lane.b32.xlu0 %v1144, %s1161
          %v1163 = vpop.permute.xlu0 %1162
          %s1165 = sor.u32 256, 40
          %1166 = vbcast.lane.b32.xlu0 %v1144, %s1165
          %v1167 = vpop.permute.xlu0 %1166
          %s1169 = sor.u32 256, 48
          %1170 = vbcast.lane.b32.xlu0 %v1144, %s1169
          %v1171 = vpop.permute.xlu0 %1170
          %s1173 = sor.u32 256, 56
          %1174 = vbcast.lane.b32.xlu0 %v1144, %s1173
          %v1175 = vpop.permute.xlu0 %1174
          %s1177 = sor.u32 256, 64
          %1178 = vbcast.lane.b32.xlu0 %v1144, %s1177
          %v1179 = vpop.permute.xlu0 %1178
          %s1181 = sor.u32 256, 72
          %1182 = vbcast.lane.b32.xlu0 %v1144, %s1181
          %v1183 = vpop.permute.xlu0 %1182
          %s1185 = sor.u32 256, 80
          %1186 = vbcast.lane.b32.xlu0 %v1144, %s1185
          %v1187 = vpop.permute.xlu0 %1186
          %s1189 = sor.u32 256, 88
          %1190 = vbcast.lane.b32.xlu0 %v1144, %s1189
          %v1191 = vpop.permute.xlu0 %1190
          %s1193 = sor.u32 256, 96
          %1194 = vbcast.lane.b32.xlu0 %v1144, %s1193
          %v1195 = vpop.permute.xlu0 %1194
          %s1197 = sor.u32 256, 104
          %1198 = vbcast.lane.b32.xlu0 %v1144, %s1197
          %v1199 = vpop.permute.xlu0 %1198
          %s1201 = sor.u32 256, 112
          %1202 = vbcast.lane.b32.xlu0 %v1144, %s1201
          %v1203 = vpop.permute.xlu0 %1202
          %s1205 = sor.u32 256, 120
          %1206 = vbcast.lane.b32.xlu0 %v1144, %s1205
          %v1207 = vpop.permute.xlu0 %1206
          %v1208 = vlaneseq
          %v1209 = vshrl.u32 %v1208, 7
          %v1210 = vsub.s32 3, %v1209
          %v1211 = vrot.slane %v1006, %v1210
          %1213 = vbcast.lane.b32.xlu0 %v1211, 256
          %v1214 = vpop.permute.xlu0 %1213
          %s1216 = sor.u32 256, 8
          %1217 = vbcast.lane.b32.xlu0 %v1211, %s1216
          %v1218 = vpop.permute.xlu0 %1217
          %s1220 = sor.u32 256, 16
          %1221 = vbcast.lane.b32.xlu0 %v1211, %s1220
          %v1222 = vpop.permute.xlu0 %1221
          %s1224 = sor.u32 256, 24
          %1225 = vbcast.lane.b32.xlu0 %v1211, %s1224
          %v1226 = vpop.permute.xlu0 %1225
          %s1228 = sor.u32 256, 32
          %1229 = vbcast.lane.b32.xlu0 %v1211, %s1228
          %v1230 = vpop.permute.xlu0 %1229
          %s1232 = sor.u32 256, 40
          %1233 = vbcast.lane.b32.xlu0 %v1211, %s1232
          %v1234 = vpop.permute.xlu0 %1233
          %s1236 = sor.u32 256, 48
          %1237 = vbcast.lane.b32.xlu0 %v1211, %s1236
          %v1238 = vpop.permute.xlu0 %1237
          %s1240 = sor.u32 256, 56
          %1241 = vbcast.lane.b32.xlu0 %v1211, %s1240
          %v1242 = vpop.permute.xlu0 %1241
          %s1244 = sor.u32 256, 64
          %1245 = vbcast.lane.b32.xlu0 %v1211, %s1244
          %v1246 = vpop.permute.xlu0 %1245
          %s1248 = sor.u32 256, 72
          %1249 = vbcast.lane.b32.xlu0 %v1211, %s1248
          %v1250 = vpop.permute.xlu0 %1249
          %s1252 = sor.u32 256, 80
          %1253 = vbcast.lane.b32.xlu0 %v1211, %s1252
          %v1254 = vpop.permute.xlu0 %1253
          %s1256 = sor.u32 256, 88
          %1257 = vbcast.lane.b32.xlu0 %v1211, %s1256
          %v1258 = vpop.permute.xlu0 %1257
          %s1260 = sor.u32 256, 96
          %1261 = vbcast.lane.b32.xlu0 %v1211, %s1260
          %v1262 = vpop.permute.xlu0 %1261
          %s1264 = sor.u32 256, 104
          %1265 = vbcast.lane.b32.xlu0 %v1211, %s1264
          %v1266 = vpop.permute.xlu0 %1265
          %s1268 = sor.u32 256, 112
          %1269 = vbcast.lane.b32.xlu0 %v1211, %s1268
          %v1270 = vpop.permute.xlu0 %1269
          %s1272 = sor.u32 256, 120
          %1273 = vbcast.lane.b32.xlu0 %v1211, %s1272
          %v1274 = vpop.permute.xlu0 %1273
          %v1275 = vlaneseq
          %v1276 = vshrl.u32 %v1275, 7
          %v1277 = vsub.s32 4, %v1276
          %v1278 = vrot.slane %v1006, %v1277
          %1280 = vbcast.lane.b32.xlu0 %v1278, 256
          %v1281 = vpop.permute.xlu0 %1280
          %s1283 = sor.u32 256, 8
          %1284 = vbcast.lane.b32.xlu0 %v1278, %s1283
          %v1285 = vpop.permute.xlu0 %1284
          %s1287 = sor.u32 256, 16
          %1288 = vbcast.lane.b32.xlu0 %v1278, %s1287
          %v1289 = vpop.permute.xlu0 %1288
          %s1291 = sor.u32 256, 24
          %1292 = vbcast.lane.b32.xlu0 %v1278, %s1291
          %v1293 = vpop.permute.xlu0 %1292
          %s1295 = sor.u32 256, 32
          %1296 = vbcast.lane.b32.xlu0 %v1278, %s1295
          %v1297 = vpop.permute.xlu0 %1296
          %s1299 = sor.u32 256, 40
          %1300 = vbcast.lane.b32.xlu0 %v1278, %s1299
          %v1301 = vpop.permute.xlu0 %1300
          %s1303 = sor.u32 256, 48
          %1304 = vbcast.lane.b32.xlu0 %v1278, %s1303
          %v1305 = vpop.permute.xlu0 %1304
          %s1307 = sor.u32 256, 56
          %1308 = vbcast.lane.b32.xlu0 %v1278, %s1307
          %v1309 = vpop.permute.xlu0 %1308
          %s1311 = sor.u32 256, 64
          %1312 = vbcast.lane.b32.xlu0 %v1278, %s1311
          %v1313 = vpop.permute.xlu0 %1312
          %s1315 = sor.u32 256, 72
          %1316 = vbcast.lane.b32.xlu0 %v1278, %s1315
          %v1317 = vpop.permute.xlu0 %1316
          %s1319 = sor.u32 256, 80
          %1320 = vbcast.lane.b32.xlu0 %v1278, %s1319
          %v1321 = vpop.permute.xlu0 %1320
          %s1323 = sor.u32 256, 88
          %1324 = vbcast.lane.b32.xlu0 %v1278, %s1323
          %v1325 = vpop.permute.xlu0 %1324
          %s1327 = sor.u32 256, 96
          %1328 = vbcast.lane.b32.xlu0 %v1278, %s1327
          %v1329 = vpop.permute.xlu0 %1328
          %s1331 = sor.u32 256, 104
          %1332 = vbcast.lane.b32.xlu0 %v1278, %s1331
          %v1333 = vpop.permute.xlu0 %1332
          %s1335 = sor.u32 256, 112
          %1336 = vbcast.lane.b32.xlu0 %v1278, %s1335
          %v1337 = vpop.permute.xlu0 %1336
          %s1339 = sor.u32 256, 120
          %1340 = vbcast.lane.b32.xlu0 %v1278, %s1339
          %v1341 = vpop.permute.xlu0 %1340
          %v1342 = vlaneseq
          %v1343 = vshrl.u32 %v1342, 7
          %v1344 = vsub.s32 5, %v1343
          %v1345 = vrot.slane %v1006, %v1344
          %1347 = vbcast.lane.b32.xlu0 %v1345, 256
          %v1348 = vpop.permute.xlu0 %1347
          %s1350 = sor.u32 256, 8
          %1351 = vbcast.lane.b32.xlu0 %v1345, %s1350
          %v1352 = vpop.permute.xlu0 %1351
          %s1354 = sor.u32 256, 16
          %1355 = vbcast.lane.b32.xlu0 %v1345, %s1354
          %v1356 = vpop.permute.xlu0 %1355
          %s1358 = sor.u32 256, 24
          %1359 = vbcast.lane.b32.xlu0 %v1345, %s1358
          %v1360 = vpop.permute.xlu0 %1359
          %s1362 = sor.u32 256, 32
          %1363 = vbcast.lane.b32.xlu0 %v1345, %s1362
          %v1364 = vpop.permute.xlu0 %1363
          %s1366 = sor.u32 256, 40
          %1367 = vbcast.lane.b32.xlu0 %v1345, %s1366
          %v1368 = vpop.permute.xlu0 %1367
          %s1370 = sor.u32 256, 48
          %1371 = vbcast.lane.b32.xlu0 %v1345, %s1370
          %v1372 = vpop.permute.xlu0 %1371
          %s1374 = sor.u32 256, 56
          %1375 = vbcast.lane.b32.xlu0 %v1345, %s1374
          %v1376 = vpop.permute.xlu0 %1375
          %s1378 = sor.u32 256, 64
          %1379 = vbcast.lane.b32.xlu0 %v1345, %s1378
          %v1380 = vpop.permute.xlu0 %1379
          %s1382 = sor.u32 256, 72
          %1383 = vbcast.lane.b32.xlu0 %v1345, %s1382
          %v1384 = vpop.permute.xlu0 %1383
          %s1386 = sor.u32 256, 80
          %1387 = vbcast.lane.b32.xlu0 %v1345, %s1386
          %v1388 = vpop.permute.xlu0 %1387
          %s1390 = sor.u32 256, 88
          %1391 = vbcast.lane.b32.xlu0 %v1345, %s1390
          %v1392 = vpop.permute.xlu0 %1391
          %s1394 = sor.u32 256, 96
          %1395 = vbcast.lane.b32.xlu0 %v1345, %s1394
          %v1396 = vpop.permute.xlu0 %1395
          %s1398 = sor.u32 256, 104
          %1399 = vbcast.lane.b32.xlu0 %v1345, %s1398
          %v1400 = vpop.permute.xlu0 %1399
          %s1402 = sor.u32 256, 112
          %1403 = vbcast.lane.b32.xlu0 %v1345, %s1402
          %v1404 = vpop.permute.xlu0 %1403
          %s1406 = sor.u32 256, 120
          %1407 = vbcast.lane.b32.xlu0 %v1345, %s1406
          %v1408 = vpop.permute.xlu0 %1407
          %v1409 = vlaneseq
          %v1410 = vshrl.u32 %v1409, 7
          %v1411 = vsub.s32 6, %v1410
          %v1412 = vrot.slane %v1006, %v1411
          %1414 = vbcast.lane.b32.xlu0 %v1412, 256
          %v1415 = vpop.permute.xlu0 %1414
          %s1417 = sor.u32 256, 8
          %1418 = vbcast.lane.b32.xlu0 %v1412, %s1417
          %v1419 = vpop.permute.xlu0 %1418
          %s1421 = sor.u32 256, 16
          %1422 = vbcast.lane.b32.xlu0 %v1412, %s1421
          %v1423 = vpop.permute.xlu0 %1422
          %s1425 = sor.u32 256, 24
          %1426 = vbcast.lane.b32.xlu0 %v1412, %s1425
          %v1427 = vpop.permute.xlu0 %1426
          %s1429 = sor.u32 256, 32
          %1430 = vbcast.lane.b32.xlu0 %v1412, %s1429
          %v1431 = vpop.permute.xlu0 %1430
          %s1433 = sor.u32 256, 40
          %1434 = vbcast.lane.b32.xlu0 %v1412, %s1433
          %v1435 = vpop.permute.xlu0 %1434
          %s1437 = sor.u32 256, 48
          %1438 = vbcast.lane.b32.xlu0 %v1412, %s1437
          %v1439 = vpop.permute.xlu0 %1438
          %s1441 = sor.u32 256, 56
          %1442 = vbcast.lane.b32.xlu0 %v1412, %s1441
          %v1443 = vpop.permute.xlu0 %1442
          %s1445 = sor.u32 256, 64
          %1446 = vbcast.lane.b32.xlu0 %v1412, %s1445
          %v1447 = vpop.permute.xlu0 %1446
          %s1449 = sor.u32 256, 72
          %1450 = vbcast.lane.b32.xlu0 %v1412, %s1449
          %v1451 = vpop.permute.xlu0 %1450
          %s1453 = sor.u32 256, 80
          %1454 = vbcast.lane.b32.xlu0 %v1412, %s1453
          %v1455 = vpop.permute.xlu0 %1454
          %s1457 = sor.u32 256, 88
          %1458 = vbcast.lane.b32.xlu0 %v1412, %s1457
          %v1459 = vpop.permute.xlu0 %1458
          %s1461 = sor.u32 256, 96
          %1462 = vbcast.lane.b32.xlu0 %v1412, %s1461
          %v1463 = vpop.permute.xlu0 %1462
          %s1465 = sor.u32 256, 104
          %1466 = vbcast.lane.b32.xlu0 %v1412, %s1465
          %v1467 = vpop.permute.xlu0 %1466
          %s1469 = sor.u32 256, 112
          %1470 = vbcast.lane.b32.xlu0 %v1412, %s1469
          %v1471 = vpop.permute.xlu0 %1470
          %s1473 = sor.u32 256, 120
          %1474 = vbcast.lane.b32.xlu0 %v1412, %s1473
          %v1475 = vpop.permute.xlu0 %1474
          %v1476 = vlaneseq
          %v1477 = vshrl.u32 %v1476, 7
          %v1478 = vsub.s32 7, %v1477
          %v1479 = vrot.slane %v1006, %v1478
          %1481 = vbcast.lane.b32.xlu0 %v1479, 256
          %v1482 = vpop.permute.xlu0 %1481
          %s1484 = sor.u32 256, 8
          %1485 = vbcast.lane.b32.xlu0 %v1479, %s1484
          %v1486 = vpop.permute.xlu0 %1485
          %s1488 = sor.u32 256, 16
          %1489 = vbcast.lane.b32.xlu0 %v1479, %s1488
          %v1490 = vpop.permute.xlu0 %1489
          %s1492 = sor.u32 256, 24
          %1493 = vbcast.lane.b32.xlu0 %v1479, %s1492
          %v1494 = vpop.permute.xlu0 %1493
          %s1496 = sor.u32 256, 32
          %1497 = vbcast.lane.b32.xlu0 %v1479, %s1496
          %v1498 = vpop.permute.xlu0 %1497
          %s1500 = sor.u32 256, 40
          %1501 = vbcast.lane.b32.xlu0 %v1479, %s1500
          %v1502 = vpop.permute.xlu0 %1501
          %s1504 = sor.u32 256, 48
          %1505 = vbcast.lane.b32.xlu0 %v1479, %s1504
          %v1506 = vpop.permute.xlu0 %1505
          %s1508 = sor.u32 256, 56
          %1509 = vbcast.lane.b32.xlu0 %v1479, %s1508
          %v1510 = vpop.permute.xlu0 %1509
          %s1512 = sor.u32 256, 64
          %1513 = vbcast.lane.b32.xlu0 %v1479, %s1512
          %v1514 = vpop.permute.xlu0 %1513
          %s1516 = sor.u32 256, 72
          %1517 = vbcast.lane.b32.xlu0 %v1479, %s1516
          %v1518 = vpop.permute.xlu0 %1517
          %s1520 = sor.u32 256, 80
          %1521 = vbcast.lane.b32.xlu0 %v1479, %s1520
          %v1522 = vpop.permute.xlu0 %1521
          %s1524 = sor.u32 256, 88
          %1525 = vbcast.lane.b32.xlu0 %v1479, %s1524
          %v1526 = vpop.permute.xlu0 %1525
          %s1528 = sor.u32 256, 96
          %1529 = vbcast.lane.b32.xlu0 %v1479, %s1528
          %v1530 = vpop.permute.xlu0 %1529
          %s1532 = sor.u32 256, 104
          %1533 = vbcast.lane.b32.xlu0 %v1479, %s1532
          %v1534 = vpop.permute.xlu0 %1533
          %s1536 = sor.u32 256, 112
          %1537 = vbcast.lane.b32.xlu0 %v1479, %s1536
          %v1538 = vpop.permute.xlu0 %1537
          %s1540 = sor.u32 256, 120
          %1541 = vbcast.lane.b32.xlu0 %v1479, %s1540
          %v1542 = vpop.permute.xlu0 %1541
          %v1543 = vadd.f32 %v794, %v1013
          %v1544 = vadd.f32 %v795, %v1017
          %v1545 = vadd.f32 %v796, %v1021
          %v1546 = vadd.f32 %v797, %v1025
          %v1547 = vadd.f32 %v798, %v1029
          %v1548 = vadd.f32 %v799, %v1033
          %v1549 = vadd.f32 %v800, %v1037
          %v1550 = vadd.f32 %v801, %v1041
          %v1551 = vadd.f32 %v802, %v1045
          %v1552 = vadd.f32 %v803, %v1049
          %v1553 = vadd.f32 %v804, %v1053
          %v1554 = vadd.f32 %v805, %v1057
          %v1555 = vadd.f32 %v806, %v1061
          %v1556 = vadd.f32 %v807, %v1065
          %v1557 = vadd.f32 %v808, %v1069
          %v1558 = vadd.f32 %v809, %v1073
          %v1559 = vadd.f32 %v794, %v1080
          %v1560 = vadd.f32 %v795, %v1084
          %v1561 = vadd.f32 %v796, %v1088
          %v1562 = vadd.f32 %v797, %v1092
          %v1563 = vadd.f32 %v798, %v1096
          %v1564 = vadd.f32 %v799, %v1100
          %v1565 = vadd.f32 %v800, %v1104
          %v1566 = vadd.f32 %v801, %v1108
          %v1567 = vadd.f32 %v802, %v1112
          %v1568 = vadd.f32 %v803, %v1116
          %v1569 = vadd.f32 %v804, %v1120
          %v1570 = vadd.f32 %v805, %v1124
          %v1571 = vadd.f32 %v806, %v1128
          %v1572 = vadd.f32 %v807, %v1132
          %v1573 = vadd.f32 %v808, %v1136
          %v1574 = vadd.f32 %v809, %v1140
          %v1575 = vadd.f32 %v794, %v1147
          %v1576 = vadd.f32 %v795, %v1151
          %v1577 = vadd.f32 %v796, %v1155
          %v1578 = vadd.f32 %v797, %v1159
          %v1579 = vadd.f32 %v798, %v1163
          %v1580 = vadd.f32 %v799, %v1167
          %v1581 = vadd.f32 %v800, %v1171
          %v1582 = vadd.f32 %v801, %v1175
          %v1583 = vadd.f32 %v802, %v1179
          %v1584 = vadd.f32 %v803, %v1183
          %v1585 = vadd.f32 %v804, %v1187
          %v1586 = vadd.f32 %v805, %v1191
          %v1587 = vadd.f32 %v806, %v1195
          %v1588 = vadd.f32 %v807, %v1199
          %v1589 = vadd.f32 %v808, %v1203
          %v1590 = vadd.f32 %v809, %v1207
          %v1591 = vadd.f32 %v794, %v1214
          %v1592 = vadd.f32 %v795, %v1218
          %v1593 = vadd.f32 %v796, %v1222
          %v1594 = vadd.f32 %v797, %v1226
          %v1595 = vadd.f32 %v798, %v1230
          %v1596 = vadd.f32 %v799, %v1234
          %v1597 = vadd.f32 %v800, %v1238
          %v1598 = vadd.f32 %v801, %v1242
          %v1599 = vadd.f32 %v802, %v1246
          %v1600 = vadd.f32 %v803, %v1250
          %v1601 = vadd.f32 %v804, %v1254
          %v1602 = vadd.f32 %v805, %v1258
          %v1603 = vadd.f32 %v806, %v1262
          %v1604 = vadd.f32 %v807, %v1266
          %v1605 = vadd.f32 %v808, %v1270
          %v1606 = vadd.f32 %v809, %v1274
          %v1607 = vadd.f32 %v794, %v1281
          %v1608 = vadd.f32 %v795, %v1285
          %v1609 = vadd.f32 %v796, %v1289
          %v1610 = vadd.f32 %v797, %v1293
          %v1611 = vadd.f32 %v798, %v1297
          %v1612 = vadd.f32 %v799, %v1301
          %v1613 = vadd.f32 %v800, %v1305
          %v1614 = vadd.f32 %v801, %v1309
          %v1615 = vadd.f32 %v802, %v1313
          %v1616 = vadd.f32 %v803, %v1317
          %v1617 = vadd.f32 %v804, %v1321
          %v1618 = vadd.f32 %v805, %v1325
          %v1619 = vadd.f32 %v806, %v1329
          %v1620 = vadd.f32 %v807, %v1333
          %v1621 = vadd.f32 %v808, %v1337
          %v1622 = vadd.f32 %v809, %v1341
          %v1623 = vadd.f32 %v794, %v1348
          %v1624 = vadd.f32 %v795, %v1352
          %v1625 = vadd.f32 %v796, %v1356
          %v1626 = vadd.f32 %v797, %v1360
          %v1627 = vadd.f32 %v798, %v1364
          %v1628 = vadd.f32 %v799, %v1368
          %v1629 = vadd.f32 %v800, %v1372
          %v1630 = vadd.f32 %v801, %v1376
          %v1631 = vadd.f32 %v802, %v1380
          %v1632 = vadd.f32 %v803, %v1384
          %v1633 = vadd.f32 %v804, %v1388
          %v1634 = vadd.f32 %v805, %v1392
          %v1635 = vadd.f32 %v806, %v1396
          %v1636 = vadd.f32 %v807, %v1400
          %v1637 = vadd.f32 %v808, %v1404
          %v1638 = vadd.f32 %v809, %v1408
          %v1639 = vadd.f32 %v794, %v1415
          %v1640 = vadd.f32 %v795, %v1419
          %v1641 = vadd.f32 %v796, %v1423
          %v1642 = vadd.f32 %v797, %v1427
          %v1643 = vadd.f32 %v798, %v1431
          %v1644 = vadd.f32 %v799, %v1435
          %v1645 = vadd.f32 %v800, %v1439
          %v1646 = vadd.f32 %v801, %v1443
          %v1647 = vadd.f32 %v802, %v1447
          %v1648 = vadd.f32 %v803, %v1451
          %v1649 = vadd.f32 %v804, %v1455
          %v1650 = vadd.f32 %v805, %v1459
          %v1651 = vadd.f32 %v806, %v1463
          %v1652 = vadd.f32 %v807, %v1467
          %v1653 = vadd.f32 %v808, %v1471
          %v1654 = vadd.f32 %v809, %v1475
          %v1655 = vadd.f32 %v794, %v1482
          %v1656 = vadd.f32 %v795, %v1486
          %v1657 = vadd.f32 %v796, %v1490
          %v1658 = vadd.f32 %v797, %v1494
          %v1659 = vadd.f32 %v798, %v1498
          %v1660 = vadd.f32 %v799, %v1502
          %v1661 = vadd.f32 %v800, %v1506
          %v1662 = vadd.f32 %v801, %v1510
          %v1663 = vadd.f32 %v802, %v1514
          %v1664 = vadd.f32 %v803, %v1518
          %v1665 = vadd.f32 %v804, %v1522
          %v1666 = vadd.f32 %v805, %v1526
          %v1667 = vadd.f32 %v806, %v1530
          %v1668 = vadd.f32 %v807, %v1534
          %v1669 = vadd.f32 %v808, %v1538
          %v1670 = vadd.f32 %v809, %v1542
          %v1671 = vmax.f32 %v1543, %v1544
          %v1672 = vmax.f32 %v1671, %v1545
          %v1673 = vmax.f32 %v1672, %v1546
          %v1674 = vmax.f32 %v1673, %v1547
          %v1675 = vmax.f32 %v1674, %v1548
          %v1676 = vmax.f32 %v1675, %v1549
          %v1677 = vmax.f32 %v1676, %v1550
          %v1678 = vmax.f32 %v1677, %v1551
          %v1679 = vmax.f32 %v1678, %v1552
          %v1680 = vmax.f32 %v1679, %v1553
          %v1681 = vmax.f32 %v1680, %v1554
          %v1682 = vmax.f32 %v1681, %v1555
          %v1683 = vmax.f32 %v1682, %v1556
          %v1684 = vmax.f32 %v1683, %v1557
          %v1685 = vmax.f32 %v1684, %v1558
          %v1686 = vrot.slane %v1685, 4
          %v1687 = vmax.f32 %v1685, %v1686
          %v1688 = vrot.slane %v1687, 2
          %v1689 = vmax.f32 %v1687, %v1688
          %v1690 = vrot.slane %v1689, 1
          %v1691 = vmax.f32 %v1689, %v1690
          %v1692 = vmax.f32 %v1559, %v1560
          %v1693 = vmax.f32 %v1692, %v1561
          %v1694 = vmax.f32 %v1693, %v1562
          %v1695 = vmax.f32 %v1694, %v1563
          %v1696 = vmax.f32 %v1695, %v1564
          %v1697 = vmax.f32 %v1696, %v1565
          %v1698 = vmax.f32 %v1697, %v1566
          %v1699 = vmax.f32 %v1698, %v1567
          %v1700 = vmax.f32 %v1699, %v1568
          %v1701 = vmax.f32 %v1700, %v1569
          %v1702 = vmax.f32 %v1701, %v1570
          %v1703 = vmax.f32 %v1702, %v1571
          %v1704 = vmax.f32 %v1703, %v1572
          %v1705 = vmax.f32 %v1704, %v1573
          %v1706 = vmax.f32 %v1705, %v1574
          %v1707 = vrot.slane %v1706, 4
          %v1708 = vmax.f32 %v1706, %v1707
          %v1709 = vrot.slane %v1708, 2
          %v1710 = vmax.f32 %v1708, %v1709
          %v1711 = vrot.slane %v1710, 1
          %v1712 = vmax.f32 %v1710, %v1711
          %v1713 = vmax.f32 %v1575, %v1576
          %v1714 = vmax.f32 %v1713, %v1577
          %v1715 = vmax.f32 %v1714, %v1578
          %v1716 = vmax.f32 %v1715, %v1579
          %v1717 = vmax.f32 %v1716, %v1580
          %v1718 = vmax.f32 %v1717, %v1581
          %v1719 = vmax.f32 %v1718, %v1582
          %v1720 = vmax.f32 %v1719, %v1583
          %v1721 = vmax.f32 %v1720, %v1584
          %v1722 = vmax.f32 %v1721, %v1585
          %v1723 = vmax.f32 %v1722, %v1586
          %v1724 = vmax.f32 %v1723, %v1587
          %v1725 = vmax.f32 %v1724, %v1588
          %v1726 = vmax.f32 %v1725, %v1589
          %v1727 = vmax.f32 %v1726, %v1590
          %v1728 = vrot.slane %v1727, 4
          %v1729 = vmax.f32 %v1727, %v1728
          %v1730 = vrot.slane %v1729, 2
          %v1731 = vmax.f32 %v1729, %v1730
          %v1732 = vrot.slane %v1731, 1
          %v1733 = vmax.f32 %v1731, %v1732
          %v1734 = vmax.f32 %v1591, %v1592
          %v1735 = vmax.f32 %v1734, %v1593
          %v1736 = vmax.f32 %v1735, %v1594
          %v1737 = vmax.f32 %v1736, %v1595
          %v1738 = vmax.f32 %v1737, %v1596
          %v1739 = vmax.f32 %v1738, %v1597
          %v1740 = vmax.f32 %v1739, %v1598
          %v1741 = vmax.f32 %v1740, %v1599
          %v1742 = vmax.f32 %v1741, %v1600
          %v1743 = vmax.f32 %v1742, %v1601
          %v1744 = vmax.f32 %v1743, %v1602
          %v1745 = vmax.f32 %v1744, %v1603
          %v1746 = vmax.f32 %v1745, %v1604
          %v1747 = vmax.f32 %v1746, %v1605
          %v1748 = vmax.f32 %v1747, %v1606
          %v1749 = vrot.slane %v1748, 4
          %v1750 = vmax.f32 %v1748, %v1749
          %v1751 = vrot.slane %v1750, 2
          %v1752 = vmax.f32 %v1750, %v1751
          %v1753 = vrot.slane %v1752, 1
          %v1754 = vmax.f32 %v1752, %v1753
          %v1755 = vmax.f32 %v1607, %v1608
          %v1756 = vmax.f32 %v1755, %v1609
          %v1757 = vmax.f32 %v1756, %v1610
          %v1758 = vmax.f32 %v1757, %v1611
          %v1759 = vmax.f32 %v1758, %v1612
          %v1760 = vmax.f32 %v1759, %v1613
          %v1761 = vmax.f32 %v1760, %v1614
          %v1762 = vmax.f32 %v1761, %v1615
          %v1763 = vmax.f32 %v1762, %v1616
          %v1764 = vmax.f32 %v1763, %v1617
          %v1765 = vmax.f32 %v1764, %v1618
          %v1766 = vmax.f32 %v1765, %v1619
          %v1767 = vmax.f32 %v1766, %v1620
          %v1768 = vmax.f32 %v1767, %v1621
          %v1769 = vmax.f32 %v1768, %v1622
          %v1770 = vrot.slane %v1769, 4
          %v1771 = vmax.f32 %v1769, %v1770
          %v1772 = vrot.slane %v1771, 2
          %v1773 = vmax.f32 %v1771, %v1772
          %v1774 = vrot.slane %v1773, 1
          %v1775 = vmax.f32 %v1773, %v1774
          %v1776 = vmax.f32 %v1623, %v1624
          %v1777 = vmax.f32 %v1776, %v1625
          %v1778 = vmax.f32 %v1777, %v1626
          %v1779 = vmax.f32 %v1778, %v1627
          %v1780 = vmax.f32 %v1779, %v1628
          %v1781 = vmax.f32 %v1780, %v1629
          %v1782 = vmax.f32 %v1781, %v1630
          %v1783 = vmax.f32 %v1782, %v1631
          %v1784 = vmax.f32 %v1783, %v1632
          %v1785 = vmax.f32 %v1784, %v1633
          %v1786 = vmax.f32 %v1785, %v1634
          %v1787 = vmax.f32 %v1786, %v1635
          %v1788 = vmax.f32 %v1787, %v1636
          %v1789 = vmax.f32 %v1788, %v1637
          %v1790 = vmax.f32 %v1789, %v1638
          %v1791 = vrot.slane %v1790, 4
          %v1792 = vmax.f32 %v1790, %v1791
          %v1793 = vrot.slane %v1792, 2
          %v1794 = vmax.f32 %v1792, %v1793
          %v1795 = vrot.slane %v1794, 1
          %v1796 = vmax.f32 %v1794, %v1795
          %v1797 = vmax.f32 %v1639, %v1640
          %v1798 = vmax.f32 %v1797, %v1641
          %v1799 = vmax.f32 %v1798, %v1642
          %v1800 = vmax.f32 %v1799, %v1643
          %v1801 = vmax.f32 %v1800, %v1644
          %v1802 = vmax.f32 %v1801, %v1645
          %v1803 = vmax.f32 %v1802, %v1646
          %v1804 = vmax.f32 %v1803, %v1647
          %v1805 = vmax.f32 %v1804, %v1648
          %v1806 = vmax.f32 %v1805, %v1649
          %v1807 = vmax.f32 %v1806, %v1650
          %v1808 = vmax.f32 %v1807, %v1651
          %v1809 = vmax.f32 %v1808, %v1652
          %v1810 = vmax.f32 %v1809, %v1653
          %v1811 = vmax.f32 %v1810, %v1654
          %v1812 = vrot.slane %v1811, 4
          %v1813 = vmax.f32 %v1811, %v1812
          %v1814 = vrot.slane %v1813, 2
          %v1815 = vmax.f32 %v1813, %v1814
          %v1816 = vrot.slane %v1815, 1
          %v1817 = vmax.f32 %v1815, %v1816
          %v1818 = vmax.f32 %v1655, %v1656
          %v1819 = vmax.f32 %v1818, %v1657
          %v1820 = vmax.f32 %v1819, %v1658
          %v1821 = vmax.f32 %v1820, %v1659
          %v1822 = vmax.f32 %v1821, %v1660
          %v1823 = vmax.f32 %v1822, %v1661
          %v1824 = vmax.f32 %v1823, %v1662
          %v1825 = vmax.f32 %v1824, %v1663
          %v1826 = vmax.f32 %v1825, %v1664
          %v1827 = vmax.f32 %v1826, %v1665
          %v1828 = vmax.f32 %v1827, %v1666
          %v1829 = vmax.f32 %v1828, %v1667
          %v1830 = vmax.f32 %v1829, %v1668
          %v1831 = vmax.f32 %v1830, %v1669
          %v1832 = vmax.f32 %v1831, %v1670
          %v1833 = vrot.slane %v1832, 4
          %v1834 = vmax.f32 %v1832, %v1833
          %v1835 = vrot.slane %v1834, 2
          %v1836 = vmax.f32 %v1834, %v1835
          %v1837 = vrot.slane %v1836, 1
          %v1838 = vmax.f32 %v1836, %v1837
          %v1839 = vld [vmem:[#allocation4] sm:$0xff]
          %vm1848 = vcmask 1041409
          %v1849 = vsel %vm1848, %v1712, %v1691
          %vm1850 = vcmask 1042434
          %v1851 = vsel %vm1850, %v1733, %v1849
          %vm1852 = vcmask 1043459
          %v1853 = vsel %vm1852, %v1754, %v1851
          %vm1854 = vcmask 1044484
          %v1855 = vsel %vm1854, %v1775, %v1853
          %vm1856 = vcmask 1045509
          %v1857 = vsel %vm1856, %v1796, %v1855
          %vm1858 = vcmask 1046534
          %v1859 = vsel %vm1858, %v1817, %v1857
          %vm1860 = vcmask 1047559
          %v1861 = vsel %vm1860, %v1838, %v1859
          %v1863 = vmax.f32 %v1839, %v1861
          %1864 = vst [vmem:[#allocation4] sm:$0xff] %v1863
        $region88: #{gcn_forward.1} parent=79 // pred_fallthru
          _
      $region80: #{gcn_forward.1} parent=67 // pred_fallthru
        _
      %p1865 = scmp.eq.s32.totalorder %s609, 1
      // Predicated region
      $region89: #{gcn_forward.1} parent=67 // pred_check
        %p1866 = pneg %p1865
      $region90: #{gcn_forward.1} parent=67 // pred_check_branch
        %1868 = sbr.rel (%p1866) target = $region92
      $region91: #{gcn_forward.1} parent=67 // pred_region
        %s1869 = sshra.s32 %s458, 3
        %s1870 = sand.u32 %s458, 7
        %s1871 = smul.addr %s1869, 4
        %s1872 = scalar_lea.vmem %s0, %s1871
        %v1873 = vld [vmem:[%s1872] sm:$0xf]
        %v1874 = vld [vmem:[%s1872 + $0x4] sm:$0xf]
        %v1875 = vld [vmem:[%s1872 + $0x8] sm:$0xf]
        %v1876 = vld [vmem:[%s1872 + $0xc] sm:$0xf]
        %v1877 = vld [vmem:[%s1872 + $0x10] sm:$0xf]
        %v1878 = vld [vmem:[%s1872 + $0x14] sm:$0xf]
        %v1879 = vld [vmem:[%s1872 + $0x18] sm:$0xf]
        %v1880 = vld [vmem:[%s1872 + $0x1c] sm:$0xf]
        %v1881 = vld [vmem:[%s1872 + $0x20] sm:$0xf]
        %v1882 = vld [vmem:[%s1872 + $0x24] sm:$0xf]
        %v1883 = vld [vmem:[%s1872 + $0x28] sm:$0xf]
        %v1884 = vld [vmem:[%s1872 + $0x2c] sm:$0xf]
        %v1885 = vld [vmem:[%s1872 + $0x30] sm:$0xf]
        %v1886 = vld [vmem:[%s1872 + $0x34] sm:$0xf]
        %v1887 = vld [vmem:[%s1872 + $0x38] sm:$0xf]
        %v1888 = vld [vmem:[%s1872 + $0x3c] sm:$0xf]
        %v1889 = vld [vmem:[#allocation3] sm:$0xff]
        %v1890 = vld [vmem:[#allocation3 + $0x8] sm:$0xff]
        %v1891 = vld [vmem:[#allocation3 + $0x10] sm:$0xff]
        %v1892 = vld [vmem:[#allocation3 + $0x18] sm:$0xff]
        %v1893 = vld [vmem:[#allocation3 + $0x20] sm:$0xff]
        %v1894 = vld [vmem:[#allocation3 + $0x28] sm:$0xff]
        %v1895 = vld [vmem:[#allocation3 + $0x30] sm:$0xff]
        %v1896 = vld [vmem:[#allocation3 + $0x38] sm:$0xff]
        %v1897 = vld [vmem:[%s447] sm:$0x1]
        %v1899 = vlaneseq
        %v1900 = vshrl.u32 %v1899, 7
        %v1901 = vsub.s32 0, %v1900
        %v1902 = vrot.slane %v1897, %v1901
        %v1920 = vunpack.c.l.b16 %v1873
        %v1921 = vunpack.c.l.b16 %v1874
        %v1922 = vunpack.c.l.b16 %v1875
        %v1923 = vunpack.c.l.b16 %v1876
        %v1924 = vunpack.c.l.b16 %v1877
        %v1925 = vunpack.c.l.b16 %v1878
        %v1926 = vunpack.c.l.b16 %v1879
        %v1927 = vunpack.c.l.b16 %v1880
        %v1928 = vunpack.c.l.b16 %v1881
        %v1929 = vunpack.c.l.b16 %v1882
        %v1930 = vunpack.c.l.b16 %v1883
        %v1931 = vunpack.c.l.b16 %v1884
        %v1932 = vunpack.c.l.b16 %v1885
        %v1933 = vunpack.c.l.b16 %v1886
        %v1934 = vunpack.c.l.b16 %v1887
        %v1935 = vunpack.c.l.b16 %v1888
        %v1936 = vpack.c.b16 %v1921, %v1920
        %v1937 = vpack.c.b16 %v1923, %v1922
        %v1938 = vpack.c.b16 %v1925, %v1924
        %v1939 = vpack.c.b16 %v1927, %v1926
        %v1940 = vpack.c.b16 %v1929, %v1928
        %v1941 = vpack.c.b16 %v1931, %v1930
        %v1942 = vpack.c.b16 %v1933, %v1932
        %v1943 = vpack.c.b16 %v1935, %v1934
        %1952 = vmatprep.subr.bf16.mxu0 0
        %1953 = vmatpush1.bf16.msra.mxu0 %v1889
        %1954 = vmatprep.subr.bf16.mxu0 0
        %1955 = vmatpush1.bf16.msra.mxu0 %v1890
        %1956 = vmatprep.subr.bf16.mxu0 0
        %1957 = vmatpush1.bf16.msra.mxu0 %v1891
        %1958 = vmatprep.subr.bf16.mxu0 0
        %1959 = vmatpush1.bf16.msra.mxu0 %v1892
        %1960 = vmatprep.subr.bf16.mxu0 0
        %1961 = vmatpush1.bf16.msra.mxu0 %v1893
        %1962 = vmatprep.subr.bf16.mxu0 0
        %1963 = vmatpush1.bf16.msra.mxu0 %v1894
        %1964 = vmatprep.subr.bf16.mxu0 0
        %1965 = vmatpush1.bf16.msra.mxu0 %v1895
        %1966 = vmatprep.subr.bf16.mxu0 0
        %1967 = vmatpush1.bf16.msra.mxu0 %v1896
        %1968 = vmatprep.subr.bf16.mxu0 0
        %1969 = vmatpush1.bf16.msra.mxu0 0
        %1970 = vmatprep.subr.bf16.mxu0 0
        %1971 = vmatpush1.bf16.msra.mxu0 0
        %1972 = vmatprep.subr.bf16.mxu0 0
        %1973 = vmatpush1.bf16.msra.mxu0 0
        %1974 = vmatprep.subr.bf16.mxu0 0
        %1975 = vmatpush1.bf16.msra.mxu0 0
        %1976 = vmatprep.subr.bf16.mxu0 0
        %1977 = vmatpush1.bf16.msra.mxu0 0
        %1978 = vmatprep.subr.bf16.mxu0 0
        %1979 = vmatpush1.bf16.msra.mxu0 0
        %1980 = vmatprep.subr.bf16.mxu0 0
        %1981 = vmatpush1.bf16.msra.mxu0 0
        %1982 = vmatprep.subr.bf16.mxu0 0
        %1983 = vmatpush1.bf16.msra.mxu0 0
        %1984 = vmatprep.mubr.bf16.mxu0 0
        %1985 = vmatmul.mubr.bf16.gmra.mrb[0].mxu0 %v1936
        %v1986 = vpop.f32.mrb[0].mxu0
        %v1987 = vadd.f32 %v1902, %v1986
        %v1988 = vpop.f32.mrb[0].mxu0
        %v1989 = vpop.f32.mrb[0].mxu0
        %v1990 = vadd.f32 %v1902, %v1989
        %v1991 = vpop.f32.mrb[0].mxu0
        %1992 = vmatprep.mubr.bf16.mxu0 0
        %1993 = vmatmul.mubr.bf16.gmra.mrb[0].mxu0 %v1937
        %v1994 = vpop.f32.mrb[0].mxu0
        %v1995 = vadd.f32 %v1902, %v1994
        %v1996 = vpop.f32.mrb[0].mxu0
        %v1997 = vpop.f32.mrb[0].mxu0
        %v1998 = vadd.f32 %v1902, %v1997
        %v1999 = vpop.f32.mrb[0].mxu0
        %2000 = vmatprep.mubr.bf16.mxu0 0
        %2001 = vmatmul.mubr.bf16.gmra.mrb[0].mxu0 %v1938
        %v2002 = vpop.f32.mrb[0].mxu0
        %v2003 = vadd.f32 %v1902, %v2002
        %v2004 = vpop.f32.mrb[0].mxu0
        %v2005 = vpop.f32.mrb[0].mxu0
        %v2006 = vadd.f32 %v1902, %v2005
        %v2007 = vpop.f32.mrb[0].mxu0
        %2008 = vmatprep.mubr.bf16.mxu0 0
        %2009 = vmatmul.mubr.bf16.gmra.mrb[0].mxu0 %v1939
        %v2010 = vpop.f32.mrb[0].mxu0
        %v2011 = vadd.f32 %v1902, %v2010
        %v2012 = vpop.f32.mrb[0].mxu0
        %v2013 = vpop.f32.mrb[0].mxu0
        %v2014 = vadd.f32 %v1902, %v2013
        %v2015 = vpop.f32.mrb[0].mxu0
        %2016 = vmatprep.mubr.bf16.mxu0 0
        %2017 = vmatmul.mubr.bf16.gmra.mrb[0].mxu0 %v1940
        %v2018 = vpop.f32.mrb[0].mxu0
        %v2019 = vadd.f32 %v1902, %v2018
        %v2020 = vpop.f32.mrb[0].mxu0
        %v2021 = vpop.f32.mrb[0].mxu0
        %v2022 = vadd.f32 %v1902, %v2021
        %v2023 = vpop.f32.mrb[0].mxu0
        %2024 = vmatprep.mubr.bf16.mxu0 0
        %2025 = vmatmul.mubr.bf16.gmra.mrb[0].mxu0 %v1941
        %v2026 = vpop.f32.mrb[0].mxu0
        %v2027 = vadd.f32 %v1902, %v2026
        %v2028 = vpop.f32.mrb[0].mxu0
        %v2029 = vpop.f32.mrb[0].mxu0
        %v2030 = vadd.f32 %v1902, %v2029
        %v2031 = vpop.f32.mrb[0].mxu0
        %2032 = vmatprep.mubr.bf16.mxu0 0
        %2033 = vmatmul.mubr.bf16.gmra.mrb[0].mxu0 %v1942
        %v2034 = vpop.f32.mrb[0].mxu0
        %v2035 = vadd.f32 %v1902, %v2034
        %v2036 = vpop.f32.mrb[0].mxu0
        %v2037 = vpop.f32.mrb[0].mxu0
        %v2038 = vadd.f32 %v1902, %v2037
        %v2039 = vpop.f32.mrb[0].mxu0
        %2040 = vmatprep.mubr.bf16.mxu0 0
        %2041 = vmatmul.mubr.bf16.gmra.mrb[0].mxu0 %v1943
        %v2042 = vpop.f32.mrb[0].mxu0
        %v2043 = vadd.f32 %v1902, %v2042
        %v2044 = vpop.f32.mrb[0].mxu0
        %v2045 = vpop.f32.mrb[0].mxu0
        %v2046 = vadd.f32 %v1902, %v2045
        %v2047 = vpop.f32.mrb[0].mxu0
        %2048 = vdwg.mxu0
        %v2049 = vmax.f32 %v1987, 0.0
        %v2050 = vmax.f32 %v1990, 0.0
        %v2051 = vmax.f32 %v1995, 0.0
        %v2052 = vmax.f32 %v1998, 0.0
        %v2053 = vmax.f32 %v2003, 0.0
        %v2054 = vmax.f32 %v2006, 0.0
        %v2055 = vmax.f32 %v2011, 0.0
        %v2056 = vmax.f32 %v2014, 0.0
        %v2057 = vmax.f32 %v2019, 0.0
        %v2058 = vmax.f32 %v2022, 0.0
        %v2059 = vmax.f32 %v2027, 0.0
        %v2060 = vmax.f32 %v2030, 0.0
        %v2061 = vmax.f32 %v2035, 0.0
        %v2062 = vmax.f32 %v2038, 0.0
        %v2063 = vmax.f32 %v2043, 0.0
        %v2064 = vmax.f32 %v2046, 0.0
        %p2065 = scmp.ne.s32.totalorder %s27, 4
        // Predicated region
        $region93: #{gcn_forward.1} parent=91 // pred_check
          %p2066 = pneg %p2065
        $region94: #{gcn_forward.1} parent=91 // pred_check_branch
          %2068 = sbr.rel (%p2066) target = $region96
        $region95: #{gcn_forward.1} parent=91 // pred_region
          %v2069 = vpack.c.bf16 %v2050, %v2049
          %v2070 = vpack.c.bf16 %v2052, %v2051
          %v2071 = vpack.c.bf16 %v2054, %v2053
          %v2072 = vpack.c.bf16 %v2056, %v2055
          %v2073 = vpack.c.bf16 %v2058, %v2057
          %v2074 = vpack.c.bf16 %v2060, %v2059
          %v2075 = vpack.c.bf16 %v2062, %v2061
          %v2076 = vpack.c.bf16 %v2064, %v2063
          %v2077 = vld [vmem:[%s444] sm:$0xf]
          %v2078 = vld [vmem:[%s444 + $0x4] sm:$0xf]
          %v2079 = vld [vmem:[%s444 + $0x8] sm:$0xf]
          %v2080 = vld [vmem:[%s444 + $0xc] sm:$0xf]
          %v2081 = vld [vmem:[%s444 + $0x10] sm:$0xf]
          %v2082 = vld [vmem:[%s444 + $0x14] sm:$0xf]
          %v2083 = vld [vmem:[%s444 + $0x18] sm:$0xf]
          %v2084 = vld [vmem:[%s444 + $0x1c] sm:$0xf]
          %v2085 = vld [vmem:[%s444 + $0x20] sm:$0xf]
          %v2086 = vld [vmem:[%s444 + $0x24] sm:$0xf]
          %v2087 = vld [vmem:[%s444 + $0x28] sm:$0xf]
          %v2088 = vld [vmem:[%s444 + $0x2c] sm:$0xf]
          %v2089 = vld [vmem:[%s444 + $0x30] sm:$0xf]
          %v2090 = vld [vmem:[%s444 + $0x34] sm:$0xf]
          %v2091 = vld [vmem:[%s444 + $0x38] sm:$0xf]
          %v2092 = vld [vmem:[%s444 + $0x3c] sm:$0xf]
          %v2109 = vunpack.c.l.b16 %v2077
          %v2110 = vunpack.c.l.b16 %v2078
          %v2111 = vunpack.c.l.b16 %v2079
          %v2112 = vunpack.c.l.b16 %v2080
          %v2113 = vunpack.c.l.b16 %v2081
          %v2114 = vunpack.c.l.b16 %v2082
          %v2115 = vunpack.c.l.b16 %v2083
          %v2116 = vunpack.c.l.b16 %v2084
          %v2117 = vunpack.c.l.b16 %v2085
          %v2118 = vunpack.c.l.b16 %v2086
          %v2119 = vunpack.c.l.b16 %v2087
          %v2120 = vunpack.c.l.b16 %v2088
          %v2121 = vunpack.c.l.b16 %v2089
          %v2122 = vunpack.c.l.b16 %v2090
          %v2123 = vunpack.c.l.b16 %v2091
          %v2124 = vunpack.c.l.b16 %v2092
          %v2125 = vpack.c.b16 %v2110, %v2109
          %v2126 = vpack.c.b16 %v2112, %v2111
          %v2127 = vpack.c.b16 %v2114, %v2113
          %v2128 = vpack.c.b16 %v2116, %v2115
          %v2129 = vpack.c.b16 %v2118, %v2117
          %v2130 = vpack.c.b16 %v2120, %v2119
          %v2131 = vpack.c.b16 %v2122, %v2121
          %v2132 = vpack.c.b16 %v2124, %v2123
          %2141 = vmatprep.subr.bf16.mxu0 0
          %2142 = vmatpush1.bf16.msra.mxu0 %v2125
          %2143 = vmatprep.subr.bf16.mxu0 0
          %2144 = vmatpush1.bf16.msra.mxu0 %v2126
          %2145 = vmatprep.subr.bf16.mxu0 0
          %2146 = vmatpush1.bf16.msra.mxu0 %v2127
          %2147 = vmatprep.subr.bf16.mxu0 0
          %2148 = vmatpush1.bf16.msra.mxu0 %v2128
          %2149 = vmatprep.subr.bf16.mxu0 0
          %2150 = vmatpush1.bf16.msra.mxu0 %v2129
          %2151 = vmatprep.subr.bf16.mxu0 0
          %2152 = vmatpush1.bf16.msra.mxu0 %v2130
          %2153 = vmatprep.subr.bf16.mxu0 0
          %2154 = vmatpush1.bf16.msra.mxu0 %v2131
          %2155 = vmatprep.subr.bf16.mxu0 0
          %2156 = vmatpush1.bf16.msra.mxu0 %v2132
          %2157 = vmatprep.subr.bf16.mxu0 0
          %2158 = vmatpush1.bf16.msra.mxu0 0
          %2159 = vmatprep.subr.bf16.mxu0 0
          %2160 = vmatpush1.bf16.msra.mxu0 0
          %2161 = vmatprep.subr.bf16.mxu0 0
          %2162 = vmatpush1.bf16.msra.mxu0 0
          %2163 = vmatprep.subr.bf16.mxu0 0
          %2164 = vmatpush1.bf16.msra.mxu0 0
          %2165 = vmatprep.subr.bf16.mxu0 0
          %2166 = vmatpush1.bf16.msra.mxu0 0
          %2167 = vmatprep.subr.bf16.mxu0 0
          %2168 = vmatpush1.bf16.msra.mxu0 0
          %2169 = vmatprep.subr.bf16.mxu0 0
          %2170 = vmatpush1.bf16.msra.mxu0 0
          %2171 = vmatprep.subr.bf16.mxu0 0
          %2172 = vmatpush1.bf16.msra.mxu0 0
          %2173 = vmatprep.mubr.bf16.mxu0 0
          %2174 = vmatmul.mubr.bf16.gmra.mrb[0].mxu0 %v2069
          %v2175 = vpop.f32.mrb[0].mxu0
          %v2176 = vadd.f32 0.0, %v2175
          %v2177 = vpop.f32.mrb[0].mxu0
          %v2178 = vpop.f32.mrb[0].mxu0
          %v2179 = vadd.f32 0.0, %v2178
          %v2180 = vpop.f32.mrb[0].mxu0
          %2181 = vmatprep.mubr.bf16.mxu0 0
          %2182 = vmatmul.mubr.bf16.gmra.mrb[0].mxu0 %v2070
          %v2183 = vpop.f32.mrb[0].mxu0
          %v2184 = vadd.f32 0.0, %v2183
          %v2185 = vpop.f32.mrb[0].mxu0
          %v2186 = vpop.f32.mrb[0].mxu0
          %v2187 = vadd.f32 0.0, %v2186
          %v2188 = vpop.f32.mrb[0].mxu0
          %2189 = vmatprep.mubr.bf16.mxu0 0
          %2190 = vmatmul.mubr.bf16.gmra.mrb[0].mxu0 %v2071
          %v2191 = vpop.f32.mrb[0].mxu0
          %v2192 = vadd.f32 0.0, %v2191
          %v2193 = vpop.f32.mrb[0].mxu0
          %v2194 = vpop.f32.mrb[0].mxu0
          %v2195 = vadd.f32 0.0, %v2194
          %v2196 = vpop.f32.mrb[0].mxu0
          %2197 = vmatprep.mubr.bf16.mxu0 0
          %2198 = vmatmul.mubr.bf16.gmra.mrb[0].mxu0 %v2072
          %v2199 = vpop.f32.mrb[0].mxu0
          %v2200 = vadd.f32 0.0, %v2199
          %v2201 = vpop.f32.mrb[0].mxu0
          %v2202 = vpop.f32.mrb[0].mxu0
          %v2203 = vadd.f32 0.0, %v2202
          %v2204 = vpop.f32.mrb[0].mxu0
          %2205 = vmatprep.mubr.bf16.mxu0 0
          %2206 = vmatmul.mubr.bf16.gmra.mrb[0].mxu0 %v2073
          %v2207 = vpop.f32.mrb[0].mxu0
          %v2208 = vadd.f32 0.0, %v2207
          %v2209 = vpop.f32.mrb[0].mxu0
          %v2210 = vpop.f32.mrb[0].mxu0
          %v2211 = vadd.f32 0.0, %v2210
          %v2212 = vpop.f32.mrb[0].mxu0
          %2213 = vmatprep.mubr.bf16.mxu0 0
          %2214 = vmatmul.mubr.bf16.gmra.mrb[0].mxu0 %v2074
          %v2215 = vpop.f32.mrb[0].mxu0
          %v2216 = vadd.f32 0.0, %v2215
          %v2217 = vpop.f32.mrb[0].mxu0
          %v2218 = vpop.f32.mrb[0].mxu0
          %v2219 = vadd.f32 0.0, %v2218
          %v2220 = vpop.f32.mrb[0].mxu0
          %2221 = vmatprep.mubr.bf16.mxu0 0
          %2222 = vmatmul.mubr.bf16.gmra.mrb[0].mxu0 %v2075
          %v2223 = vpop.f32.mrb[0].mxu0
          %v2224 = vadd.f32 0.0, %v2223
          %v2225 = vpop.f32.mrb[0].mxu0
          %v2226 = vpop.f32.mrb[0].mxu0
          %v2227 = vadd.f32 0.0, %v2226
          %v2228 = vpop.f32.mrb[0].mxu0
          %2229 = vmatprep.mubr.bf16.mxu0 0
          %2230 = vmatmul.mubr.bf16.gmra.mrb[0].mxu0 %v2076
          %v2231 = vpop.f32.mrb[0].mxu0
          %v2232 = vadd.f32 0.0, %v2231
          %v2233 = vpop.f32.mrb[0].mxu0
          %v2234 = vpop.f32.mrb[0].mxu0
          %v2235 = vadd.f32 0.0, %v2234
          %v2236 = vpop.f32.mrb[0].mxu0
          %2237 = vdwg.mxu0
          %v2238 = vpack.c.bf16 %v2179, %v2176
          %v2239 = vpack.c.bf16 %v2187, %v2184
          %v2240 = vpack.c.bf16 %v2195, %v2192
          %v2241 = vpack.c.bf16 %v2203, %v2200
          %v2242 = vpack.c.bf16 %v2211, %v2208
          %v2243 = vpack.c.bf16 %v2219, %v2216
          %v2244 = vpack.c.bf16 %v2227, %v2224
          %v2245 = vpack.c.bf16 %v2235, %v2232
          %s2246 = sshra.s32 %s458, 4
          %s2247 = sand.u32 %s458, 15
          %s2248 = smul.addr %s2246, 8
          %s2249 = scalar_lea.vmem [#allocation2], %s2248
          %2250 = vst [vmem:[%s2249] sm:$0xff] %v2238
          %2251 = vst [vmem:[%s2249 + $0x8] sm:$0xff] %v2239
          %2252 = vst [vmem:[%s2249 + $0x10] sm:$0xff] %v2240
          %2253 = vst [vmem:[%s2249 + $0x18] sm:$0xff] %v2241
          %2254 = vst [vmem:[%s2249 + $0x20] sm:$0xff] %v2242
          %2255 = vst [vmem:[%s2249 + $0x28] sm:$0xff] %v2243
          %2256 = vst [vmem:[%s2249 + $0x30] sm:$0xff] %v2244
          %2257 = vst [vmem:[%s2249 + $0x38] sm:$0xff] %v2245
        $region96: #{gcn_forward.1} parent=91 // pred_fallthru
          _
        // Predicated region
        $region97: #{gcn_forward.1} parent=91 // pred_check
          %p2258 = pneg %p457
        $region98: #{gcn_forward.1} parent=91 // pred_check_branch
          %2260 = sbr.rel (%p2258) target = $region100
        $region99: #{gcn_forward.1} parent=91 // pred_region
          %v2261 = vld [vmem:[%s453] sm:$0xff]
          %v2262 = vlaneseq
          %v2263 = vshrl.u32 %v2262, 7
          %v2264 = vsub.s32 0, %v2263
          %v2265 = vrot.slane %v2261, %v2264
          %2267 = vbcast.lane.b32.xlu0 %v2265, 256
          %v2268 = vpop.permute.xlu0 %2267
          %s2270 = sor.u32 256, 8
          %2271 = vbcast.lane.b32.xlu0 %v2265, %s2270
          %v2272 = vpop.permute.xlu0 %2271
          %s2274 = sor.u32 256, 16
          %2275 = vbcast.lane.b32.xlu0 %v2265, %s2274
          %v2276 = vpop.permute.xlu0 %2275
          %s2278 = sor.u32 256, 24
          %2279 = vbcast.lane.b32.xlu0 %v2265, %s2278
          %v2280 = vpop.permute.xlu0 %2279
          %s2282 = sor.u32 256, 32
          %2283 = vbcast.lane.b32.xlu0 %v2265, %s2282
          %v2284 = vpop.permute.xlu0 %2283
          %s2286 = sor.u32 256, 40
          %2287 = vbcast.lane.b32.xlu0 %v2265, %s2286
          %v2288 = vpop.permute.xlu0 %2287
          %s2290 = sor.u32 256, 48
          %2291 = vbcast.lane.b32.xlu0 %v2265, %s2290
          %v2292 = vpop.permute.xlu0 %2291
          %s2294 = sor.u32 256, 56
          %2295 = vbcast.lane.b32.xlu0 %v2265, %s2294
          %v2296 = vpop.permute.xlu0 %2295
          %s2298 = sor.u32 256, 64
          %2299 = vbcast.lane.b32.xlu0 %v2265, %s2298
          %v2300 = vpop.permute.xlu0 %2299
          %s2302 = sor.u32 256, 72
          %2303 = vbcast.lane.b32.xlu0 %v2265, %s2302
          %v2304 = vpop.permute.xlu0 %2303
          %s2306 = sor.u32 256, 80
          %2307 = vbcast.lane.b32.xlu0 %v2265, %s2306
          %v2308 = vpop.permute.xlu0 %2307
          %s2310 = sor.u32 256, 88
          %2311 = vbcast.lane.b32.xlu0 %v2265, %s2310
          %v2312 = vpop.permute.xlu0 %2311
          %s2314 = sor.u32 256, 96
          %2315 = vbcast.lane.b32.xlu0 %v2265, %s2314
          %v2316 = vpop.permute.xlu0 %2315
          %s2318 = sor.u32 256, 104
          %2319 = vbcast.lane.b32.xlu0 %v2265, %s2318
          %v2320 = vpop.permute.xlu0 %2319
          %s2322 = sor.u32 256, 112
          %2323 = vbcast.lane.b32.xlu0 %v2265, %s2322
          %v2324 = vpop.permute.xlu0 %2323
          %s2326 = sor.u32 256, 120
          %2327 = vbcast.lane.b32.xlu0 %v2265, %s2326
          %v2328 = vpop.permute.xlu0 %2327
          %v2329 = vlaneseq
          %v2330 = vshrl.u32 %v2329, 7
          %v2331 = vsub.s32 1, %v2330
          %v2332 = vrot.slane %v2261, %v2331
          %2334 = vbcast.lane.b32.xlu0 %v2332, 256
          %v2335 = vpop.permute.xlu0 %2334
          %s2337 = sor.u32 256, 8
          %2338 = vbcast.lane.b32.xlu0 %v2332, %s2337
          %v2339 = vpop.permute.xlu0 %2338
          %s2341 = sor.u32 256, 16
          %2342 = vbcast.lane.b32.xlu0 %v2332, %s2341
          %v2343 = vpop.permute.xlu0 %2342
          %s2345 = sor.u32 256, 24
          %2346 = vbcast.lane.b32.xlu0 %v2332, %s2345
          %v2347 = vpop.permute.xlu0 %2346
          %s2349 = sor.u32 256, 32
          %2350 = vbcast.lane.b32.xlu0 %v2332, %s2349
          %v2351 = vpop.permute.xlu0 %2350
          %s2353 = sor.u32 256, 40
          %2354 = vbcast.lane.b32.xlu0 %v2332, %s2353
          %v2355 = vpop.permute.xlu0 %2354
          %s2357 = sor.u32 256, 48
          %2358 = vbcast.lane.b32.xlu0 %v2332, %s2357
          %v2359 = vpop.permute.xlu0 %2358
          %s2361 = sor.u32 256, 56
          %2362 = vbcast.lane.b32.xlu0 %v2332, %s2361
          %v2363 = vpop.permute.xlu0 %2362
          %s2365 = sor.u32 256, 64
          %2366 = vbcast.lane.b32.xlu0 %v2332, %s2365
          %v2367 = vpop.permute.xlu0 %2366
          %s2369 = sor.u32 256, 72
          %2370 = vbcast.lane.b32.xlu0 %v2332, %s2369
          %v2371 = vpop.permute.xlu0 %2370
          %s2373 = sor.u32 256, 80
          %2374 = vbcast.lane.b32.xlu0 %v2332, %s2373
          %v2375 = vpop.permute.xlu0 %2374
          %s2377 = sor.u32 256, 88
          %2378 = vbcast.lane.b32.xlu0 %v2332, %s2377
          %v2379 = vpop.permute.xlu0 %2378
          %s2381 = sor.u32 256, 96
          %2382 = vbcast.lane.b32.xlu0 %v2332, %s2381
          %v2383 = vpop.permute.xlu0 %2382
          %s2385 = sor.u32 256, 104
          %2386 = vbcast.lane.b32.xlu0 %v2332, %s2385
          %v2387 = vpop.permute.xlu0 %2386
          %s2389 = sor.u32 256, 112
          %2390 = vbcast.lane.b32.xlu0 %v2332, %s2389
          %v2391 = vpop.permute.xlu0 %2390
          %s2393 = sor.u32 256, 120
          %2394 = vbcast.lane.b32.xlu0 %v2332, %s2393
          %v2395 = vpop.permute.xlu0 %2394
          %v2396 = vlaneseq
          %v2397 = vshrl.u32 %v2396, 7
          %v2398 = vsub.s32 2, %v2397
          %v2399 = vrot.slane %v2261, %v2398
          %2401 = vbcast.lane.b32.xlu0 %v2399, 256
          %v2402 = vpop.permute.xlu0 %2401
          %s2404 = sor.u32 256, 8
          %2405 = vbcast.lane.b32.xlu0 %v2399, %s2404
          %v2406 = vpop.permute.xlu0 %2405
          %s2408 = sor.u32 256, 16
          %2409 = vbcast.lane.b32.xlu0 %v2399, %s2408
          %v2410 = vpop.permute.xlu0 %2409
          %s2412 = sor.u32 256, 24
          %2413 = vbcast.lane.b32.xlu0 %v2399, %s2412
          %v2414 = vpop.permute.xlu0 %2413
          %s2416 = sor.u32 256, 32
          %2417 = vbcast.lane.b32.xlu0 %v2399, %s2416
          %v2418 = vpop.permute.xlu0 %2417
          %s2420 = sor.u32 256, 40
          %2421 = vbcast.lane.b32.xlu0 %v2399, %s2420
          %v2422 = vpop.permute.xlu0 %2421
          %s2424 = sor.u32 256, 48
          %2425 = vbcast.lane.b32.xlu0 %v2399, %s2424
          %v2426 = vpop.permute.xlu0 %2425
          %s2428 = sor.u32 256, 56
          %2429 = vbcast.lane.b32.xlu0 %v2399, %s2428
          %v2430 = vpop.permute.xlu0 %2429
          %s2432 = sor.u32 256, 64
          %2433 = vbcast.lane.b32.xlu0 %v2399, %s2432
          %v2434 = vpop.permute.xlu0 %2433
          %s2436 = sor.u32 256, 72
          %2437 = vbcast.lane.b32.xlu0 %v2399, %s2436
          %v2438 = vpop.permute.xlu0 %2437
          %s2440 = sor.u32 256, 80
          %2441 = vbcast.lane.b32.xlu0 %v2399, %s2440
          %v2442 = vpop.permute.xlu0 %2441
          %s2444 = sor.u32 256, 88
          %2445 = vbcast.lane.b32.xlu0 %v2399, %s2444
          %v2446 = vpop.permute.xlu0 %2445
          %s2448 = sor.u32 256, 96
          %2449 = vbcast.lane.b32.xlu0 %v2399, %s2448
          %v2450 = vpop.permute.xlu0 %2449
          %s2452 = sor.u32 256, 104
          %2453 = vbcast.lane.b32.xlu0 %v2399, %s2452
          %v2454 = vpop.permute.xlu0 %2453
          %s2456 = sor.u32 256, 112
          %2457 = vbcast.lane.b32.xlu0 %v2399, %s2456
          %v2458 = vpop.permute.xlu0 %2457
          %s2460 = sor.u32 256, 120
          %2461 = vbcast.lane.b32.xlu0 %v2399, %s2460
          %v2462 = vpop.permute.xlu0 %2461
          %v2463 = vlaneseq
          %v2464 = vshrl.u32 %v2463, 7
          %v2465 = vsub.s32 3, %v2464
          %v2466 = vrot.slane %v2261, %v2465
          %2468 = vbcast.lane.b32.xlu0 %v2466, 256
          %v2469 = vpop.permute.xlu0 %2468
          %s2471 = sor.u32 256, 8
          %2472 = vbcast.lane.b32.xlu0 %v2466, %s2471
          %v2473 = vpop.permute.xlu0 %2472
          %s2475 = sor.u32 256, 16
          %2476 = vbcast.lane.b32.xlu0 %v2466, %s2475
          %v2477 = vpop.permute.xlu0 %2476
          %s2479 = sor.u32 256, 24
          %2480 = vbcast.lane.b32.xlu0 %v2466, %s2479
          %v2481 = vpop.permute.xlu0 %2480
          %s2483 = sor.u32 256, 32
          %2484 = vbcast.lane.b32.xlu0 %v2466, %s2483
          %v2485 = vpop.permute.xlu0 %2484
          %s2487 = sor.u32 256, 40
          %2488 = vbcast.lane.b32.xlu0 %v2466, %s2487
          %v2489 = vpop.permute.xlu0 %2488
          %s2491 = sor.u32 256, 48
          %2492 = vbcast.lane.b32.xlu0 %v2466, %s2491
          %v2493 = vpop.permute.xlu0 %2492
          %s2495 = sor.u32 256, 56
          %2496 = vbcast.lane.b32.xlu0 %v2466, %s2495
          %v2497 = vpop.permute.xlu0 %2496
          %s2499 = sor.u32 256, 64
          %2500 = vbcast.lane.b32.xlu0 %v2466, %s2499
          %v2501 = vpop.permute.xlu0 %2500
          %s2503 = sor.u32 256, 72
          %2504 = vbcast.lane.b32.xlu0 %v2466, %s2503
          %v2505 = vpop.permute.xlu0 %2504
          %s2507 = sor.u32 256, 80
          %2508 = vbcast.lane.b32.xlu0 %v2466, %s2507
          %v2509 = vpop.permute.xlu0 %2508
          %s2511 = sor.u32 256, 88
          %2512 = vbcast.lane.b32.xlu0 %v2466, %s2511
          %v2513 = vpop.permute.xlu0 %2512
          %s2515 = sor.u32 256, 96
          %2516 = vbcast.lane.b32.xlu0 %v2466, %s2515
          %v2517 = vpop.permute.xlu0 %2516
          %s2519 = sor.u32 256, 104
          %2520 = vbcast.lane.b32.xlu0 %v2466, %s2519
          %v2521 = vpop.permute.xlu0 %2520
          %s2523 = sor.u32 256, 112
          %2524 = vbcast.lane.b32.xlu0 %v2466, %s2523
          %v2525 = vpop.permute.xlu0 %2524
          %s2527 = sor.u32 256, 120
          %2528 = vbcast.lane.b32.xlu0 %v2466, %s2527
          %v2529 = vpop.permute.xlu0 %2528
          %v2530 = vlaneseq
          %v2531 = vshrl.u32 %v2530, 7
          %v2532 = vsub.s32 4, %v2531
          %v2533 = vrot.slane %v2261, %v2532
          %2535 = vbcast.lane.b32.xlu0 %v2533, 256
          %v2536 = vpop.permute.xlu0 %2535
          %s2538 = sor.u32 256, 8
          %2539 = vbcast.lane.b32.xlu0 %v2533, %s2538
          %v2540 = vpop.permute.xlu0 %2539
          %s2542 = sor.u32 256, 16
          %2543 = vbcast.lane.b32.xlu0 %v2533, %s2542
          %v2544 = vpop.permute.xlu0 %2543
          %s2546 = sor.u32 256, 24
          %2547 = vbcast.lane.b32.xlu0 %v2533, %s2546
          %v2548 = vpop.permute.xlu0 %2547
          %s2550 = sor.u32 256, 32
          %2551 = vbcast.lane.b32.xlu0 %v2533, %s2550
          %v2552 = vpop.permute.xlu0 %2551
          %s2554 = sor.u32 256, 40
          %2555 = vbcast.lane.b32.xlu0 %v2533, %s2554
          %v2556 = vpop.permute.xlu0 %2555
          %s2558 = sor.u32 256, 48
          %2559 = vbcast.lane.b32.xlu0 %v2533, %s2558
          %v2560 = vpop.permute.xlu0 %2559
          %s2562 = sor.u32 256, 56
          %2563 = vbcast.lane.b32.xlu0 %v2533, %s2562
          %v2564 = vpop.permute.xlu0 %2563
          %s2566 = sor.u32 256, 64
          %2567 = vbcast.lane.b32.xlu0 %v2533, %s2566
          %v2568 = vpop.permute.xlu0 %2567
          %s2570 = sor.u32 256, 72
          %2571 = vbcast.lane.b32.xlu0 %v2533, %s2570
          %v2572 = vpop.permute.xlu0 %2571
          %s2574 = sor.u32 256, 80
          %2575 = vbcast.lane.b32.xlu0 %v2533, %s2574
          %v2576 = vpop.permute.xlu0 %2575
          %s2578 = sor.u32 256, 88
          %2579 = vbcast.lane.b32.xlu0 %v2533, %s2578
          %v2580 = vpop.permute.xlu0 %2579
          %s2582 = sor.u32 256, 96
          %2583 = vbcast.lane.b32.xlu0 %v2533, %s2582
          %v2584 = vpop.permute.xlu0 %2583
          %s2586 = sor.u32 256, 104
          %2587 = vbcast.lane.b32.xlu0 %v2533, %s2586
          %v2588 = vpop.permute.xlu0 %2587
          %s2590 = sor.u32 256, 112
          %2591 = vbcast.lane.b32.xlu0 %v2533, %s2590
          %v2592 = vpop.permute.xlu0 %2591
          %s2594 = sor.u32 256, 120
          %2595 = vbcast.lane.b32.xlu0 %v2533, %s2594
          %v2596 = vpop.permute.xlu0 %2595
          %v2597 = vlaneseq
          %v2598 = vshrl.u32 %v2597, 7
          %v2599 = vsub.s32 5, %v2598
          %v2600 = vrot.slane %v2261, %v2599
          %2602 = vbcast.lane.b32.xlu0 %v2600, 256
          %v2603 = vpop.permute.xlu0 %2602
          %s2605 = sor.u32 256, 8
          %2606 = vbcast.lane.b32.xlu0 %v2600, %s2605
          %v2607 = vpop.permute.xlu0 %2606
          %s2609 = sor.u32 256, 16
          %2610 = vbcast.lane.b32.xlu0 %v2600, %s2609
          %v2611 = vpop.permute.xlu0 %2610
          %s2613 = sor.u32 256, 24
          %2614 = vbcast.lane.b32.xlu0 %v2600, %s2613
          %v2615 = vpop.permute.xlu0 %2614
          %s2617 = sor.u32 256, 32
          %2618 = vbcast.lane.b32.xlu0 %v2600, %s2617
          %v2619 = vpop.permute.xlu0 %2618
          %s2621 = sor.u32 256, 40
          %2622 = vbcast.lane.b32.xlu0 %v2600, %s2621
          %v2623 = vpop.permute.xlu0 %2622
          %s2625 = sor.u32 256, 48
          %2626 = vbcast.lane.b32.xlu0 %v2600, %s2625
          %v2627 = vpop.permute.xlu0 %2626
          %s2629 = sor.u32 256, 56
          %2630 = vbcast.lane.b32.xlu0 %v2600, %s2629
          %v2631 = vpop.permute.xlu0 %2630
          %s2633 = sor.u32 256, 64
          %2634 = vbcast.lane.b32.xlu0 %v2600, %s2633
          %v2635 = vpop.permute.xlu0 %2634
          %s2637 = sor.u32 256, 72
          %2638 = vbcast.lane.b32.xlu0 %v2600, %s2637
          %v2639 = vpop.permute.xlu0 %2638
          %s2641 = sor.u32 256, 80
          %2642 = vbcast.lane.b32.xlu0 %v2600, %s2641
          %v2643 = vpop.permute.xlu0 %2642
          %s2645 = sor.u32 256, 88
          %2646 = vbcast.lane.b32.xlu0 %v2600, %s2645
          %v2647 = vpop.permute.xlu0 %2646
          %s2649 = sor.u32 256, 96
          %2650 = vbcast.lane.b32.xlu0 %v2600, %s2649
          %v2651 = vpop.permute.xlu0 %2650
          %s2653 = sor.u32 256, 104
          %2654 = vbcast.lane.b32.xlu0 %v2600, %s2653
          %v2655 = vpop.permute.xlu0 %2654
          %s2657 = sor.u32 256, 112
          %2658 = vbcast.lane.b32.xlu0 %v2600, %s2657
          %v2659 = vpop.permute.xlu0 %2658
          %s2661 = sor.u32 256, 120
          %2662 = vbcast.lane.b32.xlu0 %v2600, %s2661
          %v2663 = vpop.permute.xlu0 %2662
          %v2664 = vlaneseq
          %v2665 = vshrl.u32 %v2664, 7
          %v2666 = vsub.s32 6, %v2665
          %v2667 = vrot.slane %v2261, %v2666
          %2669 = vbcast.lane.b32.xlu0 %v2667, 256
          %v2670 = vpop.permute.xlu0 %2669
          %s2672 = sor.u32 256, 8
          %2673 = vbcast.lane.b32.xlu0 %v2667, %s2672
          %v2674 = vpop.permute.xlu0 %2673
          %s2676 = sor.u32 256, 16
          %2677 = vbcast.lane.b32.xlu0 %v2667, %s2676
          %v2678 = vpop.permute.xlu0 %2677
          %s2680 = sor.u32 256, 24
          %2681 = vbcast.lane.b32.xlu0 %v2667, %s2680
          %v2682 = vpop.permute.xlu0 %2681
          %s2684 = sor.u32 256, 32
          %2685 = vbcast.lane.b32.xlu0 %v2667, %s2684
          %v2686 = vpop.permute.xlu0 %2685
          %s2688 = sor.u32 256, 40
          %2689 = vbcast.lane.b32.xlu0 %v2667, %s2688
          %v2690 = vpop.permute.xlu0 %2689
          %s2692 = sor.u32 256, 48
          %2693 = vbcast.lane.b32.xlu0 %v2667, %s2692
          %v2694 = vpop.permute.xlu0 %2693
          %s2696 = sor.u32 256, 56
          %2697 = vbcast.lane.b32.xlu0 %v2667, %s2696
          %v2698 = vpop.permute.xlu0 %2697
          %s2700 = sor.u32 256, 64
          %2701 = vbcast.lane.b32.xlu0 %v2667, %s2700
          %v2702 = vpop.permute.xlu0 %2701
          %s2704 = sor.u32 256, 72
          %2705 = vbcast.lane.b32.xlu0 %v2667, %s2704
          %v2706 = vpop.permute.xlu0 %2705
          %s2708 = sor.u32 256, 80
          %2709 = vbcast.lane.b32.xlu0 %v2667, %s2708
          %v2710 = vpop.permute.xlu0 %2709
          %s2712 = sor.u32 256, 88
          %2713 = vbcast.lane.b32.xlu0 %v2667, %s2712
          %v2714 = vpop.permute.xlu0 %2713
          %s2716 = sor.u32 256, 96
          %2717 = vbcast.lane.b32.xlu0 %v2667, %s2716
          %v2718 = vpop.permute.xlu0 %2717
          %s2720 = sor.u32 256, 104
          %2721 = vbcast.lane.b32.xlu0 %v2667, %s2720
          %v2722 = vpop.permute.xlu0 %2721
          %s2724 = sor.u32 256, 112
          %2725 = vbcast.lane.b32.xlu0 %v2667, %s2724
          %v2726 = vpop.permute.xlu0 %2725
          %s2728 = sor.u32 256, 120
          %2729 = vbcast.lane.b32.xlu0 %v2667, %s2728
          %v2730 = vpop.permute.xlu0 %2729
          %v2731 = vlaneseq
          %v2732 = vshrl.u32 %v2731, 7
          %v2733 = vsub.s32 7, %v2732
          %v2734 = vrot.slane %v2261, %v2733
          %2736 = vbcast.lane.b32.xlu0 %v2734, 256
          %v2737 = vpop.permute.xlu0 %2736
          %s2739 = sor.u32 256, 8
          %2740 = vbcast.lane.b32.xlu0 %v2734, %s2739
          %v2741 = vpop.permute.xlu0 %2740
          %s2743 = sor.u32 256, 16
          %2744 = vbcast.lane.b32.xlu0 %v2734, %s2743
          %v2745 = vpop.permute.xlu0 %2744
          %s2747 = sor.u32 256, 24
          %2748 = vbcast.lane.b32.xlu0 %v2734, %s2747
          %v2749 = vpop.permute.xlu0 %2748
          %s2751 = sor.u32 256, 32
          %2752 = vbcast.lane.b32.xlu0 %v2734, %s2751
          %v2753 = vpop.permute.xlu0 %2752
          %s2755 = sor.u32 256, 40
          %2756 = vbcast.lane.b32.xlu0 %v2734, %s2755
          %v2757 = vpop.permute.xlu0 %2756
          %s2759 = sor.u32 256, 48
          %2760 = vbcast.lane.b32.xlu0 %v2734, %s2759
          %v2761 = vpop.permute.xlu0 %2760
          %s2763 = sor.u32 256, 56
          %2764 = vbcast.lane.b32.xlu0 %v2734, %s2763
          %v2765 = vpop.permute.xlu0 %2764
          %s2767 = sor.u32 256, 64
          %2768 = vbcast.lane.b32.xlu0 %v2734, %s2767
          %v2769 = vpop.permute.xlu0 %2768
          %s2771 = sor.u32 256, 72
          %2772 = vbcast.lane.b32.xlu0 %v2734, %s2771
          %v2773 = vpop.permute.xlu0 %2772
          %s2775 = sor.u32 256, 80
          %2776 = vbcast.lane.b32.xlu0 %v2734, %s2775
          %v2777 = vpop.permute.xlu0 %2776
          %s2779 = sor.u32 256, 88
          %2780 = vbcast.lane.b32.xlu0 %v2734, %s2779
          %v2781 = vpop.permute.xlu0 %2780
          %s2783 = sor.u32 256, 96
          %2784 = vbcast.lane.b32.xlu0 %v2734, %s2783
          %v2785 = vpop.permute.xlu0 %2784
          %s2787 = sor.u32 256, 104
          %2788 = vbcast.lane.b32.xlu0 %v2734, %s2787
          %v2789 = vpop.permute.xlu0 %2788
          %s2791 = sor.u32 256, 112
          %2792 = vbcast.lane.b32.xlu0 %v2734, %s2791
          %v2793 = vpop.permute.xlu0 %2792
          %s2795 = sor.u32 256, 120
          %2796 = vbcast.lane.b32.xlu0 %v2734, %s2795
          %v2797 = vpop.permute.xlu0 %2796
          %v2798 = vadd.f32 %v2049, %v2268
          %v2799 = vadd.f32 %v2050, %v2272
          %v2800 = vadd.f32 %v2051, %v2276
          %v2801 = vadd.f32 %v2052, %v2280
          %v2802 = vadd.f32 %v2053, %v2284
          %v2803 = vadd.f32 %v2054, %v2288
          %v2804 = vadd.f32 %v2055, %v2292
          %v2805 = vadd.f32 %v2056, %v2296
          %v2806 = vadd.f32 %v2057, %v2300
          %v2807 = vadd.f32 %v2058, %v2304
          %v2808 = vadd.f32 %v2059, %v2308
          %v2809 = vadd.f32 %v2060, %v2312
          %v2810 = vadd.f32 %v2061, %v2316
          %v2811 = vadd.f32 %v2062, %v2320
          %v2812 = vadd.f32 %v2063, %v2324
          %v2813 = vadd.f32 %v2064, %v2328
          %v2814 = vadd.f32 %v2049, %v2335
          %v2815 = vadd.f32 %v2050, %v2339
          %v2816 = vadd.f32 %v2051, %v2343
          %v2817 = vadd.f32 %v2052, %v2347
          %v2818 = vadd.f32 %v2053, %v2351
          %v2819 = vadd.f32 %v2054, %v2355
          %v2820 = vadd.f32 %v2055, %v2359
          %v2821 = vadd.f32 %v2056, %v2363
          %v2822 = vadd.f32 %v2057, %v2367
          %v2823 = vadd.f32 %v2058, %v2371
          %v2824 = vadd.f32 %v2059, %v2375
          %v2825 = vadd.f32 %v2060, %v2379
          %v2826 = vadd.f32 %v2061, %v2383
          %v2827 = vadd.f32 %v2062, %v2387
          %v2828 = vadd.f32 %v2063, %v2391
          %v2829 = vadd.f32 %v2064, %v2395
          %v2830 = vadd.f32 %v2049, %v2402
          %v2831 = vadd.f32 %v2050, %v2406
          %v2832 = vadd.f32 %v2051, %v2410
          %v2833 = vadd.f32 %v2052, %v2414
          %v2834 = vadd.f32 %v2053, %v2418
          %v2835 = vadd.f32 %v2054, %v2422
          %v2836 = vadd.f32 %v2055, %v2426
          %v2837 = vadd.f32 %v2056, %v2430
          %v2838 = vadd.f32 %v2057, %v2434
          %v2839 = vadd.f32 %v2058, %v2438
          %v2840 = vadd.f32 %v2059, %v2442
          %v2841 = vadd.f32 %v2060, %v2446
          %v2842 = vadd.f32 %v2061, %v2450
          %v2843 = vadd.f32 %v2062, %v2454
          %v2844 = vadd.f32 %v2063, %v2458
          %v2845 = vadd.f32 %v2064, %v2462
          %v2846 = vadd.f32 %v2049, %v2469
          %v2847 = vadd.f32 %v2050, %v2473
          %v2848 = vadd.f32 %v2051, %v2477
          %v2849 = vadd.f32 %v2052, %v2481
          %v2850 = vadd.f32 %v2053, %v2485
          %v2851 = vadd.f32 %v2054, %v2489
          %v2852 = vadd.f32 %v2055, %v2493
          %v2853 = vadd.f32 %v2056, %v2497
          %v2854 = vadd.f32 %v2057, %v2501
          %v2855 = vadd.f32 %v2058, %v2505
          %v2856 = vadd.f32 %v2059, %v2509
          %v2857 = vadd.f32 %v2060, %v2513
          %v2858 = vadd.f32 %v2061, %v2517
          %v2859 = vadd.f32 %v2062, %v2521
          %v2860 = vadd.f32 %v2063, %v2525
          %v2861 = vadd.f32 %v2064, %v2529
          %v2862 = vadd.f32 %v2049, %v2536
          %v2863 = vadd.f32 %v2050, %v2540
          %v2864 = vadd.f32 %v2051, %v2544
          %v2865 = vadd.f32 %v2052, %v2548
          %v2866 = vadd.f32 %v2053, %v2552
          %v2867 = vadd.f32 %v2054, %v2556
          %v2868 = vadd.f32 %v2055, %v2560
          %v2869 = vadd.f32 %v2056, %v2564
          %v2870 = vadd.f32 %v2057, %v2568
          %v2871 = vadd.f32 %v2058, %v2572
          %v2872 = vadd.f32 %v2059, %v2576
          %v2873 = vadd.f32 %v2060, %v2580
          %v2874 = vadd.f32 %v2061, %v2584
          %v2875 = vadd.f32 %v2062, %v2588
          %v2876 = vadd.f32 %v2063, %v2592
          %v2877 = vadd.f32 %v2064, %v2596
          %v2878 = vadd.f32 %v2049, %v2603
          %v2879 = vadd.f32 %v2050, %v2607
          %v2880 = vadd.f32 %v2051, %v2611
          %v2881 = vadd.f32 %v2052, %v2615
          %v2882 = vadd.f32 %v2053, %v2619
          %v2883 = vadd.f32 %v2054, %v2623
          %v2884 = vadd.f32 %v2055, %v2627
          %v2885 = vadd.f32 %v2056, %v2631
          %v2886 = vadd.f32 %v2057, %v2635
          %v2887 = vadd.f32 %v2058, %v2639
          %v2888 = vadd.f32 %v2059, %v2643
          %v2889 = vadd.f32 %v2060, %v2647
          %v2890 = vadd.f32 %v2061, %v2651
          %v2891 = vadd.f32 %v2062, %v2655
          %v2892 = vadd.f32 %v2063, %v2659
          %v2893 = vadd.f32 %v2064, %v2663
          %v2894 = vadd.f32 %v2049, %v2670
          %v2895 = vadd.f32 %v2050, %v2674
          %v2896 = vadd.f32 %v2051, %v2678
          %v2897 = vadd.f32 %v2052, %v2682
          %v2898 = vadd.f32 %v2053, %v2686
          %v2899 = vadd.f32 %v2054, %v2690
          %v2900 = vadd.f32 %v2055, %v2694
          %v2901 = vadd.f32 %v2056, %v2698
          %v2902 = vadd.f32 %v2057, %v2702
          %v2903 = vadd.f32 %v2058, %v2706
          %v2904 = vadd.f32 %v2059, %v2710
          %v2905 = vadd.f32 %v2060, %v2714
          %v2906 = vadd.f32 %v2061, %v2718
          %v2907 = vadd.f32 %v2062, %v2722
          %v2908 = vadd.f32 %v2063, %v2726
          %v2909 = vadd.f32 %v2064, %v2730
          %v2910 = vadd.f32 %v2049, %v2737
          %v2911 = vadd.f32 %v2050, %v2741
          %v2912 = vadd.f32 %v2051, %v2745
          %v2913 = vadd.f32 %v2052, %v2749
          %v2914 = vadd.f32 %v2053, %v2753
          %v2915 = vadd.f32 %v2054, %v2757
          %v2916 = vadd.f32 %v2055, %v2761
          %v2917 = vadd.f32 %v2056, %v2765
          %v2918 = vadd.f32 %v2057, %v2769
          %v2919 = vadd.f32 %v2058, %v2773
          %v2920 = vadd.f32 %v2059, %v2777
          %v2921 = vadd.f32 %v2060, %v2781
          %v2922 = vadd.f32 %v2061, %v2785
          %v2923 = vadd.f32 %v2062, %v2789
          %v2924 = vadd.f32 %v2063, %v2793
          %v2925 = vadd.f32 %v2064, %v2797
          %v2926 = vmax.f32 %v2798, %v2799
          %v2927 = vmax.f32 %v2926, %v2800
          %v2928 = vmax.f32 %v2927, %v2801
          %v2929 = vmax.f32 %v2928, %v2802
          %v2930 = vmax.f32 %v2929, %v2803
          %v2931 = vmax.f32 %v2930, %v2804
          %v2932 = vmax.f32 %v2931, %v2805
          %v2933 = vmax.f32 %v2932, %v2806
          %v2934 = vmax.f32 %v2933, %v2807
          %v2935 = vmax.f32 %v2934, %v2808
          %v2936 = vmax.f32 %v2935, %v2809
          %v2937 = vmax.f32 %v2936, %v2810
          %v2938 = vmax.f32 %v2937, %v2811
          %v2939 = vmax.f32 %v2938, %v2812
          %v2940 = vmax.f32 %v2939, %v2813
          %v2941 = vrot.slane %v2940, 4
          %v2942 = vmax.f32 %v2940, %v2941
          %v2943 = vrot.slane %v2942, 2
          %v2944 = vmax.f32 %v2942, %v2943
          %v2945 = vrot.slane %v2944, 1
          %v2946 = vmax.f32 %v2944, %v2945
          %v2947 = vmax.f32 %v2814, %v2815
          %v2948 = vmax.f32 %v2947, %v2816
          %v2949 = vmax.f32 %v2948, %v2817
          %v2950 = vmax.f32 %v2949, %v2818
          %v2951 = vmax.f32 %v2950, %v2819
          %v2952 = vmax.f32 %v2951, %v2820
          %v2953 = vmax.f32 %v2952, %v2821
          %v2954 = vmax.f32 %v2953, %v2822
          %v2955 = vmax.f32 %v2954, %v2823
          %v2956 = vmax.f32 %v2955, %v2824
          %v2957 = vmax.f32 %v2956, %v2825
          %v2958 = vmax.f32 %v2957, %v2826
          %v2959 = vmax.f32 %v2958, %v2827
          %v2960 = vmax.f32 %v2959, %v2828
          %v2961 = vmax.f32 %v2960, %v2829
          %v2962 = vrot.slane %v2961, 4
          %v2963 = vmax.f32 %v2961, %v2962
          %v2964 = vrot.slane %v2963, 2
          %v2965 = vmax.f32 %v2963, %v2964
          %v2966 = vrot.slane %v2965, 1
          %v2967 = vmax.f32 %v2965, %v2966
          %v2968 = vmax.f32 %v2830, %v2831
          %v2969 = vmax.f32 %v2968, %v2832
          %v2970 = vmax.f32 %v2969, %v2833
          %v2971 = vmax.f32 %v2970, %v2834
          %v2972 = vmax.f32 %v2971, %v2835
          %v2973 = vmax.f32 %v2972, %v2836
          %v2974 = vmax.f32 %v2973, %v2837
          %v2975 = vmax.f32 %v2974, %v2838
          %v2976 = vmax.f32 %v2975, %v2839
          %v2977 = vmax.f32 %v2976, %v2840
          %v2978 = vmax.f32 %v2977, %v2841
          %v2979 = vmax.f32 %v2978, %v2842
          %v2980 = vmax.f32 %v2979, %v2843
          %v2981 = vmax.f32 %v2980, %v2844
          %v2982 = vmax.f32 %v2981, %v2845
          %v2983 = vrot.slane %v2982, 4
          %v2984 = vmax.f32 %v2982, %v2983
          %v2985 = vrot.slane %v2984, 2
          %v2986 = vmax.f32 %v2984, %v2985
          %v2987 = vrot.slane %v2986, 1
          %v2988 = vmax.f32 %v2986, %v2987
          %v2989 = vmax.f32 %v2846, %v2847
          %v2990 = vmax.f32 %v2989, %v2848
          %v2991 = vmax.f32 %v2990, %v2849
          %v2992 = vmax.f32 %v2991, %v2850
          %v2993 = vmax.f32 %v2992, %v2851
          %v2994 = vmax.f32 %v2993, %v2852
          %v2995 = vmax.f32 %v2994, %v2853
          %v2996 = vmax.f32 %v2995, %v2854
          %v2997 = vmax.f32 %v2996, %v2855
          %v2998 = vmax.f32 %v2997, %v2856
          %v2999 = vmax.f32 %v2998, %v2857
          %v3000 = vmax.f32 %v2999, %v2858
          %v3001 = vmax.f32 %v3000, %v2859
          %v3002 = vmax.f32 %v3001, %v2860
          %v3003 = vmax.f32 %v3002, %v2861
          %v3004 = vrot.slane %v3003, 4
          %v3005 = vmax.f32 %v3003, %v3004
          %v3006 = vrot.slane %v3005, 2
          %v3007 = vmax.f32 %v3005, %v3006
          %v3008 = vrot.slane %v3007, 1
          %v3009 = vmax.f32 %v3007, %v3008
          %v3010 = vmax.f32 %v2862, %v2863
          %v3011 = vmax.f32 %v3010, %v2864
          %v3012 = vmax.f32 %v3011, %v2865
          %v3013 = vmax.f32 %v3012, %v2866
          %v3014 = vmax.f32 %v3013, %v2867
          %v3015 = vmax.f32 %v3014, %v2868
          %v3016 = vmax.f32 %v3015, %v2869
          %v3017 = vmax.f32 %v3016, %v2870
          %v3018 = vmax.f32 %v3017, %v2871
          %v3019 = vmax.f32 %v3018, %v2872
          %v3020 = vmax.f32 %v3019, %v2873
          %v3021 = vmax.f32 %v3020, %v2874
          %v3022 = vmax.f32 %v3021, %v2875
          %v3023 = vmax.f32 %v3022, %v2876
          %v3024 = vmax.f32 %v3023, %v2877
          %v3025 = vrot.slane %v3024, 4
          %v3026 = vmax.f32 %v3024, %v3025
          %v3027 = vrot.slane %v3026, 2
          %v3028 = vmax.f32 %v3026, %v3027
          %v3029 = vrot.slane %v3028, 1
          %v3030 = vmax.f32 %v3028, %v3029
          %v3031 = vmax.f32 %v2878, %v2879
          %v3032 = vmax.f32 %v3031, %v2880
          %v3033 = vmax.f32 %v3032, %v2881
          %v3034 = vmax.f32 %v3033, %v2882
          %v3035 = vmax.f32 %v3034, %v2883
          %v3036 = vmax.f32 %v3035, %v2884
          %v3037 = vmax.f32 %v3036, %v2885
          %v3038 = vmax.f32 %v3037, %v2886
          %v3039 = vmax.f32 %v3038, %v2887
          %v3040 = vmax.f32 %v3039, %v2888
          %v3041 = vmax.f32 %v3040, %v2889
          %v3042 = vmax.f32 %v3041, %v2890
          %v3043 = vmax.f32 %v3042, %v2891
          %v3044 = vmax.f32 %v3043, %v2892
          %v3045 = vmax.f32 %v3044, %v2893
          %v3046 = vrot.slane %v3045, 4
          %v3047 = vmax.f32 %v3045, %v3046
          %v3048 = vrot.slane %v3047, 2
          %v3049 = vmax.f32 %v3047, %v3048
          %v3050 = vrot.slane %v3049, 1
          %v3051 = vmax.f32 %v3049, %v3050
          %v3052 = vmax.f32 %v2894, %v2895
          %v3053 = vmax.f32 %v3052, %v2896
          %v3054 = vmax.f32 %v3053, %v2897
          %v3055 = vmax.f32 %v3054, %v2898
          %v3056 = vmax.f32 %v3055, %v2899
          %v3057 = vmax.f32 %v3056, %v2900
          %v3058 = vmax.f32 %v3057, %v2901
          %v3059 = vmax.f32 %v3058, %v2902
          %v3060 = vmax.f32 %v3059, %v2903
          %v3061 = vmax.f32 %v3060, %v2904
          %v3062 = vmax.f32 %v3061, %v2905
          %v3063 = vmax.f32 %v3062, %v2906
          %v3064 = vmax.f32 %v3063, %v2907
          %v3065 = vmax.f32 %v3064, %v2908
          %v3066 = vmax.f32 %v3065, %v2909
          %v3067 = vrot.slane %v3066, 4
          %v3068 = vmax.f32 %v3066, %v3067
          %v3069 = vrot.slane %v3068, 2
          %v3070 = vmax.f32 %v3068, %v3069
          %v3071 = vrot.slane %v3070, 1
          %v3072 = vmax.f32 %v3070, %v3071
          %v3073 = vmax.f32 %v2910, %v2911
          %v3074 = vmax.f32 %v3073, %v2912
          %v3075 = vmax.f32 %v3074, %v2913
          %v3076 = vmax.f32 %v3075, %v2914
          %v3077 = vmax.f32 %v3076, %v2915
          %v3078 = vmax.f32 %v3077, %v2916
          %v3079 = vmax.f32 %v3078, %v2917
          %v3080 = vmax.f32 %v3079, %v2918
          %v3081 = vmax.f32 %v3080, %v2919
          %v3082 = vmax.f32 %v3081, %v2920
          %v3083 = vmax.f32 %v3082, %v2921
          %v3084 = vmax.f32 %v3083, %v2922
          %v3085 = vmax.f32 %v3084, %v2923
          %v3086 = vmax.f32 %v3085, %v2924
          %v3087 = vmax.f32 %v3086, %v2925
          %v3088 = vrot.slane %v3087, 4
          %v3089 = vmax.f32 %v3087, %v3088
          %v3090 = vrot.slane %v3089, 2
          %v3091 = vmax.f32 %v3089, %v3090
          %v3092 = vrot.slane %v3091, 1
          %v3093 = vmax.f32 %v3091, %v3092
          %v3094 = vld [vmem:[#allocation4] sm:$0xff]
          %vm3103 = vcmask 1041409
          %v3104 = vsel %vm3103, %v2967, %v2946
          %vm3105 = vcmask 1042434
          %v3106 = vsel %vm3105, %v2988, %v3104
          %vm3107 = vcmask 1043459
          %v3108 = vsel %vm3107, %v3009, %v3106
          %vm3109 = vcmask 1044484
          %v3110 = vsel %vm3109, %v3030, %v3108
          %vm3111 = vcmask 1045509
          %v3112 = vsel %vm3111, %v3051, %v3110
          %vm3113 = vcmask 1046534
          %v3114 = vsel %vm3113, %v3072, %v3112
          %vm3115 = vcmask 1047559
          %v3116 = vsel %vm3115, %v3093, %v3114
          %v3118 = vmax.f32 %v3094, %v3116
          %3119 = vst [vmem:[#allocation4] sm:$0xff] %v3118
        $region100: #{gcn_forward.1} parent=91 // pred_fallthru
          _
      $region92: #{gcn_forward.1} parent=67 // pred_fallthru
        _
      // Predicated region
      $region101: #{gcn_forward.1} parent=67 // pred_check
        _
      $region102: #{gcn_forward.1} parent=67 // pred_check_branch
        %3121 = sbr.rel (%p599) target = $region104
      $region103: #{gcn_forward.1} parent=67 // pred_region
        %v3122 = vld [vmem:[#allocation4] sm:$0xff]
        %v3123 = vpack.c.bf16 %v3122, %v3122
        %v3124 = vld [vmem:[%s6] sm:$0xf]
        %v3125 = vld [vmem:[%s6 + $0x4] sm:$0xf]
        %v3126 = vld [vmem:[%s6 + $0x8] sm:$0xf]
        %v3127 = vld [vmem:[%s6 + $0xc] sm:$0xf]
        %v3128 = vld [vmem:[%s6 + $0x10] sm:$0xf]
        %v3129 = vld [vmem:[%s6 + $0x14] sm:$0xf]
        %v3130 = vld [vmem:[%s6 + $0x18] sm:$0xf]
        %v3131 = vld [vmem:[%s6 + $0x1c] sm:$0xf]
        %v3132 = vld [vmem:[%s6 + $0x20] sm:$0xf]
        %v3133 = vld [vmem:[%s6 + $0x24] sm:$0xf]
        %v3134 = vld [vmem:[%s6 + $0x28] sm:$0xf]
        %v3135 = vld [vmem:[%s6 + $0x2c] sm:$0xf]
        %v3136 = vld [vmem:[%s6 + $0x30] sm:$0xf]
        %v3137 = vld [vmem:[%s6 + $0x34] sm:$0xf]
        %v3138 = vld [vmem:[%s6 + $0x38] sm:$0xf]
        %v3139 = vld [vmem:[%s6 + $0x3c] sm:$0xf]
        %v3140 = vld [vmem:[%s7] sm:$0x1]
        %v3142 = vlaneseq
        %v3143 = vshrl.u32 %v3142, 7
        %v3144 = vsub.s32 0, %v3143
        %v3145 = vrot.slane %v3140, %v3144
        %v3163 = vunpack.c.l.b16 %v3124
        %v3164 = vunpack.c.l.b16 %v3125
        %v3165 = vunpack.c.l.b16 %v3126
        %v3166 = vunpack.c.l.b16 %v3127
        %v3167 = vunpack.c.l.b16 %v3128
        %v3168 = vunpack.c.l.b16 %v3129
        %v3169 = vunpack.c.l.b16 %v3130
        %v3170 = vunpack.c.l.b16 %v3131
        %v3171 = vunpack.c.l.b16 %v3132
        %v3172 = vunpack.c.l.b16 %v3133
        %v3173 = vunpack.c.l.b16 %v3134
        %v3174 = vunpack.c.l.b16 %v3135
        %v3175 = vunpack.c.l.b16 %v3136
        %v3176 = vunpack.c.l.b16 %v3137
        %v3177 = vunpack.c.l.b16 %v3138
        %v3178 = vunpack.c.l.b16 %v3139
        %v3179 = vpack.c.b16 %v3164, %v3163
        %v3180 = vpack.c.b16 %v3166, %v3165
        %v3181 = vpack.c.b16 %v3168, %v3167
        %v3182 = vpack.c.b16 %v3170, %v3169
        %v3183 = vpack.c.b16 %v3172, %v3171
        %v3184 = vpack.c.b16 %v3174, %v3173
        %v3185 = vpack.c.b16 %v3176, %v3175
        %v3186 = vpack.c.b16 %v3178, %v3177
        %3195 = vmatprep.subr.bf16.mxu0 0
        %3196 = vmatpush1.bf16.msra.mxu0 %v3179
        %3197 = vmatprep.subr.bf16.mxu0 0
        %3198 = vmatpush1.bf16.msra.mxu0 %v3180
        %3199 = vmatprep.subr.bf16.mxu0 0
        %3200 = vmatpush1.bf16.msra.mxu0 %v3181
        %3201 = vmatprep.subr.bf16.mxu0 0
        %3202 = vmatpush1.bf16.msra.mxu0 %v3182
        %3203 = vmatprep.subr.bf16.mxu0 0
        %3204 = vmatpush1.bf16.msra.mxu0 %v3183
        %3205 = vmatprep.subr.bf16.mxu0 0
        %3206 = vmatpush1.bf16.msra.mxu0 %v3184
        %3207 = vmatprep.subr.bf16.mxu0 0
        %3208 = vmatpush1.bf16.msra.mxu0 %v3185
        %3209 = vmatprep.subr.bf16.mxu0 0
        %3210 = vmatpush1.bf16.msra.mxu0 %v3186
        %3211 = vmatprep.subr.bf16.mxu0 0
        %3212 = vmatpush1.bf16.msra.mxu0 0
        %3213 = vmatprep.subr.bf16.mxu0 0
        %3214 = vmatpush1.bf16.msra.mxu0 0
        %3215 = vmatprep.subr.bf16.mxu0 0
        %3216 = vmatpush1.bf16.msra.mxu0 0
        %3217 = vmatprep.subr.bf16.mxu0 0
        %3218 = vmatpush1.bf16.msra.mxu0 0
        %3219 = vmatprep.subr.bf16.mxu0 0
        %3220 = vmatpush1.bf16.msra.mxu0 0
        %3221 = vmatprep.subr.bf16.mxu0 0
        %3222 = vmatpush1.bf16.msra.mxu0 0
        %3223 = vmatprep.subr.bf16.mxu0 0
        %3224 = vmatpush1.bf16.msra.mxu0 0
        %3225 = vmatprep.subr.bf16.mxu0 0
        %3226 = vmatpush1.bf16.msra.mxu0 0
        %3227 = vmatprep.mubr.bf16.mxu0 0
        %3228 = vmatmul.mubr.bf16.gmra.mrb[0].mxu0 %v3123
        %v3229 = vpop.f32.mrb[0].mxu0
        %v3230 = vadd.f32 %v3145, %v3229
        %v3231 = vpop.f32.mrb[0].mxu0
        %v3232 = vpop.f32.mrb[0].mxu0
        %v3233 = vpop.f32.mrb[0].mxu0
        %3234 = vdwg.mxu0
        %v3235 = vmax.f32 %v3230, 0.0
        %v3236 = vpack.c.bf16 %v3235, %v3235
        %v3237 = vld [vmem:[%s8] sm:$0xf]
        %v3238 = vld [vmem:[%s8 + $0x4] sm:$0xf]
        %v3239 = vld [vmem:[%s8 + $0x8] sm:$0xf]
        %v3240 = vld [vmem:[%s8 + $0xc] sm:$0xf]
        %v3241 = vld [vmem:[%s8 + $0x10] sm:$0xf]
        %v3242 = vld [vmem:[%s8 + $0x14] sm:$0xf]
        %v3243 = vld [vmem:[%s8 + $0x18] sm:$0xf]
        %v3244 = vld [vmem:[%s8 + $0x1c] sm:$0xf]
        %v3245 = vld [vmem:[%s8 + $0x20] sm:$0xf]
        %v3246 = vld [vmem:[%s8 + $0x24] sm:$0xf]
        %v3247 = vld [vmem:[%s8 + $0x28] sm:$0xf]
        %v3248 = vld [vmem:[%s8 + $0x2c] sm:$0xf]
        %v3249 = vld [vmem:[%s8 + $0x30] sm:$0xf]
        %v3250 = vld [vmem:[%s8 + $0x34] sm:$0xf]
        %v3251 = vld [vmem:[%s8 + $0x38] sm:$0xf]
        %v3252 = vld [vmem:[%s8 + $0x3c] sm:$0xf]
        %v3253 = vld [vmem:[%s9] sm:$0x1]
        %v3255 = vlaneseq
        %v3256 = vshrl.u32 %v3255, 7
        %v3257 = vsub.s32 0, %v3256
        %v3258 = vrot.slane %v3253, %v3257
        %v3276 = vunpack.c.l.b16 %v3237
        %v3277 = vunpack.c.l.b16 %v3238
        %v3278 = vunpack.c.l.b16 %v3239
        %v3279 = vunpack.c.l.b16 %v3240
        %v3280 = vunpack.c.l.b16 %v3241
        %v3281 = vunpack.c.l.b16 %v3242
        %v3282 = vunpack.c.l.b16 %v3243
        %v3283 = vunpack.c.l.b16 %v3244
        %v3284 = vunpack.c.l.b16 %v3245
        %v3285 = vunpack.c.l.b16 %v3246
        %v3286 = vunpack.c.l.b16 %v3247
        %v3287 = vunpack.c.l.b16 %v3248
        %v3288 = vunpack.c.l.b16 %v3249
        %v3289 = vunpack.c.l.b16 %v3250
        %v3290 = vunpack.c.l.b16 %v3251
        %v3291 = vunpack.c.l.b16 %v3252
        %v3292 = vpack.c.b16 %v3277, %v3276
        %v3293 = vpack.c.b16 %v3279, %v3278
        %v3294 = vpack.c.b16 %v3281, %v3280
        %v3295 = vpack.c.b16 %v3283, %v3282
        %v3296 = vpack.c.b16 %v3285, %v3284
        %v3297 = vpack.c.b16 %v3287, %v3286
        %v3298 = vpack.c.b16 %v3289, %v3288
        %v3299 = vpack.c.b16 %v3291, %v3290
        %3308 = vmatprep.subr.bf16.mxu0 0
        %3309 = vmatpush1.bf16.msra.mxu0 %v3292
        %3310 = vmatprep.subr.bf16.mxu0 0
        %3311 = vmatpush1.bf16.msra.mxu0 %v3293
        %3312 = vmatprep.subr.bf16.mxu0 0
        %3313 = vmatpush1.bf16.msra.mxu0 %v3294
        %3314 = vmatprep.subr.bf16.mxu0 0
        %3315 = vmatpush1.bf16.msra.mxu0 %v3295
        %3316 = vmatprep.subr.bf16.mxu0 0
        %3317 = vmatpush1.bf16.msra.mxu0 %v3296
        %3318 = vmatprep.subr.bf16.mxu0 0
        %3319 = vmatpush1.bf16.msra.mxu0 %v3297
        %3320 = vmatprep.subr.bf16.mxu0 0
        %3321 = vmatpush1.bf16.msra.mxu0 %v3298
        %3322 = vmatprep.subr.bf16.mxu0 0
        %3323 = vmatpush1.bf16.msra.mxu0 %v3299
        %3324 = vmatprep.subr.bf16.mxu0 0
        %3325 = vmatpush1.bf16.msra.mxu0 0
        %3326 = vmatprep.subr.bf16.mxu0 0
        %3327 = vmatpush1.bf16.msra.mxu0 0
        %3328 = vmatprep.subr.bf16.mxu0 0
        %3329 = vmatpush1.bf16.msra.mxu0 0
        %3330 = vmatprep.subr.bf16.mxu0 0
        %3331 = vmatpush1.bf16.msra.mxu0 0
        %3332 = vmatprep.subr.bf16.mxu0 0
        %3333 = vmatpush1.bf16.msra.mxu0 0
        %3334 = vmatprep.subr.bf16.mxu0 0
        %3335 = vmatpush1.bf16.msra.mxu0 0
        %3336 = vmatprep.subr.bf16.mxu0 0
        %3337 = vmatpush1.bf16.msra.mxu0 0
        %3338 = vmatprep.subr.bf16.mxu0 0
        %3339 = vmatpush1.bf16.msra.mxu0 0
        %3340 = vmatprep.mubr.bf16.mxu0 0
        %3341 = vmatmul.mubr.bf16.gmra.mrb[0].mxu0 %v3236
        %v3342 = vpop.f32.mrb[0].mxu0
        %v3343 = vadd.f32 %v3258, %v3342
        %v3344 = vpop.f32.mrb[0].mxu0
        %v3345 = vpop.f32.mrb[0].mxu0
        %v3346 = vpop.f32.mrb[0].mxu0
        %3347 = vdwg.mxu0
        %v3348 = vmax.f32 %v3343, 0.0
        %v3349 = vpack.c.bf16 %v3348, %v3348
        %v3350 = vld [vmem:[%s10] sm:$0xf]
        %v3351 = vld [vmem:[%s10 + $0x4] sm:$0xf]
        %v3352 = vld [vmem:[%s10 + $0x8] sm:$0xf]
        %v3353 = vld [vmem:[%s10 + $0xc] sm:$0xf]
        %v3354 = vld [vmem:[%s10 + $0x10] sm:$0xf]
        %v3355 = vld [vmem:[%s10 + $0x14] sm:$0xf]
        %v3356 = vld [vmem:[%s10 + $0x18] sm:$0xf]
        %v3357 = vld [vmem:[%s10 + $0x1c] sm:$0xf]
        %v3358 = vld [vmem:[%s10 + $0x20] sm:$0xf]
        %v3359 = vld [vmem:[%s10 + $0x24] sm:$0xf]
        %v3360 = vld [vmem:[%s10 + $0x28] sm:$0xf]
        %v3361 = vld [vmem:[%s10 + $0x2c] sm:$0xf]
        %v3362 = vld [vmem:[%s10 + $0x30] sm:$0xf]
        %v3363 = vld [vmem:[%s10 + $0x34] sm:$0xf]
        %v3364 = vld [vmem:[%s10 + $0x38] sm:$0xf]
        %v3365 = vld [vmem:[%s10 + $0x3c] sm:$0xf]
        %v3366 = vld [vmem:[%s11] sm:$0x1]
        %v3368 = vlaneseq
        %v3369 = vshrl.u32 %v3368, 7
        %v3370 = vsub.s32 0, %v3369
        %v3371 = vrot.slane %v3366, %v3370
        %v3389 = vunpack.c.l.b16 %v3350
        %v3390 = vunpack.c.l.b16 %v3351
        %v3391 = vunpack.c.l.b16 %v3352
        %v3392 = vunpack.c.l.b16 %v3353
        %v3393 = vunpack.c.l.b16 %v3354
        %v3394 = vunpack.c.l.b16 %v3355
        %v3395 = vunpack.c.l.b16 %v3356
        %v3396 = vunpack.c.l.b16 %v3357
        %v3397 = vunpack.c.l.b16 %v3358
        %v3398 = vunpack.c.l.b16 %v3359
        %v3399 = vunpack.c.l.b16 %v3360
        %v3400 = vunpack.c.l.b16 %v3361
        %v3401 = vunpack.c.l.b16 %v3362
        %v3402 = vunpack.c.l.b16 %v3363
        %v3403 = vunpack.c.l.b16 %v3364
        %v3404 = vunpack.c.l.b16 %v3365
        %v3405 = vpack.c.b16 %v3390, %v3389
        %v3406 = vpack.c.b16 %v3392, %v3391
        %v3407 = vpack.c.b16 %v3394, %v3393
        %v3408 = vpack.c.b16 %v3396, %v3395
        %v3409 = vpack.c.b16 %v3398, %v3397
        %v3410 = vpack.c.b16 %v3400, %v3399
        %v3411 = vpack.c.b16 %v3402, %v3401
        %v3412 = vpack.c.b16 %v3404, %v3403
        %3421 = vmatprep.subr.bf16.mxu0 0
        %3422 = vmatpush1.bf16.msra.mxu0 %v3405
        %3423 = vmatprep.subr.bf16.mxu0 0
        %3424 = vmatpush1.bf16.msra.mxu0 %v3406
        %3425 = vmatprep.subr.bf16.mxu0 0
        %3426 = vmatpush1.bf16.msra.mxu0 %v3407
        %3427 = vmatprep.subr.bf16.mxu0 0
        %3428 = vmatpush1.bf16.msra.mxu0 %v3408
        %3429 = vmatprep.subr.bf16.mxu0 0
        %3430 = vmatpush1.bf16.msra.mxu0 %v3409
        %3431 = vmatprep.subr.bf16.mxu0 0
        %3432 = vmatpush1.bf16.msra.mxu0 %v3410
        %3433 = vmatprep.subr.bf16.mxu0 0
        %3434 = vmatpush1.bf16.msra.mxu0 %v3411
        %3435 = vmatprep.subr.bf16.mxu0 0
        %3436 = vmatpush1.bf16.msra.mxu0 %v3412
        %3437 = vmatprep.subr.bf16.mxu0 0
        %3438 = vmatpush1.bf16.msra.mxu0 0
        %3439 = vmatprep.subr.bf16.mxu0 0
        %3440 = vmatpush1.bf16.msra.mxu0 0
        %3441 = vmatprep.subr.bf16.mxu0 0
        %3442 = vmatpush1.bf16.msra.mxu0 0
        %3443 = vmatprep.subr.bf16.mxu0 0
        %3444 = vmatpush1.bf16.msra.mxu0 0
        %3445 = vmatprep.subr.bf16.mxu0 0
        %3446 = vmatpush1.bf16.msra.mxu0 0
        %3447 = vmatprep.subr.bf16.mxu0 0
        %3448 = vmatpush1.bf16.msra.mxu0 0
        %3449 = vmatprep.subr.bf16.mxu0 0
        %3450 = vmatpush1.bf16.msra.mxu0 0
        %3451 = vmatprep.subr.bf16.mxu0 0
        %3452 = vmatpush1.bf16.msra.mxu0 0
        %3453 = vmatprep.mubr.bf16.mxu0 0
        %3454 = vmatmul.mubr.bf16.gmra.mrb[0].mxu0 %v3349
        %v3455 = vpop.f32.mrb[0].mxu0
        %v3456 = vadd.f32 %v3371, %v3455
        %v3457 = vpop.f32.mrb[0].mxu0
        %v3458 = vpop.f32.mrb[0].mxu0
        %v3459 = vpop.f32.mrb[0].mxu0
        %3460 = vdwg.mxu0
        %3461 = vst [vmem:[%s12] sm:$0xff] %v3456
      $region104: #{gcn_forward.1} parent=67 // pred_fallthru
        _
      // Predicated region
      $region105: #{gcn_forward.1} parent=67 // pred_check
        %p3462 = pneg %p319
      $region106: #{gcn_forward.1} parent=67 // pred_check_branch
        %3464 = sbr.rel (%p3462) target = $region108
      $region107: #{gcn_forward.1} parent=67 // pred_region
        _
      $region108: #{gcn_forward.1} parent=67 // pred_fallthru
        _
      // Predicated region
      $region109: #{gcn_forward.1} parent=67 // pred_check
        %p3465 = pneg %p319
      $region110: #{gcn_forward.1} parent=67 // pred_check_branch
        %3467 = sbr.rel (%p3465) target = $region112
      $region111: #{gcn_forward.1} parent=67 // pred_region
        _
      $region112: #{gcn_forward.1} parent=67 // pred_fallthru
        _
    $region68: #{gcn_forward.1} parent=5 // pred_fallthru
      _
    %p3468 = scmp.le.s32.totalorder 2, %s18
    // Predicated region
    $region113: #{gcn_forward.1} parent=5 // pred_check
      %p3469 = pneg %p3468
    $region114: #{gcn_forward.1} parent=5 // pred_check_branch
      %3471 = sbr.rel (%p3469) target = $region116
    $region115: #{gcn_forward.1} parent=5 // pred_region
      %s3472 = ssub.s32 %s18, 2
    $region116: #{gcn_forward.1} parent=5 // pred_fallthru
      _
  $region6: #{gcn_forward.1} parent=0 // loop_footer
    %s22 = sadd.s32 1, %s18
  $region7: #{gcn_forward.1} parent=0 // loop_footer_branch
    %17 = sbr.rel target = $region3
  $region8: #{gcn_forward.1} parent=0 // loop_exit
    _

</llo_original>
